<compile_context>
chip_gen: v7x
topology: tpu7x:2x2x1
jax: 0.10.0
libtpu: 0.0.40
codegen_flags: <defaults>
</compile_context>

<pallas_src>
import jax
import jax.numpy as jnp
import numpy as np
from jax.experimental import pallas as pl
from jax.experimental.pallas import tpu as pltpu


# ------------------------------ fused kernel ---------------------------------
def deeplog_gru_kernel(x_ref, wi0_ref, wi_rest_ref, wh_ref, bi_ref, bh_ref,
                       fcw_ref, fcb_ref, out_ref):
    B, T, D = x_ref.shape
    L, H, H3 = wh_ref.shape          # (num_layers, hidden, 3*hidden)

    def run_layer(gi_bt, wh, bh):
        """gi_bt: (B, T, 3H) = x @ W_i + b_i  (precomputed for all timesteps).
        wh: (H, 3H), bh: (1, 3H). Returns (h_last, [h_t for t in range(T)])."""
        h = jnp.zeros((B, H), jnp.float32)
        hs = []
        for t in range(T):                                   # fully unrolled
            g_i = gi_bt[:, t, :]                             # (B, 3H)
            g_h = jnp.dot(h, wh,
                          preferred_element_type=jnp.float32) + bh
            r = jax.nn.sigmoid(g_i[:, 0:H] + g_h[:, 0:H])
            z = jax.nn.sigmoid(g_i[:, H:2 * H] + g_h[:, H:2 * H])
            n = jnp.tanh(g_i[:, 2 * H:] + r * g_h[:, 2 * H:])
            h = (1.0 - z) * n + z * h
            hs.append(h)
        return h, hs

    # ---- layer 0: hoisted input projection over the whole sequence ----------
    x2d = x_ref[...].reshape(B * T, D)                       # (B*T, D)
    gi = (jnp.dot(x2d, wi0_ref[...],
                  preferred_element_type=jnp.float32)
          + bi_ref[0:1, :]).reshape(B, T, H3)
    h_last, hs = run_layer(gi, wh_ref[0], bh_ref[0:1, :])

    # ---- layers 1 .. L-1 -----------------------------------------------------
    for l in range(1, L):
        seq = jnp.stack(hs, axis=1).reshape(B * T, H)        # (B*T, H)
        gi = (jnp.dot(seq, wi_rest_ref[l - 1],
                      preferred_element_type=jnp.float32)
              + bi_ref[l:l + 1, :]).reshape(B, T, H3)
        h_last, hs = run_layer(gi, wh_ref[l], bh_ref[l:l + 1, :])

    # ---- final Linear on last timestep of last layer -------------------------
    out_ref[...] = (jnp.dot(h_last, fcw_ref[...],
                            preferred_element_type=jnp.float32)
                    + fcb_ref[...]).astype(out_ref.dtype)


# -------------------------------- wrapper ------------------------------------
def deeplog_gru_forward(x, wi0, wi_rest, wh, b_i, b_h, fc_w, fc_b):
    """x: (B, T, D) batch_first (PyTorch convention). Returns (B, num_classes)."""
    B, T, D = x.shape
    C = fc_w.shape[1]

    def full_spec(arr):
        nd = arr.ndim
        return pl.BlockSpec(arr.shape, lambda i, nd=nd: (0,) * nd)

    args = (x, wi0, wi_rest, wh, b_i, b_h, fc_w, fc_b)
    grid_spec = pl.GridSpec(
        grid=(1,),
        in_specs=[full_spec(a) for a in args],
        out_specs=pl.BlockSpec((B, C), lambda i: (0, 0)),
    )
    return pl.pallas_call(
        deeplog_gru_kernel,
        out_shape=jax.ShapeDtypeStruct((B, C), jnp.float32),
        grid_spec=grid_spec,
        compiler_params=pltpu.CompilerParams(
            dimension_semantics=("arbitrary",)),
    )(*args)


# ------------------------- deterministic param init --------------------------
def init_params(key, input_size, hidden_size, num_layers, num_classes):
    """PyTorch-style init; gate order (r, z, n), packed/concatenated layout."""
    H = hidden_size
    bound = 1.0 / np.sqrt(H)

    def uni(k, shape):
        return jax.random.uniform(k, shape, jnp.float32,
                                  minval=-bound, maxval=bound)

    wi_list, wh_list, bi_list, bh_list = [], [], [], []
    for layer in range(num_layers):
        d_in = input_size if layer == 0 else H
        key, k1, k2, k3, k4 = jax.random.split(key, 5)
        wi_list.append(uni(k1, (d_in, 3 * H)))   # = weight_ih_l.T, gates (r,z,n)
        wh_list.append(uni(k2, (H, 3 * H)))      # = weight_hh_l.T
        bi_list.append(uni(k3, (3 * H,)))        # = bias_ih_l
        bh_list.append(uni(k4, (3 * H,)))        # = bias_hh_l

    wi0 = wi_list[0]                             # (D, 3H)
    wi_rest = jnp.stack(wi_list[1:], axis=0)     # (L-1, H, 3H)
    wh = jnp.stack(wh_list, axis=0)              # (L, H, 3H)
    b_i = jnp.stack(bi_list, axis=0)             # (L, 3H)
    b_h = jnp.stack(bh_list, axis=0)             # (L, 3H)

    key, k_w, k_b = jax.random.split(key, 3)
    fc_w = uni(k_w, (H, num_classes))            # (H, C)
    fc_b = uni(k_b, (1, num_classes))            # (1, C)
    return wi0, wi_rest, wh, b_i, b_h, fc_w, fc_b


# ----------------------------- pure-JAX reference ----------------------------
def reference_forward(x, wi0, wi_rest, wh, b_i, b_h, fc_w, fc_b):
    B, T, D = x.shape
    L, H, _ = wh.shape
    seq = jnp.transpose(x, (1, 0, 2))            # (T, B, D)
    for l in range(L):
        wi = wi0 if l == 0 else wi_rest[l - 1]
        wh_l, bi_l, bh_l = wh[l], b_i[l], b_h[l]

        def step(h, x_t, wi=wi, wh_l=wh_l, bi_l=bi_l, bh_l=bh_l):
            gi = x_t @ wi + bi_l
            gh = h @ wh_l + bh_l
            r = jax.nn.sigmoid(gi[:, :H] + gh[:, :H])
            z = jax.nn.sigmoid(gi[:, H:2 * H] + gh[:, H:2 * H])
            n = jnp.tanh(gi[:, 2 * H:] + r * gh[:, 2 * H:])
            h_new = (1.0 - z) * n + z * h
            return h_new, h_new

        h0 = jnp.zeros((B, H), jnp.float32)
        _, seq = jax.lax.scan(step, h0, seq)
    return seq[-1] @ fc_w + fc_b


# ---------------------------------- main --------------------------------------
if __name__ == "__main__":
    B, T = 2, 8
    input_size, hidden_size, num_layers, num_classes = 16, 32, 4, 2

    key = jax.random.PRNGKey(0)
    key, k_x = jax.random.split(key)
    x = jax.random.normal(k_x, (B, T, input_size), jnp.float32)

    params = init_params(key, input_size, hidden_size, num_layers, num_classes)

    fwd = jax.jit(deeplog_gru_forward)
    out = jax.block_until_ready(fwd(x, *params))

    ref = jax.block_until_ready(reference_forward(x, *params))
    assert out.shape == (B, num_classes)
    np.testing.assert_allclose(np.asarray(out), np.asarray(ref),
                               rtol=1e-5, atol=1e-5)

    print("KERNEL_OK")
</pallas_src>

<mosaic_0001>
module attributes {stable_mosaic.version = 11 : i64} {
  func.func @deeplog_gru_kernel(%arg0: i32, %arg1: memref<2x8x16xf32, #tpu.memory_space<vmem>>, %arg2: memref<16x96xf32, #tpu.memory_space<vmem>>, %arg3: memref<3x32x96xf32, #tpu.memory_space<vmem>>, %arg4: memref<4x32x96xf32, #tpu.memory_space<vmem>>, %arg5: memref<4x96xf32, #tpu.memory_space<vmem>>, %arg6: memref<4x96xf32, #tpu.memory_space<vmem>>, %arg7: memref<32x2xf32, #tpu.memory_space<vmem>>, %arg8: memref<1x2xf32, #tpu.memory_space<vmem>>, %arg9: memref<2x2xf32, #tpu.memory_space<vmem>>) attributes {dimension_semantics = [#tpu.dimension_semantics<arbitrary>], iteration_bounds = array<i64: 1>, scalar_prefetch = 0 : i64, scratch_operands = 0 : i64, tpu.core_type = #tpu.core_type<tc>, window_params = [{pipeline_mode = #tpu.pipeline_mode<synchronous>, transform_indices = @transform_0, window_bounds = array<i64: 2, 8, 16>}, {pipeline_mode = #tpu.pipeline_mode<synchronous>, transform_indices = @transform_1, window_bounds = array<i64: 16, 96>}, {pipeline_mode = #tpu.pipeline_mode<synchronous>, transform_indices = @transform_2, window_bounds = array<i64: 3, 32, 96>}, {pipeline_mode = #tpu.pipeline_mode<synchronous>, transform_indices = @transform_3, window_bounds = array<i64: 4, 32, 96>}, {pipeline_mode = #tpu.pipeline_mode<synchronous>, transform_indices = @transform_4, window_bounds = array<i64: 4, 96>}, {pipeline_mode = #tpu.pipeline_mode<synchronous>, transform_indices = @transform_5, window_bounds = array<i64: 4, 96>}, {pipeline_mode = #tpu.pipeline_mode<synchronous>, transform_indices = @transform_6, window_bounds = array<i64: 32, 2>}, {pipeline_mode = #tpu.pipeline_mode<synchronous>, transform_indices = @transform_7, window_bounds = array<i64: 1, 2>}, {pipeline_mode = #tpu.pipeline_mode<synchronous>, transform_indices = @transform_8, window_bounds = array<i64: 2, 2>}]} {
    %c0 = arith.constant 0 : index
    %c0_0 = arith.constant 0 : index
    %c0_1 = arith.constant 0 : index
    %0 = vector.load %arg1[%c0, %c0_0, %c0_1] : memref<2x8x16xf32, #tpu.memory_space<vmem>>, vector<2x8x16xf32>
    %1 = vector.shape_cast %0 : vector<2x8x16xf32> to vector<16x16xf32>
    %c0_2 = arith.constant 0 : index
    %c0_3 = arith.constant 0 : index
    %2 = vector.load %arg2[%c0_2, %c0_3] : memref<16x96xf32, #tpu.memory_space<vmem>>, vector<16x96xf32>
    %cst = arith.constant dense<0.000000e+00> : vector<16x96xf32>
    %3 = tpu.matmul %1, %2, %cst {dimension_numbers = #tpu.dot_dimension_numbers<[1], [0], [0], [1], [0, 0, 1, 1], [], []>} : vector<16x16xf32>, vector<16x96xf32>, vector<16x96xf32> -> vector<16x96xf32>
    %c0_4 = arith.constant 0 : index
    %c0_5 = arith.constant 0 : index
    %4 = vector.load %arg5[%c0_4, %c0_5] : memref<4x96xf32, #tpu.memory_space<vmem>>, vector<1x96xf32>
    %5 = vector.broadcast %4 : vector<1x96xf32> to vector<16x96xf32>
    %6 = arith.addf %3, %5 : vector<16x96xf32>
    %7 = vector.shape_cast %6 : vector<16x96xf32> to vector<2x8x96xf32>
    %c0_6 = arith.constant 0 : index
    %c0_7 = arith.constant 0 : index
    %c0_8 = arith.constant 0 : index
    %8 = vector.load %arg4[%c0_6, %c0_7, %c0_8] : memref<4x32x96xf32, #tpu.memory_space<vmem>>, vector<1x32x96xf32>
    %9 = vector.shape_cast %8 : vector<1x32x96xf32> to vector<32x96xf32>
    %c0_9 = arith.constant 0 : index
    %c0_10 = arith.constant 0 : index
    %10 = vector.load %arg6[%c0_9, %c0_10] : memref<4x96xf32, #tpu.memory_space<vmem>>, vector<1x96xf32>
    %cst_11 = arith.constant 0.000000e+00 : f32
    %11 = vector.broadcast %cst_11 : f32 to vector<2x32xf32>
    %12 = vector.extract_strided_slice %7 {offsets = [0, 0, 0], sizes = [2, 1, 96], strides = [1, 1, 1]} : vector<2x8x96xf32> to vector<2x1x96xf32>
    %13 = vector.shape_cast %12 : vector<2x1x96xf32> to vector<2x96xf32>
    %cst_12 = arith.constant dense<0.000000e+00> : vector<2x96xf32>
    %14 = tpu.matmul %11, %9, %cst_12 {dimension_numbers = #tpu.dot_dimension_numbers<[1], [0], [0], [1], [0, 0, 1, 1], [], []>} : vector<2x32xf32>, vector<32x96xf32>, vector<2x96xf32> -> vector<2x96xf32>
    %15 = vector.broadcast %10 : vector<1x96xf32> to vector<2x96xf32>
    %16 = arith.addf %14, %15 : vector<2x96xf32>
    %17 = vector.extract_strided_slice %13 {offsets = [0, 0], sizes = [2, 32], strides = [1, 1]} : vector<2x96xf32> to vector<2x32xf32>
    %18 = vector.extract_strided_slice %16 {offsets = [0, 0], sizes = [2, 32], strides = [1, 1]} : vector<2x96xf32> to vector<2x32xf32>
    %19 = arith.addf %17, %18 : vector<2x32xf32>
    %20 = arith.negf %19 : vector<2x32xf32>
    %21 = math.exp %20 : vector<2x32xf32>
    %cst_13 = arith.constant 1.000000e+00 : f32
    %22 = vector.broadcast %cst_13 : f32 to vector<2x32xf32>
    %23 = arith.addf %22, %21 : vector<2x32xf32>
    %24 = arith.divf %22, %23 : vector<2x32xf32>
    %25 = vector.extract_strided_slice %13 {offsets = [0, 32], sizes = [2, 32], strides = [1, 1]} : vector<2x96xf32> to vector<2x32xf32>
    %26 = vector.extract_strided_slice %16 {offsets = [0, 32], sizes = [2, 32], strides = [1, 1]} : vector<2x96xf32> to vector<2x32xf32>
    %27 = arith.addf %25, %26 : vector<2x32xf32>
    %28 = arith.negf %27 : vector<2x32xf32>
    %29 = math.exp %28 : vector<2x32xf32>
    %cst_14 = arith.constant 1.000000e+00 : f32
    %30 = vector.broadcast %cst_14 : f32 to vector<2x32xf32>
    %31 = arith.addf %30, %29 : vector<2x32xf32>
    %32 = arith.divf %30, %31 : vector<2x32xf32>
    %33 = vector.extract_strided_slice %13 {offsets = [0, 64], sizes = [2, 32], strides = [1, 1]} : vector<2x96xf32> to vector<2x32xf32>
    %34 = vector.extract_strided_slice %16 {offsets = [0, 64], sizes = [2, 32], strides = [1, 1]} : vector<2x96xf32> to vector<2x32xf32>
    %35 = arith.mulf %24, %34 : vector<2x32xf32>
    %36 = arith.addf %33, %35 : vector<2x32xf32>
    %37 = math.tanh %36 : vector<2x32xf32>
    %cst_15 = arith.constant 1.000000e+00 : f32
    %38 = vector.broadcast %cst_15 : f32 to vector<2x32xf32>
    %39 = arith.subf %38, %32 : vector<2x32xf32>
    %40 = arith.mulf %39, %37 : vector<2x32xf32>
    %41 = arith.mulf %32, %11 : vector<2x32xf32>
    %42 = arith.addf %40, %41 : vector<2x32xf32>
    %43 = vector.extract_strided_slice %7 {offsets = [0, 1, 0], sizes = [2, 1, 96], strides = [1, 1, 1]} : vector<2x8x96xf32> to vector<2x1x96xf32>
    %44 = vector.shape_cast %43 : vector<2x1x96xf32> to vector<2x96xf32>
    %cst_16 = arith.constant dense<0.000000e+00> : vector<2x96xf32>
    %45 = tpu.matmul %42, %9, %cst_16 {dimension_numbers = #tpu.dot_dimension_numbers<[1], [0], [0], [1], [0, 0, 1, 1], [], []>} : vector<2x32xf32>, vector<32x96xf32>, vector<2x96xf32> -> vector<2x96xf32>
    %46 = vector.broadcast %10 : vector<1x96xf32> to vector<2x96xf32>
    %47 = arith.addf %45, %46 : vector<2x96xf32>
    %48 = vector.extract_strided_slice %44 {offsets = [0, 0], sizes = [2, 32], strides = [1, 1]} : vector<2x96xf32> to vector<2x32xf32>
    %49 = vector.extract_strided_slice %47 {offsets = [0, 0], sizes = [2, 32], strides = [1, 1]} : vector<2x96xf32> to vector<2x32xf32>
    %50 = arith.addf %48, %49 : vector<2x32xf32>
    %51 = arith.negf %50 : vector<2x32xf32>
    %52 = math.exp %51 : vector<2x32xf32>
    %cst_17 = arith.constant 1.000000e+00 : f32
    %53 = vector.broadcast %cst_17 : f32 to vector<2x32xf32>
    %54 = arith.addf %53, %52 : vector<2x32xf32>
    %55 = arith.divf %53, %54 : vector<2x32xf32>
    %56 = vector.extract_strided_slice %44 {offsets = [0, 32], sizes = [2, 32], strides = [1, 1]} : vector<2x96xf32> to vector<2x32xf32>
    %57 = vector.extract_strided_slice %47 {offsets = [0, 32], sizes = [2, 32], strides = [1, 1]} : vector<2x96xf32> to vector<2x32xf32>
    %58 = arith.addf %56, %57 : vector<2x32xf32>
    %59 = arith.negf %58 : vector<2x32xf32>
    %60 = math.exp %59 : vector<2x32xf32>
    %cst_18 = arith.constant 1.000000e+00 : f32
    %61 = vector.broadcast %cst_18 : f32 to vector<2x32xf32>
    %62 = arith.addf %61, %60 : vector<2x32xf32>
    %63 = arith.divf %61, %62 : vector<2x32xf32>
    %64 = vector.extract_strided_slice %44 {offsets = [0, 64], sizes = [2, 32], strides = [1, 1]} : vector<2x96xf32> to vector<2x32xf32>
    %65 = vector.extract_strided_slice %47 {offsets = [0, 64], sizes = [2, 32], strides = [1, 1]} : vector<2x96xf32> to vector<2x32xf32>
    %66 = arith.mulf %55, %65 : vector<2x32xf32>
    %67 = arith.addf %64, %66 : vector<2x32xf32>
    %68 = math.tanh %67 : vector<2x32xf32>
    %cst_19 = arith.constant 1.000000e+00 : f32
    %69 = vector.broadcast %cst_19 : f32 to vector<2x32xf32>
    %70 = arith.subf %69, %63 : vector<2x32xf32>
    %71 = arith.mulf %70, %68 : vector<2x32xf32>
    %72 = arith.mulf %63, %42 : vector<2x32xf32>
    %73 = arith.addf %71, %72 : vector<2x32xf32>
    %74 = vector.extract_strided_slice %7 {offsets = [0, 2, 0], sizes = [2, 1, 96], strides = [1, 1, 1]} : vector<2x8x96xf32> to vector<2x1x96xf32>
    %75 = vector.shape_cast %74 : vector<2x1x96xf32> to vector<2x96xf32>
    %cst_20 = arith.constant dense<0.000000e+00> : vector<2x96xf32>
    %76 = tpu.matmul %73, %9, %cst_20 {dimension_numbers = #tpu.dot_dimension_numbers<[1], [0], [0], [1], [0, 0, 1, 1], [], []>} : vector<2x32xf32>, vector<32x96xf32>, vector<2x96xf32> -> vector<2x96xf32>
    %77 = vector.broadcast %10 : vector<1x96xf32> to vector<2x96xf32>
    %78 = arith.addf %76, %77 : vector<2x96xf32>
    %79 = vector.extract_strided_slice %75 {offsets = [0, 0], sizes = [2, 32], strides = [1, 1]} : vector<2x96xf32> to vector<2x32xf32>
    %80 = vector.extract_strided_slice %78 {offsets = [0, 0], sizes = [2, 32], strides = [1, 1]} : vector<2x96xf32> to vector<2x32xf32>
    %81 = arith.addf %79, %80 : vector<2x32xf32>
    %82 = arith.negf %81 : vector<2x32xf32>
    %83 = math.exp %82 : vector<2x32xf32>
    %cst_21 = arith.constant 1.000000e+00 : f32
    %84 = vector.broadcast %cst_21 : f32 to vector<2x32xf32>
    %85 = arith.addf %84, %83 : vector<2x32xf32>
    %86 = arith.divf %84, %85 : vector<2x32xf32>
    %87 = vector.extract_strided_slice %75 {offsets = [0, 32], sizes = [2, 32], strides = [1, 1]} : vector<2x96xf32> to vector<2x32xf32>
    %88 = vector.extract_strided_slice %78 {offsets = [0, 32], sizes = [2, 32], strides = [1, 1]} : vector<2x96xf32> to vector<2x32xf32>
    %89 = arith.addf %87, %88 : vector<2x32xf32>
    %90 = arith.negf %89 : vector<2x32xf32>
    %91 = math.exp %90 : vector<2x32xf32>
    %cst_22 = arith.constant 1.000000e+00 : f32
    %92 = vector.broadcast %cst_22 : f32 to vector<2x32xf32>
    %93 = arith.addf %92, %91 : vector<2x32xf32>
    %94 = arith.divf %92, %93 : vector<2x32xf32>
    %95 = vector.extract_strided_slice %75 {offsets = [0, 64], sizes = [2, 32], strides = [1, 1]} : vector<2x96xf32> to vector<2x32xf32>
    %96 = vector.extract_strided_slice %78 {offsets = [0, 64], sizes = [2, 32], strides = [1, 1]} : vector<2x96xf32> to vector<2x32xf32>
    %97 = arith.mulf %86, %96 : vector<2x32xf32>
    %98 = arith.addf %95, %97 : vector<2x32xf32>
    %99 = math.tanh %98 : vector<2x32xf32>
    %cst_23 = arith.constant 1.000000e+00 : f32
    %100 = vector.broadcast %cst_23 : f32 to vector<2x32xf32>
    %101 = arith.subf %100, %94 : vector<2x32xf32>
    %102 = arith.mulf %101, %99 : vector<2x32xf32>
    %103 = arith.mulf %94, %73 : vector<2x32xf32>
    %104 = arith.addf %102, %103 : vector<2x32xf32>
    %105 = vector.extract_strided_slice %7 {offsets = [0, 3, 0], sizes = [2, 1, 96], strides = [1, 1, 1]} : vector<2x8x96xf32> to vector<2x1x96xf32>
    %106 = vector.shape_cast %105 : vector<2x1x96xf32> to vector<2x96xf32>
    %cst_24 = arith.constant dense<0.000000e+00> : vector<2x96xf32>
    %107 = tpu.matmul %104, %9, %cst_24 {dimension_numbers = #tpu.dot_dimension_numbers<[1], [0], [0], [1], [0, 0, 1, 1], [], []>} : vector<2x32xf32>, vector<32x96xf32>, vector<2x96xf32> -> vector<2x96xf32>
    %108 = vector.broadcast %10 : vector<1x96xf32> to vector<2x96xf32>
    %109 = arith.addf %107, %108 : vector<2x96xf32>
    %110 = vector.extract_strided_slice %106 {offsets = [0, 0], sizes = [2, 32], strides = [1, 1]} : vector<2x96xf32> to vector<2x32xf32>
    %111 = vector.extract_strided_slice %109 {offsets = [0, 0], sizes = [2, 32], strides = [1, 1]} : vector<2x96xf32> to vector<2x32xf32>
    %112 = arith.addf %110, %111 : vector<2x32xf32>
    %113 = arith.negf %112 : vector<2x32xf32>
    %114 = math.exp %113 : vector<2x32xf32>
    %cst_25 = arith.constant 1.000000e+00 : f32
    %115 = vector.broadcast %cst_25 : f32 to vector<2x32xf32>
    %116 = arith.addf %115, %114 : vector<2x32xf32>
    %117 = arith.divf %115, %116 : vector<2x32xf32>
    %118 = vector.extract_strided_slice %106 {offsets = [0, 32], sizes = [2, 32], strides = [1, 1]} : vector<2x96xf32> to vector<2x32xf32>
    %119 = vector.extract_strided_slice %109 {offsets = [0, 32], sizes = [2, 32], strides = [1, 1]} : vector<2x96xf32> to vector<2x32xf32>
    %120 = arith.addf %118, %119 : vector<2x32xf32>
    %121 = arith.negf %120 : vector<2x32xf32>
    %122 = math.exp %121 : vector<2x32xf32>
    %cst_26 = arith.constant 1.000000e+00 : f32
    %123 = vector.broadcast %cst_26 : f32 to vector<2x32xf32>
    %124 = arith.addf %123, %122 : vector<2x32xf32>
    %125 = arith.divf %123, %124 : vector<2x32xf32>
    %126 = vector.extract_strided_slice %106 {offsets = [0, 64], sizes = [2, 32], strides = [1, 1]} : vector<2x96xf32> to vector<2x32xf32>
    %127 = vector.extract_strided_slice %109 {offsets = [0, 64], sizes = [2, 32], strides = [1, 1]} : vector<2x96xf32> to vector<2x32xf32>
    %128 = arith.mulf %117, %127 : vector<2x32xf32>
    %129 = arith.addf %126, %128 : vector<2x32xf32>
    %130 = math.tanh %129 : vector<2x32xf32>
    %cst_27 = arith.constant 1.000000e+00 : f32
    %131 = vector.broadcast %cst_27 : f32 to vector<2x32xf32>
    %132 = arith.subf %131, %125 : vector<2x32xf32>
    %133 = arith.mulf %132, %130 : vector<2x32xf32>
    %134 = arith.mulf %125, %104 : vector<2x32xf32>
    %135 = arith.addf %133, %134 : vector<2x32xf32>
    %136 = vector.extract_strided_slice %7 {offsets = [0, 4, 0], sizes = [2, 1, 96], strides = [1, 1, 1]} : vector<2x8x96xf32> to vector<2x1x96xf32>
    %137 = vector.shape_cast %136 : vector<2x1x96xf32> to vector<2x96xf32>
    %cst_28 = arith.constant dense<0.000000e+00> : vector<2x96xf32>
    %138 = tpu.matmul %135, %9, %cst_28 {dimension_numbers = #tpu.dot_dimension_numbers<[1], [0], [0], [1], [0, 0, 1, 1], [], []>} : vector<2x32xf32>, vector<32x96xf32>, vector<2x96xf32> -> vector<2x96xf32>
    %139 = vector.broadcast %10 : vector<1x96xf32> to vector<2x96xf32>
    %140 = arith.addf %138, %139 : vector<2x96xf32>
    %141 = vector.extract_strided_slice %137 {offsets = [0, 0], sizes = [2, 32], strides = [1, 1]} : vector<2x96xf32> to vector<2x32xf32>
    %142 = vector.extract_strided_slice %140 {offsets = [0, 0], sizes = [2, 32], strides = [1, 1]} : vector<2x96xf32> to vector<2x32xf32>
    %143 = arith.addf %141, %142 : vector<2x32xf32>
    %144 = arith.negf %143 : vector<2x32xf32>
    %145 = math.exp %144 : vector<2x32xf32>
    %cst_29 = arith.constant 1.000000e+00 : f32
    %146 = vector.broadcast %cst_29 : f32 to vector<2x32xf32>
    %147 = arith.addf %146, %145 : vector<2x32xf32>
    %148 = arith.divf %146, %147 : vector<2x32xf32>
    %149 = vector.extract_strided_slice %137 {offsets = [0, 32], sizes = [2, 32], strides = [1, 1]} : vector<2x96xf32> to vector<2x32xf32>
    %150 = vector.extract_strided_slice %140 {offsets = [0, 32], sizes = [2, 32], strides = [1, 1]} : vector<2x96xf32> to vector<2x32xf32>
    %151 = arith.addf %149, %150 : vector<2x32xf32>
    %152 = arith.negf %151 : vector<2x32xf32>
    %153 = math.exp %152 : vector<2x32xf32>
    %cst_30 = arith.constant 1.000000e+00 : f32
    %154 = vector.broadcast %cst_30 : f32 to vector<2x32xf32>
    %155 = arith.addf %154, %153 : vector<2x32xf32>
    %156 = arith.divf %154, %155 : vector<2x32xf32>
    %157 = vector.extract_strided_slice %137 {offsets = [0, 64], sizes = [2, 32], strides = [1, 1]} : vector<2x96xf32> to vector<2x32xf32>
    %158 = vector.extract_strided_slice %140 {offsets = [0, 64], sizes = [2, 32], strides = [1, 1]} : vector<2x96xf32> to vector<2x32xf32>
    %159 = arith.mulf %148, %158 : vector<2x32xf32>
    %160 = arith.addf %157, %159 : vector<2x32xf32>
    %161 = math.tanh %160 : vector<2x32xf32>
    %cst_31 = arith.constant 1.000000e+00 : f32
    %162 = vector.broadcast %cst_31 : f32 to vector<2x32xf32>
    %163 = arith.subf %162, %156 : vector<2x32xf32>
    %164 = arith.mulf %163, %161 : vector<2x32xf32>
    %165 = arith.mulf %156, %135 : vector<2x32xf32>
    %166 = arith.addf %164, %165 : vector<2x32xf32>
    %167 = vector.extract_strided_slice %7 {offsets = [0, 5, 0], sizes = [2, 1, 96], strides = [1, 1, 1]} : vector<2x8x96xf32> to vector<2x1x96xf32>
    %168 = vector.shape_cast %167 : vector<2x1x96xf32> to vector<2x96xf32>
    %cst_32 = arith.constant dense<0.000000e+00> : vector<2x96xf32>
    %169 = tpu.matmul %166, %9, %cst_32 {dimension_numbers = #tpu.dot_dimension_numbers<[1], [0], [0], [1], [0, 0, 1, 1], [], []>} : vector<2x32xf32>, vector<32x96xf32>, vector<2x96xf32> -> vector<2x96xf32>
    %170 = vector.broadcast %10 : vector<1x96xf32> to vector<2x96xf32>
    %171 = arith.addf %169, %170 : vector<2x96xf32>
    %172 = vector.extract_strided_slice %168 {offsets = [0, 0], sizes = [2, 32], strides = [1, 1]} : vector<2x96xf32> to vector<2x32xf32>
    %173 = vector.extract_strided_slice %171 {offsets = [0, 0], sizes = [2, 32], strides = [1, 1]} : vector<2x96xf32> to vector<2x32xf32>
    %174 = arith.addf %172, %173 : vector<2x32xf32>
    %175 = arith.negf %174 : vector<2x32xf32>
    %176 = math.exp %175 : vector<2x32xf32>
    %cst_33 = arith.constant 1.000000e+00 : f32
    %177 = vector.broadcast %cst_33 : f32 to vector<2x32xf32>
    %178 = arith.addf %177, %176 : vector<2x32xf32>
    %179 = arith.divf %177, %178 : vector<2x32xf32>
    %180 = vector.extract_strided_slice %168 {offsets = [0, 32], sizes = [2, 32], strides = [1, 1]} : vector<2x96xf32> to vector<2x32xf32>
    %181 = vector.extract_strided_slice %171 {offsets = [0, 32], sizes = [2, 32], strides = [1, 1]} : vector<2x96xf32> to vector<2x32xf32>
    %182 = arith.addf %180, %181 : vector<2x32xf32>
    %183 = arith.negf %182 : vector<2x32xf32>
    %184 = math.exp %183 : vector<2x32xf32>
    %cst_34 = arith.constant 1.000000e+00 : f32
    %185 = vector.broadcast %cst_34 : f32 to vector<2x32xf32>
    %186 = arith.addf %185, %184 : vector<2x32xf32>
    %187 = arith.divf %185, %186 : vector<2x32xf32>
    %188 = vector.extract_strided_slice %168 {offsets = [0, 64], sizes = [2, 32], strides = [1, 1]} : vector<2x96xf32> to vector<2x32xf32>
    %189 = vector.extract_strided_slice %171 {offsets = [0, 64], sizes = [2, 32], strides = [1, 1]} : vector<2x96xf32> to vector<2x32xf32>
    %190 = arith.mulf %179, %189 : vector<2x32xf32>
    %191 = arith.addf %188, %190 : vector<2x32xf32>
    %192 = math.tanh %191 : vector<2x32xf32>
    %cst_35 = arith.constant 1.000000e+00 : f32
    %193 = vector.broadcast %cst_35 : f32 to vector<2x32xf32>
    %194 = arith.subf %193, %187 : vector<2x32xf32>
    %195 = arith.mulf %194, %192 : vector<2x32xf32>
    %196 = arith.mulf %187, %166 : vector<2x32xf32>
    %197 = arith.addf %195, %196 : vector<2x32xf32>
    %198 = vector.extract_strided_slice %7 {offsets = [0, 6, 0], sizes = [2, 1, 96], strides = [1, 1, 1]} : vector<2x8x96xf32> to vector<2x1x96xf32>
    %199 = vector.shape_cast %198 : vector<2x1x96xf32> to vector<2x96xf32>
    %cst_36 = arith.constant dense<0.000000e+00> : vector<2x96xf32>
    %200 = tpu.matmul %197, %9, %cst_36 {dimension_numbers = #tpu.dot_dimension_numbers<[1], [0], [0], [1], [0, 0, 1, 1], [], []>} : vector<2x32xf32>, vector<32x96xf32>, vector<2x96xf32> -> vector<2x96xf32>
    %201 = vector.broadcast %10 : vector<1x96xf32> to vector<2x96xf32>
    %202 = arith.addf %200, %201 : vector<2x96xf32>
    %203 = vector.extract_strided_slice %199 {offsets = [0, 0], sizes = [2, 32], strides = [1, 1]} : vector<2x96xf32> to vector<2x32xf32>
    %204 = vector.extract_strided_slice %202 {offsets = [0, 0], sizes = [2, 32], strides = [1, 1]} : vector<2x96xf32> to vector<2x32xf32>
    %205 = arith.addf %203, %204 : vector<2x32xf32>
    %206 = arith.negf %205 : vector<2x32xf32>
    %207 = math.exp %206 : vector<2x32xf32>
    %cst_37 = arith.constant 1.000000e+00 : f32
    %208 = vector.broadcast %cst_37 : f32 to vector<2x32xf32>
    %209 = arith.addf %208, %207 : vector<2x32xf32>
    %210 = arith.divf %208, %209 : vector<2x32xf32>
    %211 = vector.extract_strided_slice %199 {offsets = [0, 32], sizes = [2, 32], strides = [1, 1]} : vector<2x96xf32> to vector<2x32xf32>
    %212 = vector.extract_strided_slice %202 {offsets = [0, 32], sizes = [2, 32], strides = [1, 1]} : vector<2x96xf32> to vector<2x32xf32>
    %213 = arith.addf %211, %212 : vector<2x32xf32>
    %214 = arith.negf %213 : vector<2x32xf32>
    %215 = math.exp %214 : vector<2x32xf32>
    %cst_38 = arith.constant 1.000000e+00 : f32
    %216 = vector.broadcast %cst_38 : f32 to vector<2x32xf32>
    %217 = arith.addf %216, %215 : vector<2x32xf32>
    %218 = arith.divf %216, %217 : vector<2x32xf32>
    %219 = vector.extract_strided_slice %199 {offsets = [0, 64], sizes = [2, 32], strides = [1, 1]} : vector<2x96xf32> to vector<2x32xf32>
    %220 = vector.extract_strided_slice %202 {offsets = [0, 64], sizes = [2, 32], strides = [1, 1]} : vector<2x96xf32> to vector<2x32xf32>
    %221 = arith.mulf %210, %220 : vector<2x32xf32>
    %222 = arith.addf %219, %221 : vector<2x32xf32>
    %223 = math.tanh %222 : vector<2x32xf32>
    %cst_39 = arith.constant 1.000000e+00 : f32
    %224 = vector.broadcast %cst_39 : f32 to vector<2x32xf32>
    %225 = arith.subf %224, %218 : vector<2x32xf32>
    %226 = arith.mulf %225, %223 : vector<2x32xf32>
    %227 = arith.mulf %218, %197 : vector<2x32xf32>
    %228 = arith.addf %226, %227 : vector<2x32xf32>
    %229 = vector.extract_strided_slice %7 {offsets = [0, 7, 0], sizes = [2, 1, 96], strides = [1, 1, 1]} : vector<2x8x96xf32> to vector<2x1x96xf32>
    %230 = vector.shape_cast %229 : vector<2x1x96xf32> to vector<2x96xf32>
    %cst_40 = arith.constant dense<0.000000e+00> : vector<2x96xf32>
    %231 = tpu.matmul %228, %9, %cst_40 {dimension_numbers = #tpu.dot_dimension_numbers<[1], [0], [0], [1], [0, 0, 1, 1], [], []>} : vector<2x32xf32>, vector<32x96xf32>, vector<2x96xf32> -> vector<2x96xf32>
    %232 = vector.broadcast %10 : vector<1x96xf32> to vector<2x96xf32>
    %233 = arith.addf %231, %232 : vector<2x96xf32>
    %234 = vector.extract_strided_slice %230 {offsets = [0, 0], sizes = [2, 32], strides = [1, 1]} : vector<2x96xf32> to vector<2x32xf32>
    %235 = vector.extract_strided_slice %233 {offsets = [0, 0], sizes = [2, 32], strides = [1, 1]} : vector<2x96xf32> to vector<2x32xf32>
    %236 = arith.addf %234, %235 : vector<2x32xf32>
    %237 = arith.negf %236 : vector<2x32xf32>
    %238 = math.exp %237 : vector<2x32xf32>
    %cst_41 = arith.constant 1.000000e+00 : f32
    %239 = vector.broadcast %cst_41 : f32 to vector<2x32xf32>
    %240 = arith.addf %239, %238 : vector<2x32xf32>
    %241 = arith.divf %239, %240 : vector<2x32xf32>
    %242 = vector.extract_strided_slice %230 {offsets = [0, 32], sizes = [2, 32], strides = [1, 1]} : vector<2x96xf32> to vector<2x32xf32>
    %243 = vector.extract_strided_slice %233 {offsets = [0, 32], sizes = [2, 32], strides = [1, 1]} : vector<2x96xf32> to vector<2x32xf32>
    %244 = arith.addf %242, %243 : vector<2x32xf32>
    %245 = arith.negf %244 : vector<2x32xf32>
    %246 = math.exp %245 : vector<2x32xf32>
    %cst_42 = arith.constant 1.000000e+00 : f32
    %247 = vector.broadcast %cst_42 : f32 to vector<2x32xf32>
    %248 = arith.addf %247, %246 : vector<2x32xf32>
    %249 = arith.divf %247, %248 : vector<2x32xf32>
    %250 = vector.extract_strided_slice %230 {offsets = [0, 64], sizes = [2, 32], strides = [1, 1]} : vector<2x96xf32> to vector<2x32xf32>
    %251 = vector.extract_strided_slice %233 {offsets = [0, 64], sizes = [2, 32], strides = [1, 1]} : vector<2x96xf32> to vector<2x32xf32>
    %252 = arith.mulf %241, %251 : vector<2x32xf32>
    %253 = arith.addf %250, %252 : vector<2x32xf32>
    %254 = math.tanh %253 : vector<2x32xf32>
    %cst_43 = arith.constant 1.000000e+00 : f32
    %255 = vector.broadcast %cst_43 : f32 to vector<2x32xf32>
    %256 = arith.subf %255, %249 : vector<2x32xf32>
    %257 = arith.mulf %256, %254 : vector<2x32xf32>
    %258 = arith.mulf %249, %228 : vector<2x32xf32>
    %259 = arith.addf %257, %258 : vector<2x32xf32>
    %260 = vector.shape_cast %42 : vector<2x32xf32> to vector<2x1x32xf32>
    %261 = vector.shape_cast %73 : vector<2x32xf32> to vector<2x1x32xf32>
    %262 = vector.shape_cast %104 : vector<2x32xf32> to vector<2x1x32xf32>
    %263 = vector.shape_cast %135 : vector<2x32xf32> to vector<2x1x32xf32>
    %264 = vector.shape_cast %166 : vector<2x32xf32> to vector<2x1x32xf32>
    %265 = vector.shape_cast %197 : vector<2x32xf32> to vector<2x1x32xf32>
    %266 = vector.shape_cast %228 : vector<2x32xf32> to vector<2x1x32xf32>
    %267 = vector.shape_cast %259 : vector<2x32xf32> to vector<2x1x32xf32>
    %268 = tpu.concatenate %260, %261, %262, %263, %264, %265, %266, %267 in 1 : vector<2x1x32xf32>, vector<2x1x32xf32>, vector<2x1x32xf32>, vector<2x1x32xf32>, vector<2x1x32xf32>, vector<2x1x32xf32>, vector<2x1x32xf32>, vector<2x1x32xf32> -> vector<2x8x32xf32>
    %269 = vector.shape_cast %268 : vector<2x8x32xf32> to vector<16x32xf32>
    %c0_44 = arith.constant 0 : index
    %c0_45 = arith.constant 0 : index
    %c0_46 = arith.constant 0 : index
    %270 = vector.load %arg3[%c0_44, %c0_45, %c0_46] : memref<3x32x96xf32, #tpu.memory_space<vmem>>, vector<1x32x96xf32>
    %271 = vector.shape_cast %270 : vector<1x32x96xf32> to vector<32x96xf32>
    %cst_47 = arith.constant dense<0.000000e+00> : vector<16x96xf32>
    %272 = tpu.matmul %269, %271, %cst_47 {dimension_numbers = #tpu.dot_dimension_numbers<[1], [0], [0], [1], [0, 0, 1, 1], [], []>} : vector<16x32xf32>, vector<32x96xf32>, vector<16x96xf32> -> vector<16x96xf32>
    %c1 = arith.constant 1 : index
    %c0_48 = arith.constant 0 : index
    %273 = vector.load %arg5[%c1, %c0_48] : memref<4x96xf32, #tpu.memory_space<vmem>>, vector<1x96xf32>
    %274 = vector.broadcast %273 : vector<1x96xf32> to vector<16x96xf32>
    %275 = arith.addf %272, %274 : vector<16x96xf32>
    %276 = vector.shape_cast %275 : vector<16x96xf32> to vector<2x8x96xf32>
    %c1_49 = arith.constant 1 : index
    %c0_50 = arith.constant 0 : index
    %c0_51 = arith.constant 0 : index
    %277 = vector.load %arg4[%c1_49, %c0_50, %c0_51] : memref<4x32x96xf32, #tpu.memory_space<vmem>>, vector<1x32x96xf32>
    %278 = vector.shape_cast %277 : vector<1x32x96xf32> to vector<32x96xf32>
    %c1_52 = arith.constant 1 : index
    %c0_53 = arith.constant 0 : index
    %279 = vector.load %arg6[%c1_52, %c0_53] : memref<4x96xf32, #tpu.memory_space<vmem>>, vector<1x96xf32>
    %cst_54 = arith.constant 0.000000e+00 : f32
    %280 = vector.broadcast %cst_54 : f32 to vector<2x32xf32>
    %281 = vector.extract_strided_slice %276 {offsets = [0, 0, 0], sizes = [2, 1, 96], strides = [1, 1, 1]} : vector<2x8x96xf32> to vector<2x1x96xf32>
    %282 = vector.shape_cast %281 : vector<2x1x96xf32> to vector<2x96xf32>
    %cst_55 = arith.constant dense<0.000000e+00> : vector<2x96xf32>
    %283 = tpu.matmul %280, %278, %cst_55 {dimension_numbers = #tpu.dot_dimension_numbers<[1], [0], [0], [1], [0, 0, 1, 1], [], []>} : vector<2x32xf32>, vector<32x96xf32>, vector<2x96xf32> -> vector<2x96xf32>
    %284 = vector.broadcast %279 : vector<1x96xf32> to vector<2x96xf32>
    %285 = arith.addf %283, %284 : vector<2x96xf32>
    %286 = vector.extract_strided_slice %282 {offsets = [0, 0], sizes = [2, 32], strides = [1, 1]} : vector<2x96xf32> to vector<2x32xf32>
    %287 = vector.extract_strided_slice %285 {offsets = [0, 0], sizes = [2, 32], strides = [1, 1]} : vector<2x96xf32> to vector<2x32xf32>
    %288 = arith.addf %286, %287 : vector<2x32xf32>
    %289 = arith.negf %288 : vector<2x32xf32>
    %290 = math.exp %289 : vector<2x32xf32>
    %cst_56 = arith.constant 1.000000e+00 : f32
    %291 = vector.broadcast %cst_56 : f32 to vector<2x32xf32>
    %292 = arith.addf %291, %290 : vector<2x32xf32>
    %293 = arith.divf %291, %292 : vector<2x32xf32>
    %294 = vector.extract_strided_slice %282 {offsets = [0, 32], sizes = [2, 32], strides = [1, 1]} : vector<2x96xf32> to vector<2x32xf32>
    %295 = vector.extract_strided_slice %285 {offsets = [0, 32], sizes = [2, 32], strides = [1, 1]} : vector<2x96xf32> to vector<2x32xf32>
    %296 = arith.addf %294, %295 : vector<2x32xf32>
    %297 = arith.negf %296 : vector<2x32xf32>
    %298 = math.exp %297 : vector<2x32xf32>
    %cst_57 = arith.constant 1.000000e+00 : f32
    %299 = vector.broadcast %cst_57 : f32 to vector<2x32xf32>
    %300 = arith.addf %299, %298 : vector<2x32xf32>
    %301 = arith.divf %299, %300 : vector<2x32xf32>
    %302 = vector.extract_strided_slice %282 {offsets = [0, 64], sizes = [2, 32], strides = [1, 1]} : vector<2x96xf32> to vector<2x32xf32>
    %303 = vector.extract_strided_slice %285 {offsets = [0, 64], sizes = [2, 32], strides = [1, 1]} : vector<2x96xf32> to vector<2x32xf32>
    %304 = arith.mulf %293, %303 : vector<2x32xf32>
    %305 = arith.addf %302, %304 : vector<2x32xf32>
    %306 = math.tanh %305 : vector<2x32xf32>
    %cst_58 = arith.constant 1.000000e+00 : f32
    %307 = vector.broadcast %cst_58 : f32 to vector<2x32xf32>
    %308 = arith.subf %307, %301 : vector<2x32xf32>
    %309 = arith.mulf %308, %306 : vector<2x32xf32>
    %310 = arith.mulf %301, %280 : vector<2x32xf32>
    %311 = arith.addf %309, %310 : vector<2x32xf32>
    %312 = vector.extract_strided_slice %276 {offsets = [0, 1, 0], sizes = [2, 1, 96], strides = [1, 1, 1]} : vector<2x8x96xf32> to vector<2x1x96xf32>
    %313 = vector.shape_cast %312 : vector<2x1x96xf32> to vector<2x96xf32>
    %cst_59 = arith.constant dense<0.000000e+00> : vector<2x96xf32>
    %314 = tpu.matmul %311, %278, %cst_59 {dimension_numbers = #tpu.dot_dimension_numbers<[1], [0], [0], [1], [0, 0, 1, 1], [], []>} : vector<2x32xf32>, vector<32x96xf32>, vector<2x96xf32> -> vector<2x96xf32>
    %315 = vector.broadcast %279 : vector<1x96xf32> to vector<2x96xf32>
    %316 = arith.addf %314, %315 : vector<2x96xf32>
    %317 = vector.extract_strided_slice %313 {offsets = [0, 0], sizes = [2, 32], strides = [1, 1]} : vector<2x96xf32> to vector<2x32xf32>
    %318 = vector.extract_strided_slice %316 {offsets = [0, 0], sizes = [2, 32], strides = [1, 1]} : vector<2x96xf32> to vector<2x32xf32>
    %319 = arith.addf %317, %318 : vector<2x32xf32>
    %320 = arith.negf %319 : vector<2x32xf32>
    %321 = math.exp %320 : vector<2x32xf32>
    %cst_60 = arith.constant 1.000000e+00 : f32
    %322 = vector.broadcast %cst_60 : f32 to vector<2x32xf32>
    %323 = arith.addf %322, %321 : vector<2x32xf32>
    %324 = arith.divf %322, %323 : vector<2x32xf32>
    %325 = vector.extract_strided_slice %313 {offsets = [0, 32], sizes = [2, 32], strides = [1, 1]} : vector<2x96xf32> to vector<2x32xf32>
    %326 = vector.extract_strided_slice %316 {offsets = [0, 32], sizes = [2, 32], strides = [1, 1]} : vector<2x96xf32> to vector<2x32xf32>
    %327 = arith.addf %325, %326 : vector<2x32xf32>
    %328 = arith.negf %327 : vector<2x32xf32>
    %329 = math.exp %328 : vector<2x32xf32>
    %cst_61 = arith.constant 1.000000e+00 : f32
    %330 = vector.broadcast %cst_61 : f32 to vector<2x32xf32>
    %331 = arith.addf %330, %329 : vector<2x32xf32>
    %332 = arith.divf %330, %331 : vector<2x32xf32>
    %333 = vector.extract_strided_slice %313 {offsets = [0, 64], sizes = [2, 32], strides = [1, 1]} : vector<2x96xf32> to vector<2x32xf32>
    %334 = vector.extract_strided_slice %316 {offsets = [0, 64], sizes = [2, 32], strides = [1, 1]} : vector<2x96xf32> to vector<2x32xf32>
    %335 = arith.mulf %324, %334 : vector<2x32xf32>
    %336 = arith.addf %333, %335 : vector<2x32xf32>
    %337 = math.tanh %336 : vector<2x32xf32>
    %cst_62 = arith.constant 1.000000e+00 : f32
    %338 = vector.broadcast %cst_62 : f32 to vector<2x32xf32>
    %339 = arith.subf %338, %332 : vector<2x32xf32>
    %340 = arith.mulf %339, %337 : vector<2x32xf32>
    %341 = arith.mulf %332, %311 : vector<2x32xf32>
    %342 = arith.addf %340, %341 : vector<2x32xf32>
    %343 = vector.extract_strided_slice %276 {offsets = [0, 2, 0], sizes = [2, 1, 96], strides = [1, 1, 1]} : vector<2x8x96xf32> to vector<2x1x96xf32>
    %344 = vector.shape_cast %343 : vector<2x1x96xf32> to vector<2x96xf32>
    %cst_63 = arith.constant dense<0.000000e+00> : vector<2x96xf32>
    %345 = tpu.matmul %342, %278, %cst_63 {dimension_numbers = #tpu.dot_dimension_numbers<[1], [0], [0], [1], [0, 0, 1, 1], [], []>} : vector<2x32xf32>, vector<32x96xf32>, vector<2x96xf32> -> vector<2x96xf32>
    %346 = vector.broadcast %279 : vector<1x96xf32> to vector<2x96xf32>
    %347 = arith.addf %345, %346 : vector<2x96xf32>
    %348 = vector.extract_strided_slice %344 {offsets = [0, 0], sizes = [2, 32], strides = [1, 1]} : vector<2x96xf32> to vector<2x32xf32>
    %349 = vector.extract_strided_slice %347 {offsets = [0, 0], sizes = [2, 32], strides = [1, 1]} : vector<2x96xf32> to vector<2x32xf32>
    %350 = arith.addf %348, %349 : vector<2x32xf32>
    %351 = arith.negf %350 : vector<2x32xf32>
    %352 = math.exp %351 : vector<2x32xf32>
    %cst_64 = arith.constant 1.000000e+00 : f32
    %353 = vector.broadcast %cst_64 : f32 to vector<2x32xf32>
    %354 = arith.addf %353, %352 : vector<2x32xf32>
    %355 = arith.divf %353, %354 : vector<2x32xf32>
    %356 = vector.extract_strided_slice %344 {offsets = [0, 32], sizes = [2, 32], strides = [1, 1]} : vector<2x96xf32> to vector<2x32xf32>
    %357 = vector.extract_strided_slice %347 {offsets = [0, 32], sizes = [2, 32], strides = [1, 1]} : vector<2x96xf32> to vector<2x32xf32>
    %358 = arith.addf %356, %357 : vector<2x32xf32>
    %359 = arith.negf %358 : vector<2x32xf32>
    %360 = math.exp %359 : vector<2x32xf32>
    %cst_65 = arith.constant 1.000000e+00 : f32
    %361 = vector.broadcast %cst_65 : f32 to vector<2x32xf32>
    %362 = arith.addf %361, %360 : vector<2x32xf32>
    %363 = arith.divf %361, %362 : vector<2x32xf32>
    %364 = vector.extract_strided_slice %344 {offsets = [0, 64], sizes = [2, 32], strides = [1, 1]} : vector<2x96xf32> to vector<2x32xf32>
    %365 = vector.extract_strided_slice %347 {offsets = [0, 64], sizes = [2, 32], strides = [1, 1]} : vector<2x96xf32> to vector<2x32xf32>
    %366 = arith.mulf %355, %365 : vector<2x32xf32>
    %367 = arith.addf %364, %366 : vector<2x32xf32>
    %368 = math.tanh %367 : vector<2x32xf32>
    %cst_66 = arith.constant 1.000000e+00 : f32
    %369 = vector.broadcast %cst_66 : f32 to vector<2x32xf32>
    %370 = arith.subf %369, %363 : vector<2x32xf32>
    %371 = arith.mulf %370, %368 : vector<2x32xf32>
    %372 = arith.mulf %363, %342 : vector<2x32xf32>
    %373 = arith.addf %371, %372 : vector<2x32xf32>
    %374 = vector.extract_strided_slice %276 {offsets = [0, 3, 0], sizes = [2, 1, 96], strides = [1, 1, 1]} : vector<2x8x96xf32> to vector<2x1x96xf32>
    %375 = vector.shape_cast %374 : vector<2x1x96xf32> to vector<2x96xf32>
    %cst_67 = arith.constant dense<0.000000e+00> : vector<2x96xf32>
    %376 = tpu.matmul %373, %278, %cst_67 {dimension_numbers = #tpu.dot_dimension_numbers<[1], [0], [0], [1], [0, 0, 1, 1], [], []>} : vector<2x32xf32>, vector<32x96xf32>, vector<2x96xf32> -> vector<2x96xf32>
    %377 = vector.broadcast %279 : vector<1x96xf32> to vector<2x96xf32>
    %378 = arith.addf %376, %377 : vector<2x96xf32>
    %379 = vector.extract_strided_slice %375 {offsets = [0, 0], sizes = [2, 32], strides = [1, 1]} : vector<2x96xf32> to vector<2x32xf32>
    %380 = vector.extract_strided_slice %378 {offsets = [0, 0], sizes = [2, 32], strides = [1, 1]} : vector<2x96xf32> to vector<2x32xf32>
    %381 = arith.addf %379, %380 : vector<2x32xf32>
    %382 = arith.negf %381 : vector<2x32xf32>
    %383 = math.exp %382 : vector<2x32xf32>
    %cst_68 = arith.constant 1.000000e+00 : f32
    %384 = vector.broadcast %cst_68 : f32 to vector<2x32xf32>
    %385 = arith.addf %384, %383 : vector<2x32xf32>
    %386 = arith.divf %384, %385 : vector<2x32xf32>
    %387 = vector.extract_strided_slice %375 {offsets = [0, 32], sizes = [2, 32], strides = [1, 1]} : vector<2x96xf32> to vector<2x32xf32>
    %388 = vector.extract_strided_slice %378 {offsets = [0, 32], sizes = [2, 32], strides = [1, 1]} : vector<2x96xf32> to vector<2x32xf32>
    %389 = arith.addf %387, %388 : vector<2x32xf32>
    %390 = arith.negf %389 : vector<2x32xf32>
    %391 = math.exp %390 : vector<2x32xf32>
    %cst_69 = arith.constant 1.000000e+00 : f32
    %392 = vector.broadcast %cst_69 : f32 to vector<2x32xf32>
    %393 = arith.addf %392, %391 : vector<2x32xf32>
    %394 = arith.divf %392, %393 : vector<2x32xf32>
    %395 = vector.extract_strided_slice %375 {offsets = [0, 64], sizes = [2, 32], strides = [1, 1]} : vector<2x96xf32> to vector<2x32xf32>
    %396 = vector.extract_strided_slice %378 {offsets = [0, 64], sizes = [2, 32], strides = [1, 1]} : vector<2x96xf32> to vector<2x32xf32>
    %397 = arith.mulf %386, %396 : vector<2x32xf32>
    %398 = arith.addf %395, %397 : vector<2x32xf32>
    %399 = math.tanh %398 : vector<2x32xf32>
    %cst_70 = arith.constant 1.000000e+00 : f32
    %400 = vector.broadcast %cst_70 : f32 to vector<2x32xf32>
    %401 = arith.subf %400, %394 : vector<2x32xf32>
    %402 = arith.mulf %401, %399 : vector<2x32xf32>
    %403 = arith.mulf %394, %373 : vector<2x32xf32>
    %404 = arith.addf %402, %403 : vector<2x32xf32>
    %405 = vector.extract_strided_slice %276 {offsets = [0, 4, 0], sizes = [2, 1, 96], strides = [1, 1, 1]} : vector<2x8x96xf32> to vector<2x1x96xf32>
    %406 = vector.shape_cast %405 : vector<2x1x96xf32> to vector<2x96xf32>
    %cst_71 = arith.constant dense<0.000000e+00> : vector<2x96xf32>
    %407 = tpu.matmul %404, %278, %cst_71 {dimension_numbers = #tpu.dot_dimension_numbers<[1], [0], [0], [1], [0, 0, 1, 1], [], []>} : vector<2x32xf32>, vector<32x96xf32>, vector<2x96xf32> -> vector<2x96xf32>
    %408 = vector.broadcast %279 : vector<1x96xf32> to vector<2x96xf32>
    %409 = arith.addf %407, %408 : vector<2x96xf32>
    %410 = vector.extract_strided_slice %406 {offsets = [0, 0], sizes = [2, 32], strides = [1, 1]} : vector<2x96xf32> to vector<2x32xf32>
    %411 = vector.extract_strided_slice %409 {offsets = [0, 0], sizes = [2, 32], strides = [1, 1]} : vector<2x96xf32> to vector<2x32xf32>
    %412 = arith.addf %410, %411 : vector<2x32xf32>
    %413 = arith.negf %412 : vector<2x32xf32>
    %414 = math.exp %413 : vector<2x32xf32>
    %cst_72 = arith.constant 1.000000e+00 : f32
    %415 = vector.broadcast %cst_72 : f32 to vector<2x32xf32>
    %416 = arith.addf %415, %414 : vector<2x32xf32>
    %417 = arith.divf %415, %416 : vector<2x32xf32>
    %418 = vector.extract_strided_slice %406 {offsets = [0, 32], sizes = [2, 32], strides = [1, 1]} : vector<2x96xf32> to vector<2x32xf32>
    %419 = vector.extract_strided_slice %409 {offsets = [0, 32], sizes = [2, 32], strides = [1, 1]} : vector<2x96xf32> to vector<2x32xf32>
    %420 = arith.addf %418, %419 : vector<2x32xf32>
    %421 = arith.negf %420 : vector<2x32xf32>
    %422 = math.exp %421 : vector<2x32xf32>
    %cst_73 = arith.constant 1.000000e+00 : f32
    %423 = vector.broadcast %cst_73 : f32 to vector<2x32xf32>
    %424 = arith.addf %423, %422 : vector<2x32xf32>
    %425 = arith.divf %423, %424 : vector<2x32xf32>
    %426 = vector.extract_strided_slice %406 {offsets = [0, 64], sizes = [2, 32], strides = [1, 1]} : vector<2x96xf32> to vector<2x32xf32>
    %427 = vector.extract_strided_slice %409 {offsets = [0, 64], sizes = [2, 32], strides = [1, 1]} : vector<2x96xf32> to vector<2x32xf32>
    %428 = arith.mulf %417, %427 : vector<2x32xf32>
    %429 = arith.addf %426, %428 : vector<2x32xf32>
    %430 = math.tanh %429 : vector<2x32xf32>
    %cst_74 = arith.constant 1.000000e+00 : f32
    %431 = vector.broadcast %cst_74 : f32 to vector<2x32xf32>
    %432 = arith.subf %431, %425 : vector<2x32xf32>
    %433 = arith.mulf %432, %430 : vector<2x32xf32>
    %434 = arith.mulf %425, %404 : vector<2x32xf32>
    %435 = arith.addf %433, %434 : vector<2x32xf32>
    %436 = vector.extract_strided_slice %276 {offsets = [0, 5, 0], sizes = [2, 1, 96], strides = [1, 1, 1]} : vector<2x8x96xf32> to vector<2x1x96xf32>
    %437 = vector.shape_cast %436 : vector<2x1x96xf32> to vector<2x96xf32>
    %cst_75 = arith.constant dense<0.000000e+00> : vector<2x96xf32>
    %438 = tpu.matmul %435, %278, %cst_75 {dimension_numbers = #tpu.dot_dimension_numbers<[1], [0], [0], [1], [0, 0, 1, 1], [], []>} : vector<2x32xf32>, vector<32x96xf32>, vector<2x96xf32> -> vector<2x96xf32>
    %439 = vector.broadcast %279 : vector<1x96xf32> to vector<2x96xf32>
    %440 = arith.addf %438, %439 : vector<2x96xf32>
    %441 = vector.extract_strided_slice %437 {offsets = [0, 0], sizes = [2, 32], strides = [1, 1]} : vector<2x96xf32> to vector<2x32xf32>
    %442 = vector.extract_strided_slice %440 {offsets = [0, 0], sizes = [2, 32], strides = [1, 1]} : vector<2x96xf32> to vector<2x32xf32>
    %443 = arith.addf %441, %442 : vector<2x32xf32>
    %444 = arith.negf %443 : vector<2x32xf32>
    %445 = math.exp %444 : vector<2x32xf32>
    %cst_76 = arith.constant 1.000000e+00 : f32
    %446 = vector.broadcast %cst_76 : f32 to vector<2x32xf32>
    %447 = arith.addf %446, %445 : vector<2x32xf32>
    %448 = arith.divf %446, %447 : vector<2x32xf32>
    %449 = vector.extract_strided_slice %437 {offsets = [0, 32], sizes = [2, 32], strides = [1, 1]} : vector<2x96xf32> to vector<2x32xf32>
    %450 = vector.extract_strided_slice %440 {offsets = [0, 32], sizes = [2, 32], strides = [1, 1]} : vector<2x96xf32> to vector<2x32xf32>
    %451 = arith.addf %449, %450 : vector<2x32xf32>
    %452 = arith.negf %451 : vector<2x32xf32>
    %453 = math.exp %452 : vector<2x32xf32>
    %cst_77 = arith.constant 1.000000e+00 : f32
    %454 = vector.broadcast %cst_77 : f32 to vector<2x32xf32>
    %455 = arith.addf %454, %453 : vector<2x32xf32>
    %456 = arith.divf %454, %455 : vector<2x32xf32>
    %457 = vector.extract_strided_slice %437 {offsets = [0, 64], sizes = [2, 32], strides = [1, 1]} : vector<2x96xf32> to vector<2x32xf32>
    %458 = vector.extract_strided_slice %440 {offsets = [0, 64], sizes = [2, 32], strides = [1, 1]} : vector<2x96xf32> to vector<2x32xf32>
    %459 = arith.mulf %448, %458 : vector<2x32xf32>
    %460 = arith.addf %457, %459 : vector<2x32xf32>
    %461 = math.tanh %460 : vector<2x32xf32>
    %cst_78 = arith.constant 1.000000e+00 : f32
    %462 = vector.broadcast %cst_78 : f32 to vector<2x32xf32>
    %463 = arith.subf %462, %456 : vector<2x32xf32>
    %464 = arith.mulf %463, %461 : vector<2x32xf32>
    %465 = arith.mulf %456, %435 : vector<2x32xf32>
    %466 = arith.addf %464, %465 : vector<2x32xf32>
    %467 = vector.extract_strided_slice %276 {offsets = [0, 6, 0], sizes = [2, 1, 96], strides = [1, 1, 1]} : vector<2x8x96xf32> to vector<2x1x96xf32>
    %468 = vector.shape_cast %467 : vector<2x1x96xf32> to vector<2x96xf32>
    %cst_79 = arith.constant dense<0.000000e+00> : vector<2x96xf32>
    %469 = tpu.matmul %466, %278, %cst_79 {dimension_numbers = #tpu.dot_dimension_numbers<[1], [0], [0], [1], [0, 0, 1, 1], [], []>} : vector<2x32xf32>, vector<32x96xf32>, vector<2x96xf32> -> vector<2x96xf32>
    %470 = vector.broadcast %279 : vector<1x96xf32> to vector<2x96xf32>
    %471 = arith.addf %469, %470 : vector<2x96xf32>
    %472 = vector.extract_strided_slice %468 {offsets = [0, 0], sizes = [2, 32], strides = [1, 1]} : vector<2x96xf32> to vector<2x32xf32>
    %473 = vector.extract_strided_slice %471 {offsets = [0, 0], sizes = [2, 32], strides = [1, 1]} : vector<2x96xf32> to vector<2x32xf32>
    %474 = arith.addf %472, %473 : vector<2x32xf32>
    %475 = arith.negf %474 : vector<2x32xf32>
    %476 = math.exp %475 : vector<2x32xf32>
    %cst_80 = arith.constant 1.000000e+00 : f32
    %477 = vector.broadcast %cst_80 : f32 to vector<2x32xf32>
    %478 = arith.addf %477, %476 : vector<2x32xf32>
    %479 = arith.divf %477, %478 : vector<2x32xf32>
    %480 = vector.extract_strided_slice %468 {offsets = [0, 32], sizes = [2, 32], strides = [1, 1]} : vector<2x96xf32> to vector<2x32xf32>
    %481 = vector.extract_strided_slice %471 {offsets = [0, 32], sizes = [2, 32], strides = [1, 1]} : vector<2x96xf32> to vector<2x32xf32>
    %482 = arith.addf %480, %481 : vector<2x32xf32>
    %483 = arith.negf %482 : vector<2x32xf32>
    %484 = math.exp %483 : vector<2x32xf32>
    %cst_81 = arith.constant 1.000000e+00 : f32
    %485 = vector.broadcast %cst_81 : f32 to vector<2x32xf32>
    %486 = arith.addf %485, %484 : vector<2x32xf32>
    %487 = arith.divf %485, %486 : vector<2x32xf32>
    %488 = vector.extract_strided_slice %468 {offsets = [0, 64], sizes = [2, 32], strides = [1, 1]} : vector<2x96xf32> to vector<2x32xf32>
    %489 = vector.extract_strided_slice %471 {offsets = [0, 64], sizes = [2, 32], strides = [1, 1]} : vector<2x96xf32> to vector<2x32xf32>
    %490 = arith.mulf %479, %489 : vector<2x32xf32>
    %491 = arith.addf %488, %490 : vector<2x32xf32>
    %492 = math.tanh %491 : vector<2x32xf32>
    %cst_82 = arith.constant 1.000000e+00 : f32
    %493 = vector.broadcast %cst_82 : f32 to vector<2x32xf32>
    %494 = arith.subf %493, %487 : vector<2x32xf32>
    %495 = arith.mulf %494, %492 : vector<2x32xf32>
    %496 = arith.mulf %487, %466 : vector<2x32xf32>
    %497 = arith.addf %495, %496 : vector<2x32xf32>
    %498 = vector.extract_strided_slice %276 {offsets = [0, 7, 0], sizes = [2, 1, 96], strides = [1, 1, 1]} : vector<2x8x96xf32> to vector<2x1x96xf32>
    %499 = vector.shape_cast %498 : vector<2x1x96xf32> to vector<2x96xf32>
    %cst_83 = arith.constant dense<0.000000e+00> : vector<2x96xf32>
    %500 = tpu.matmul %497, %278, %cst_83 {dimension_numbers = #tpu.dot_dimension_numbers<[1], [0], [0], [1], [0, 0, 1, 1], [], []>} : vector<2x32xf32>, vector<32x96xf32>, vector<2x96xf32> -> vector<2x96xf32>
    %501 = vector.broadcast %279 : vector<1x96xf32> to vector<2x96xf32>
    %502 = arith.addf %500, %501 : vector<2x96xf32>
    %503 = vector.extract_strided_slice %499 {offsets = [0, 0], sizes = [2, 32], strides = [1, 1]} : vector<2x96xf32> to vector<2x32xf32>
    %504 = vector.extract_strided_slice %502 {offsets = [0, 0], sizes = [2, 32], strides = [1, 1]} : vector<2x96xf32> to vector<2x32xf32>
    %505 = arith.addf %503, %504 : vector<2x32xf32>
    %506 = arith.negf %505 : vector<2x32xf32>
    %507 = math.exp %506 : vector<2x32xf32>
    %cst_84 = arith.constant 1.000000e+00 : f32
    %508 = vector.broadcast %cst_84 : f32 to vector<2x32xf32>
    %509 = arith.addf %508, %507 : vector<2x32xf32>
    %510 = arith.divf %508, %509 : vector<2x32xf32>
    %511 = vector.extract_strided_slice %499 {offsets = [0, 32], sizes = [2, 32], strides = [1, 1]} : vector<2x96xf32> to vector<2x32xf32>
    %512 = vector.extract_strided_slice %502 {offsets = [0, 32], sizes = [2, 32], strides = [1, 1]} : vector<2x96xf32> to vector<2x32xf32>
    %513 = arith.addf %511, %512 : vector<2x32xf32>
    %514 = arith.negf %513 : vector<2x32xf32>
    %515 = math.exp %514 : vector<2x32xf32>
    %cst_85 = arith.constant 1.000000e+00 : f32
    %516 = vector.broadcast %cst_85 : f32 to vector<2x32xf32>
    %517 = arith.addf %516, %515 : vector<2x32xf32>
    %518 = arith.divf %516, %517 : vector<2x32xf32>
    %519 = vector.extract_strided_slice %499 {offsets = [0, 64], sizes = [2, 32], strides = [1, 1]} : vector<2x96xf32> to vector<2x32xf32>
    %520 = vector.extract_strided_slice %502 {offsets = [0, 64], sizes = [2, 32], strides = [1, 1]} : vector<2x96xf32> to vector<2x32xf32>
    %521 = arith.mulf %510, %520 : vector<2x32xf32>
    %522 = arith.addf %519, %521 : vector<2x32xf32>
    %523 = math.tanh %522 : vector<2x32xf32>
    %cst_86 = arith.constant 1.000000e+00 : f32
    %524 = vector.broadcast %cst_86 : f32 to vector<2x32xf32>
    %525 = arith.subf %524, %518 : vector<2x32xf32>
    %526 = arith.mulf %525, %523 : vector<2x32xf32>
    %527 = arith.mulf %518, %497 : vector<2x32xf32>
    %528 = arith.addf %526, %527 : vector<2x32xf32>
    %529 = vector.shape_cast %311 : vector<2x32xf32> to vector<2x1x32xf32>
    %530 = vector.shape_cast %342 : vector<2x32xf32> to vector<2x1x32xf32>
    %531 = vector.shape_cast %373 : vector<2x32xf32> to vector<2x1x32xf32>
    %532 = vector.shape_cast %404 : vector<2x32xf32> to vector<2x1x32xf32>
    %533 = vector.shape_cast %435 : vector<2x32xf32> to vector<2x1x32xf32>
    %534 = vector.shape_cast %466 : vector<2x32xf32> to vector<2x1x32xf32>
    %535 = vector.shape_cast %497 : vector<2x32xf32> to vector<2x1x32xf32>
    %536 = vector.shape_cast %528 : vector<2x32xf32> to vector<2x1x32xf32>
    %537 = tpu.concatenate %529, %530, %531, %532, %533, %534, %535, %536 in 1 : vector<2x1x32xf32>, vector<2x1x32xf32>, vector<2x1x32xf32>, vector<2x1x32xf32>, vector<2x1x32xf32>, vector<2x1x32xf32>, vector<2x1x32xf32>, vector<2x1x32xf32> -> vector<2x8x32xf32>
    %538 = vector.shape_cast %537 : vector<2x8x32xf32> to vector<16x32xf32>
    %c1_87 = arith.constant 1 : index
    %c0_88 = arith.constant 0 : index
    %c0_89 = arith.constant 0 : index
    %539 = vector.load %arg3[%c1_87, %c0_88, %c0_89] : memref<3x32x96xf32, #tpu.memory_space<vmem>>, vector<1x32x96xf32>
    %540 = vector.shape_cast %539 : vector<1x32x96xf32> to vector<32x96xf32>
    %cst_90 = arith.constant dense<0.000000e+00> : vector<16x96xf32>
    %541 = tpu.matmul %538, %540, %cst_90 {dimension_numbers = #tpu.dot_dimension_numbers<[1], [0], [0], [1], [0, 0, 1, 1], [], []>} : vector<16x32xf32>, vector<32x96xf32>, vector<16x96xf32> -> vector<16x96xf32>
    %c2 = arith.constant 2 : index
    %c0_91 = arith.constant 0 : index
    %542 = vector.load %arg5[%c2, %c0_91] : memref<4x96xf32, #tpu.memory_space<vmem>>, vector<1x96xf32>
    %543 = vector.broadcast %542 : vector<1x96xf32> to vector<16x96xf32>
    %544 = arith.addf %541, %543 : vector<16x96xf32>
    %545 = vector.shape_cast %544 : vector<16x96xf32> to vector<2x8x96xf32>
    %c2_92 = arith.constant 2 : index
    %c0_93 = arith.constant 0 : index
    %c0_94 = arith.constant 0 : index
    %546 = vector.load %arg4[%c2_92, %c0_93, %c0_94] : memref<4x32x96xf32, #tpu.memory_space<vmem>>, vector<1x32x96xf32>
    %547 = vector.shape_cast %546 : vector<1x32x96xf32> to vector<32x96xf32>
    %c2_95 = arith.constant 2 : index
    %c0_96 = arith.constant 0 : index
    %548 = vector.load %arg6[%c2_95, %c0_96] : memref<4x96xf32, #tpu.memory_space<vmem>>, vector<1x96xf32>
    %cst_97 = arith.constant 0.000000e+00 : f32
    %549 = vector.broadcast %cst_97 : f32 to vector<2x32xf32>
    %550 = vector.extract_strided_slice %545 {offsets = [0, 0, 0], sizes = [2, 1, 96], strides = [1, 1, 1]} : vector<2x8x96xf32> to vector<2x1x96xf32>
    %551 = vector.shape_cast %550 : vector<2x1x96xf32> to vector<2x96xf32>
    %cst_98 = arith.constant dense<0.000000e+00> : vector<2x96xf32>
    %552 = tpu.matmul %549, %547, %cst_98 {dimension_numbers = #tpu.dot_dimension_numbers<[1], [0], [0], [1], [0, 0, 1, 1], [], []>} : vector<2x32xf32>, vector<32x96xf32>, vector<2x96xf32> -> vector<2x96xf32>
    %553 = vector.broadcast %548 : vector<1x96xf32> to vector<2x96xf32>
    %554 = arith.addf %552, %553 : vector<2x96xf32>
    %555 = vector.extract_strided_slice %551 {offsets = [0, 0], sizes = [2, 32], strides = [1, 1]} : vector<2x96xf32> to vector<2x32xf32>
    %556 = vector.extract_strided_slice %554 {offsets = [0, 0], sizes = [2, 32], strides = [1, 1]} : vector<2x96xf32> to vector<2x32xf32>
    %557 = arith.addf %555, %556 : vector<2x32xf32>
    %558 = arith.negf %557 : vector<2x32xf32>
    %559 = math.exp %558 : vector<2x32xf32>
    %cst_99 = arith.constant 1.000000e+00 : f32
    %560 = vector.broadcast %cst_99 : f32 to vector<2x32xf32>
    %561 = arith.addf %560, %559 : vector<2x32xf32>
    %562 = arith.divf %560, %561 : vector<2x32xf32>
    %563 = vector.extract_strided_slice %551 {offsets = [0, 32], sizes = [2, 32], strides = [1, 1]} : vector<2x96xf32> to vector<2x32xf32>
    %564 = vector.extract_strided_slice %554 {offsets = [0, 32], sizes = [2, 32], strides = [1, 1]} : vector<2x96xf32> to vector<2x32xf32>
    %565 = arith.addf %563, %564 : vector<2x32xf32>
    %566 = arith.negf %565 : vector<2x32xf32>
    %567 = math.exp %566 : vector<2x32xf32>
    %cst_100 = arith.constant 1.000000e+00 : f32
    %568 = vector.broadcast %cst_100 : f32 to vector<2x32xf32>
    %569 = arith.addf %568, %567 : vector<2x32xf32>
    %570 = arith.divf %568, %569 : vector<2x32xf32>
    %571 = vector.extract_strided_slice %551 {offsets = [0, 64], sizes = [2, 32], strides = [1, 1]} : vector<2x96xf32> to vector<2x32xf32>
    %572 = vector.extract_strided_slice %554 {offsets = [0, 64], sizes = [2, 32], strides = [1, 1]} : vector<2x96xf32> to vector<2x32xf32>
    %573 = arith.mulf %562, %572 : vector<2x32xf32>
    %574 = arith.addf %571, %573 : vector<2x32xf32>
    %575 = math.tanh %574 : vector<2x32xf32>
    %cst_101 = arith.constant 1.000000e+00 : f32
    %576 = vector.broadcast %cst_101 : f32 to vector<2x32xf32>
    %577 = arith.subf %576, %570 : vector<2x32xf32>
    %578 = arith.mulf %577, %575 : vector<2x32xf32>
    %579 = arith.mulf %570, %549 : vector<2x32xf32>
    %580 = arith.addf %578, %579 : vector<2x32xf32>
    %581 = vector.extract_strided_slice %545 {offsets = [0, 1, 0], sizes = [2, 1, 96], strides = [1, 1, 1]} : vector<2x8x96xf32> to vector<2x1x96xf32>
    %582 = vector.shape_cast %581 : vector<2x1x96xf32> to vector<2x96xf32>
    %cst_102 = arith.constant dense<0.000000e+00> : vector<2x96xf32>
    %583 = tpu.matmul %580, %547, %cst_102 {dimension_numbers = #tpu.dot_dimension_numbers<[1], [0], [0], [1], [0, 0, 1, 1], [], []>} : vector<2x32xf32>, vector<32x96xf32>, vector<2x96xf32> -> vector<2x96xf32>
    %584 = vector.broadcast %548 : vector<1x96xf32> to vector<2x96xf32>
    %585 = arith.addf %583, %584 : vector<2x96xf32>
    %586 = vector.extract_strided_slice %582 {offsets = [0, 0], sizes = [2, 32], strides = [1, 1]} : vector<2x96xf32> to vector<2x32xf32>
    %587 = vector.extract_strided_slice %585 {offsets = [0, 0], sizes = [2, 32], strides = [1, 1]} : vector<2x96xf32> to vector<2x32xf32>
    %588 = arith.addf %586, %587 : vector<2x32xf32>
    %589 = arith.negf %588 : vector<2x32xf32>
    %590 = math.exp %589 : vector<2x32xf32>
    %cst_103 = arith.constant 1.000000e+00 : f32
    %591 = vector.broadcast %cst_103 : f32 to vector<2x32xf32>
    %592 = arith.addf %591, %590 : vector<2x32xf32>
    %593 = arith.divf %591, %592 : vector<2x32xf32>
    %594 = vector.extract_strided_slice %582 {offsets = [0, 32], sizes = [2, 32], strides = [1, 1]} : vector<2x96xf32> to vector<2x32xf32>
    %595 = vector.extract_strided_slice %585 {offsets = [0, 32], sizes = [2, 32], strides = [1, 1]} : vector<2x96xf32> to vector<2x32xf32>
    %596 = arith.addf %594, %595 : vector<2x32xf32>
    %597 = arith.negf %596 : vector<2x32xf32>
    %598 = math.exp %597 : vector<2x32xf32>
    %cst_104 = arith.constant 1.000000e+00 : f32
    %599 = vector.broadcast %cst_104 : f32 to vector<2x32xf32>
    %600 = arith.addf %599, %598 : vector<2x32xf32>
    %601 = arith.divf %599, %600 : vector<2x32xf32>
    %602 = vector.extract_strided_slice %582 {offsets = [0, 64], sizes = [2, 32], strides = [1, 1]} : vector<2x96xf32> to vector<2x32xf32>
    %603 = vector.extract_strided_slice %585 {offsets = [0, 64], sizes = [2, 32], strides = [1, 1]} : vector<2x96xf32> to vector<2x32xf32>
    %604 = arith.mulf %593, %603 : vector<2x32xf32>
    %605 = arith.addf %602, %604 : vector<2x32xf32>
    %606 = math.tanh %605 : vector<2x32xf32>
    %cst_105 = arith.constant 1.000000e+00 : f32
    %607 = vector.broadcast %cst_105 : f32 to vector<2x32xf32>
    %608 = arith.subf %607, %601 : vector<2x32xf32>
    %609 = arith.mulf %608, %606 : vector<2x32xf32>
    %610 = arith.mulf %601, %580 : vector<2x32xf32>
    %611 = arith.addf %609, %610 : vector<2x32xf32>
    %612 = vector.extract_strided_slice %545 {offsets = [0, 2, 0], sizes = [2, 1, 96], strides = [1, 1, 1]} : vector<2x8x96xf32> to vector<2x1x96xf32>
    %613 = vector.shape_cast %612 : vector<2x1x96xf32> to vector<2x96xf32>
    %cst_106 = arith.constant dense<0.000000e+00> : vector<2x96xf32>
    %614 = tpu.matmul %611, %547, %cst_106 {dimension_numbers = #tpu.dot_dimension_numbers<[1], [0], [0], [1], [0, 0, 1, 1], [], []>} : vector<2x32xf32>, vector<32x96xf32>, vector<2x96xf32> -> vector<2x96xf32>
    %615 = vector.broadcast %548 : vector<1x96xf32> to vector<2x96xf32>
    %616 = arith.addf %614, %615 : vector<2x96xf32>
    %617 = vector.extract_strided_slice %613 {offsets = [0, 0], sizes = [2, 32], strides = [1, 1]} : vector<2x96xf32> to vector<2x32xf32>
    %618 = vector.extract_strided_slice %616 {offsets = [0, 0], sizes = [2, 32], strides = [1, 1]} : vector<2x96xf32> to vector<2x32xf32>
    %619 = arith.addf %617, %618 : vector<2x32xf32>
    %620 = arith.negf %619 : vector<2x32xf32>
    %621 = math.exp %620 : vector<2x32xf32>
    %cst_107 = arith.constant 1.000000e+00 : f32
    %622 = vector.broadcast %cst_107 : f32 to vector<2x32xf32>
    %623 = arith.addf %622, %621 : vector<2x32xf32>
    %624 = arith.divf %622, %623 : vector<2x32xf32>
    %625 = vector.extract_strided_slice %613 {offsets = [0, 32], sizes = [2, 32], strides = [1, 1]} : vector<2x96xf32> to vector<2x32xf32>
    %626 = vector.extract_strided_slice %616 {offsets = [0, 32], sizes = [2, 32], strides = [1, 1]} : vector<2x96xf32> to vector<2x32xf32>
    %627 = arith.addf %625, %626 : vector<2x32xf32>
    %628 = arith.negf %627 : vector<2x32xf32>
    %629 = math.exp %628 : vector<2x32xf32>
    %cst_108 = arith.constant 1.000000e+00 : f32
    %630 = vector.broadcast %cst_108 : f32 to vector<2x32xf32>
    %631 = arith.addf %630, %629 : vector<2x32xf32>
    %632 = arith.divf %630, %631 : vector<2x32xf32>
    %633 = vector.extract_strided_slice %613 {offsets = [0, 64], sizes = [2, 32], strides = [1, 1]} : vector<2x96xf32> to vector<2x32xf32>
    %634 = vector.extract_strided_slice %616 {offsets = [0, 64], sizes = [2, 32], strides = [1, 1]} : vector<2x96xf32> to vector<2x32xf32>
    %635 = arith.mulf %624, %634 : vector<2x32xf32>
    %636 = arith.addf %633, %635 : vector<2x32xf32>
    %637 = math.tanh %636 : vector<2x32xf32>
    %cst_109 = arith.constant 1.000000e+00 : f32
    %638 = vector.broadcast %cst_109 : f32 to vector<2x32xf32>
    %639 = arith.subf %638, %632 : vector<2x32xf32>
    %640 = arith.mulf %639, %637 : vector<2x32xf32>
    %641 = arith.mulf %632, %611 : vector<2x32xf32>
    %642 = arith.addf %640, %641 : vector<2x32xf32>
    %643 = vector.extract_strided_slice %545 {offsets = [0, 3, 0], sizes = [2, 1, 96], strides = [1, 1, 1]} : vector<2x8x96xf32> to vector<2x1x96xf32>
    %644 = vector.shape_cast %643 : vector<2x1x96xf32> to vector<2x96xf32>
    %cst_110 = arith.constant dense<0.000000e+00> : vector<2x96xf32>
    %645 = tpu.matmul %642, %547, %cst_110 {dimension_numbers = #tpu.dot_dimension_numbers<[1], [0], [0], [1], [0, 0, 1, 1], [], []>} : vector<2x32xf32>, vector<32x96xf32>, vector<2x96xf32> -> vector<2x96xf32>
    %646 = vector.broadcast %548 : vector<1x96xf32> to vector<2x96xf32>
    %647 = arith.addf %645, %646 : vector<2x96xf32>
    %648 = vector.extract_strided_slice %644 {offsets = [0, 0], sizes = [2, 32], strides = [1, 1]} : vector<2x96xf32> to vector<2x32xf32>
    %649 = vector.extract_strided_slice %647 {offsets = [0, 0], sizes = [2, 32], strides = [1, 1]} : vector<2x96xf32> to vector<2x32xf32>
    %650 = arith.addf %648, %649 : vector<2x32xf32>
    %651 = arith.negf %650 : vector<2x32xf32>
    %652 = math.exp %651 : vector<2x32xf32>
    %cst_111 = arith.constant 1.000000e+00 : f32
    %653 = vector.broadcast %cst_111 : f32 to vector<2x32xf32>
    %654 = arith.addf %653, %652 : vector<2x32xf32>
    %655 = arith.divf %653, %654 : vector<2x32xf32>
    %656 = vector.extract_strided_slice %644 {offsets = [0, 32], sizes = [2, 32], strides = [1, 1]} : vector<2x96xf32> to vector<2x32xf32>
    %657 = vector.extract_strided_slice %647 {offsets = [0, 32], sizes = [2, 32], strides = [1, 1]} : vector<2x96xf32> to vector<2x32xf32>
    %658 = arith.addf %656, %657 : vector<2x32xf32>
    %659 = arith.negf %658 : vector<2x32xf32>
    %660 = math.exp %659 : vector<2x32xf32>
    %cst_112 = arith.constant 1.000000e+00 : f32
    %661 = vector.broadcast %cst_112 : f32 to vector<2x32xf32>
    %662 = arith.addf %661, %660 : vector<2x32xf32>
    %663 = arith.divf %661, %662 : vector<2x32xf32>
    %664 = vector.extract_strided_slice %644 {offsets = [0, 64], sizes = [2, 32], strides = [1, 1]} : vector<2x96xf32> to vector<2x32xf32>
    %665 = vector.extract_strided_slice %647 {offsets = [0, 64], sizes = [2, 32], strides = [1, 1]} : vector<2x96xf32> to vector<2x32xf32>
    %666 = arith.mulf %655, %665 : vector<2x32xf32>
    %667 = arith.addf %664, %666 : vector<2x32xf32>
    %668 = math.tanh %667 : vector<2x32xf32>
    %cst_113 = arith.constant 1.000000e+00 : f32
    %669 = vector.broadcast %cst_113 : f32 to vector<2x32xf32>
    %670 = arith.subf %669, %663 : vector<2x32xf32>
    %671 = arith.mulf %670, %668 : vector<2x32xf32>
    %672 = arith.mulf %663, %642 : vector<2x32xf32>
    %673 = arith.addf %671, %672 : vector<2x32xf32>
    %674 = vector.extract_strided_slice %545 {offsets = [0, 4, 0], sizes = [2, 1, 96], strides = [1, 1, 1]} : vector<2x8x96xf32> to vector<2x1x96xf32>
    %675 = vector.shape_cast %674 : vector<2x1x96xf32> to vector<2x96xf32>
    %cst_114 = arith.constant dense<0.000000e+00> : vector<2x96xf32>
    %676 = tpu.matmul %673, %547, %cst_114 {dimension_numbers = #tpu.dot_dimension_numbers<[1], [0], [0], [1], [0, 0, 1, 1], [], []>} : vector<2x32xf32>, vector<32x96xf32>, vector<2x96xf32> -> vector<2x96xf32>
    %677 = vector.broadcast %548 : vector<1x96xf32> to vector<2x96xf32>
    %678 = arith.addf %676, %677 : vector<2x96xf32>
    %679 = vector.extract_strided_slice %675 {offsets = [0, 0], sizes = [2, 32], strides = [1, 1]} : vector<2x96xf32> to vector<2x32xf32>
    %680 = vector.extract_strided_slice %678 {offsets = [0, 0], sizes = [2, 32], strides = [1, 1]} : vector<2x96xf32> to vector<2x32xf32>
    %681 = arith.addf %679, %680 : vector<2x32xf32>
    %682 = arith.negf %681 : vector<2x32xf32>
    %683 = math.exp %682 : vector<2x32xf32>
    %cst_115 = arith.constant 1.000000e+00 : f32
    %684 = vector.broadcast %cst_115 : f32 to vector<2x32xf32>
    %685 = arith.addf %684, %683 : vector<2x32xf32>
    %686 = arith.divf %684, %685 : vector<2x32xf32>
    %687 = vector.extract_strided_slice %675 {offsets = [0, 32], sizes = [2, 32], strides = [1, 1]} : vector<2x96xf32> to vector<2x32xf32>
    %688 = vector.extract_strided_slice %678 {offsets = [0, 32], sizes = [2, 32], strides = [1, 1]} : vector<2x96xf32> to vector<2x32xf32>
    %689 = arith.addf %687, %688 : vector<2x32xf32>
    %690 = arith.negf %689 : vector<2x32xf32>
    %691 = math.exp %690 : vector<2x32xf32>
    %cst_116 = arith.constant 1.000000e+00 : f32
    %692 = vector.broadcast %cst_116 : f32 to vector<2x32xf32>
    %693 = arith.addf %692, %691 : vector<2x32xf32>
    %694 = arith.divf %692, %693 : vector<2x32xf32>
    %695 = vector.extract_strided_slice %675 {offsets = [0, 64], sizes = [2, 32], strides = [1, 1]} : vector<2x96xf32> to vector<2x32xf32>
    %696 = vector.extract_strided_slice %678 {offsets = [0, 64], sizes = [2, 32], strides = [1, 1]} : vector<2x96xf32> to vector<2x32xf32>
    %697 = arith.mulf %686, %696 : vector<2x32xf32>
    %698 = arith.addf %695, %697 : vector<2x32xf32>
    %699 = math.tanh %698 : vector<2x32xf32>
    %cst_117 = arith.constant 1.000000e+00 : f32
    %700 = vector.broadcast %cst_117 : f32 to vector<2x32xf32>
    %701 = arith.subf %700, %694 : vector<2x32xf32>
    %702 = arith.mulf %701, %699 : vector<2x32xf32>
    %703 = arith.mulf %694, %673 : vector<2x32xf32>
    %704 = arith.addf %702, %703 : vector<2x32xf32>
    %705 = vector.extract_strided_slice %545 {offsets = [0, 5, 0], sizes = [2, 1, 96], strides = [1, 1, 1]} : vector<2x8x96xf32> to vector<2x1x96xf32>
    %706 = vector.shape_cast %705 : vector<2x1x96xf32> to vector<2x96xf32>
    %cst_118 = arith.constant dense<0.000000e+00> : vector<2x96xf32>
    %707 = tpu.matmul %704, %547, %cst_118 {dimension_numbers = #tpu.dot_dimension_numbers<[1], [0], [0], [1], [0, 0, 1, 1], [], []>} : vector<2x32xf32>, vector<32x96xf32>, vector<2x96xf32> -> vector<2x96xf32>
    %708 = vector.broadcast %548 : vector<1x96xf32> to vector<2x96xf32>
    %709 = arith.addf %707, %708 : vector<2x96xf32>
    %710 = vector.extract_strided_slice %706 {offsets = [0, 0], sizes = [2, 32], strides = [1, 1]} : vector<2x96xf32> to vector<2x32xf32>
    %711 = vector.extract_strided_slice %709 {offsets = [0, 0], sizes = [2, 32], strides = [1, 1]} : vector<2x96xf32> to vector<2x32xf32>
    %712 = arith.addf %710, %711 : vector<2x32xf32>
    %713 = arith.negf %712 : vector<2x32xf32>
    %714 = math.exp %713 : vector<2x32xf32>
    %cst_119 = arith.constant 1.000000e+00 : f32
    %715 = vector.broadcast %cst_119 : f32 to vector<2x32xf32>
    %716 = arith.addf %715, %714 : vector<2x32xf32>
    %717 = arith.divf %715, %716 : vector<2x32xf32>
    %718 = vector.extract_strided_slice %706 {offsets = [0, 32], sizes = [2, 32], strides = [1, 1]} : vector<2x96xf32> to vector<2x32xf32>
    %719 = vector.extract_strided_slice %709 {offsets = [0, 32], sizes = [2, 32], strides = [1, 1]} : vector<2x96xf32> to vector<2x32xf32>
    %720 = arith.addf %718, %719 : vector<2x32xf32>
    %721 = arith.negf %720 : vector<2x32xf32>
    %722 = math.exp %721 : vector<2x32xf32>
    %cst_120 = arith.constant 1.000000e+00 : f32
    %723 = vector.broadcast %cst_120 : f32 to vector<2x32xf32>
    %724 = arith.addf %723, %722 : vector<2x32xf32>
    %725 = arith.divf %723, %724 : vector<2x32xf32>
    %726 = vector.extract_strided_slice %706 {offsets = [0, 64], sizes = [2, 32], strides = [1, 1]} : vector<2x96xf32> to vector<2x32xf32>
    %727 = vector.extract_strided_slice %709 {offsets = [0, 64], sizes = [2, 32], strides = [1, 1]} : vector<2x96xf32> to vector<2x32xf32>
    %728 = arith.mulf %717, %727 : vector<2x32xf32>
    %729 = arith.addf %726, %728 : vector<2x32xf32>
    %730 = math.tanh %729 : vector<2x32xf32>
    %cst_121 = arith.constant 1.000000e+00 : f32
    %731 = vector.broadcast %cst_121 : f32 to vector<2x32xf32>
    %732 = arith.subf %731, %725 : vector<2x32xf32>
    %733 = arith.mulf %732, %730 : vector<2x32xf32>
    %734 = arith.mulf %725, %704 : vector<2x32xf32>
    %735 = arith.addf %733, %734 : vector<2x32xf32>
    %736 = vector.extract_strided_slice %545 {offsets = [0, 6, 0], sizes = [2, 1, 96], strides = [1, 1, 1]} : vector<2x8x96xf32> to vector<2x1x96xf32>
    %737 = vector.shape_cast %736 : vector<2x1x96xf32> to vector<2x96xf32>
    %cst_122 = arith.constant dense<0.000000e+00> : vector<2x96xf32>
    %738 = tpu.matmul %735, %547, %cst_122 {dimension_numbers = #tpu.dot_dimension_numbers<[1], [0], [0], [1], [0, 0, 1, 1], [], []>} : vector<2x32xf32>, vector<32x96xf32>, vector<2x96xf32> -> vector<2x96xf32>
    %739 = vector.broadcast %548 : vector<1x96xf32> to vector<2x96xf32>
    %740 = arith.addf %738, %739 : vector<2x96xf32>
    %741 = vector.extract_strided_slice %737 {offsets = [0, 0], sizes = [2, 32], strides = [1, 1]} : vector<2x96xf32> to vector<2x32xf32>
    %742 = vector.extract_strided_slice %740 {offsets = [0, 0], sizes = [2, 32], strides = [1, 1]} : vector<2x96xf32> to vector<2x32xf32>
    %743 = arith.addf %741, %742 : vector<2x32xf32>
    %744 = arith.negf %743 : vector<2x32xf32>
    %745 = math.exp %744 : vector<2x32xf32>
    %cst_123 = arith.constant 1.000000e+00 : f32
    %746 = vector.broadcast %cst_123 : f32 to vector<2x32xf32>
    %747 = arith.addf %746, %745 : vector<2x32xf32>
    %748 = arith.divf %746, %747 : vector<2x32xf32>
    %749 = vector.extract_strided_slice %737 {offsets = [0, 32], sizes = [2, 32], strides = [1, 1]} : vector<2x96xf32> to vector<2x32xf32>
    %750 = vector.extract_strided_slice %740 {offsets = [0, 32], sizes = [2, 32], strides = [1, 1]} : vector<2x96xf32> to vector<2x32xf32>
    %751 = arith.addf %749, %750 : vector<2x32xf32>
    %752 = arith.negf %751 : vector<2x32xf32>
    %753 = math.exp %752 : vector<2x32xf32>
    %cst_124 = arith.constant 1.000000e+00 : f32
    %754 = vector.broadcast %cst_124 : f32 to vector<2x32xf32>
    %755 = arith.addf %754, %753 : vector<2x32xf32>
    %756 = arith.divf %754, %755 : vector<2x32xf32>
    %757 = vector.extract_strided_slice %737 {offsets = [0, 64], sizes = [2, 32], strides = [1, 1]} : vector<2x96xf32> to vector<2x32xf32>
    %758 = vector.extract_strided_slice %740 {offsets = [0, 64], sizes = [2, 32], strides = [1, 1]} : vector<2x96xf32> to vector<2x32xf32>
    %759 = arith.mulf %748, %758 : vector<2x32xf32>
    %760 = arith.addf %757, %759 : vector<2x32xf32>
    %761 = math.tanh %760 : vector<2x32xf32>
    %cst_125 = arith.constant 1.000000e+00 : f32
    %762 = vector.broadcast %cst_125 : f32 to vector<2x32xf32>
    %763 = arith.subf %762, %756 : vector<2x32xf32>
    %764 = arith.mulf %763, %761 : vector<2x32xf32>
    %765 = arith.mulf %756, %735 : vector<2x32xf32>
    %766 = arith.addf %764, %765 : vector<2x32xf32>
    %767 = vector.extract_strided_slice %545 {offsets = [0, 7, 0], sizes = [2, 1, 96], strides = [1, 1, 1]} : vector<2x8x96xf32> to vector<2x1x96xf32>
    %768 = vector.shape_cast %767 : vector<2x1x96xf32> to vector<2x96xf32>
    %cst_126 = arith.constant dense<0.000000e+00> : vector<2x96xf32>
    %769 = tpu.matmul %766, %547, %cst_126 {dimension_numbers = #tpu.dot_dimension_numbers<[1], [0], [0], [1], [0, 0, 1, 1], [], []>} : vector<2x32xf32>, vector<32x96xf32>, vector<2x96xf32> -> vector<2x96xf32>
    %770 = vector.broadcast %548 : vector<1x96xf32> to vector<2x96xf32>
    %771 = arith.addf %769, %770 : vector<2x96xf32>
    %772 = vector.extract_strided_slice %768 {offsets = [0, 0], sizes = [2, 32], strides = [1, 1]} : vector<2x96xf32> to vector<2x32xf32>
    %773 = vector.extract_strided_slice %771 {offsets = [0, 0], sizes = [2, 32], strides = [1, 1]} : vector<2x96xf32> to vector<2x32xf32>
    %774 = arith.addf %772, %773 : vector<2x32xf32>
    %775 = arith.negf %774 : vector<2x32xf32>
    %776 = math.exp %775 : vector<2x32xf32>
    %cst_127 = arith.constant 1.000000e+00 : f32
    %777 = vector.broadcast %cst_127 : f32 to vector<2x32xf32>
    %778 = arith.addf %777, %776 : vector<2x32xf32>
    %779 = arith.divf %777, %778 : vector<2x32xf32>
    %780 = vector.extract_strided_slice %768 {offsets = [0, 32], sizes = [2, 32], strides = [1, 1]} : vector<2x96xf32> to vector<2x32xf32>
    %781 = vector.extract_strided_slice %771 {offsets = [0, 32], sizes = [2, 32], strides = [1, 1]} : vector<2x96xf32> to vector<2x32xf32>
    %782 = arith.addf %780, %781 : vector<2x32xf32>
    %783 = arith.negf %782 : vector<2x32xf32>
    %784 = math.exp %783 : vector<2x32xf32>
    %cst_128 = arith.constant 1.000000e+00 : f32
    %785 = vector.broadcast %cst_128 : f32 to vector<2x32xf32>
    %786 = arith.addf %785, %784 : vector<2x32xf32>
    %787 = arith.divf %785, %786 : vector<2x32xf32>
    %788 = vector.extract_strided_slice %768 {offsets = [0, 64], sizes = [2, 32], strides = [1, 1]} : vector<2x96xf32> to vector<2x32xf32>
    %789 = vector.extract_strided_slice %771 {offsets = [0, 64], sizes = [2, 32], strides = [1, 1]} : vector<2x96xf32> to vector<2x32xf32>
    %790 = arith.mulf %779, %789 : vector<2x32xf32>
    %791 = arith.addf %788, %790 : vector<2x32xf32>
    %792 = math.tanh %791 : vector<2x32xf32>
    %cst_129 = arith.constant 1.000000e+00 : f32
    %793 = vector.broadcast %cst_129 : f32 to vector<2x32xf32>
    %794 = arith.subf %793, %787 : vector<2x32xf32>
    %795 = arith.mulf %794, %792 : vector<2x32xf32>
    %796 = arith.mulf %787, %766 : vector<2x32xf32>
    %797 = arith.addf %795, %796 : vector<2x32xf32>
    %798 = vector.shape_cast %580 : vector<2x32xf32> to vector<2x1x32xf32>
    %799 = vector.shape_cast %611 : vector<2x32xf32> to vector<2x1x32xf32>
    %800 = vector.shape_cast %642 : vector<2x32xf32> to vector<2x1x32xf32>
    %801 = vector.shape_cast %673 : vector<2x32xf32> to vector<2x1x32xf32>
    %802 = vector.shape_cast %704 : vector<2x32xf32> to vector<2x1x32xf32>
    %803 = vector.shape_cast %735 : vector<2x32xf32> to vector<2x1x32xf32>
    %804 = vector.shape_cast %766 : vector<2x32xf32> to vector<2x1x32xf32>
    %805 = vector.shape_cast %797 : vector<2x32xf32> to vector<2x1x32xf32>
    %806 = tpu.concatenate %798, %799, %800, %801, %802, %803, %804, %805 in 1 : vector<2x1x32xf32>, vector<2x1x32xf32>, vector<2x1x32xf32>, vector<2x1x32xf32>, vector<2x1x32xf32>, vector<2x1x32xf32>, vector<2x1x32xf32>, vector<2x1x32xf32> -> vector<2x8x32xf32>
    %807 = vector.shape_cast %806 : vector<2x8x32xf32> to vector<16x32xf32>
    %c2_130 = arith.constant 2 : index
    %c0_131 = arith.constant 0 : index
    %c0_132 = arith.constant 0 : index
    %808 = vector.load %arg3[%c2_130, %c0_131, %c0_132] : memref<3x32x96xf32, #tpu.memory_space<vmem>>, vector<1x32x96xf32>
    %809 = vector.shape_cast %808 : vector<1x32x96xf32> to vector<32x96xf32>
    %cst_133 = arith.constant dense<0.000000e+00> : vector<16x96xf32>
    %810 = tpu.matmul %807, %809, %cst_133 {dimension_numbers = #tpu.dot_dimension_numbers<[1], [0], [0], [1], [0, 0, 1, 1], [], []>} : vector<16x32xf32>, vector<32x96xf32>, vector<16x96xf32> -> vector<16x96xf32>
    %c3 = arith.constant 3 : index
    %c0_134 = arith.constant 0 : index
    %811 = vector.load %arg5[%c3, %c0_134] : memref<4x96xf32, #tpu.memory_space<vmem>>, vector<1x96xf32>
    %812 = vector.broadcast %811 : vector<1x96xf32> to vector<16x96xf32>
    %813 = arith.addf %810, %812 : vector<16x96xf32>
    %814 = vector.shape_cast %813 : vector<16x96xf32> to vector<2x8x96xf32>
    %c3_135 = arith.constant 3 : index
    %c0_136 = arith.constant 0 : index
    %c0_137 = arith.constant 0 : index
    %815 = vector.load %arg4[%c3_135, %c0_136, %c0_137] : memref<4x32x96xf32, #tpu.memory_space<vmem>>, vector<1x32x96xf32>
    %816 = vector.shape_cast %815 : vector<1x32x96xf32> to vector<32x96xf32>
    %c3_138 = arith.constant 3 : index
    %c0_139 = arith.constant 0 : index
    %817 = vector.load %arg6[%c3_138, %c0_139] : memref<4x96xf32, #tpu.memory_space<vmem>>, vector<1x96xf32>
    %cst_140 = arith.constant 0.000000e+00 : f32
    %818 = vector.broadcast %cst_140 : f32 to vector<2x32xf32>
    %819 = vector.extract_strided_slice %814 {offsets = [0, 0, 0], sizes = [2, 1, 96], strides = [1, 1, 1]} : vector<2x8x96xf32> to vector<2x1x96xf32>
    %820 = vector.shape_cast %819 : vector<2x1x96xf32> to vector<2x96xf32>
    %cst_141 = arith.constant dense<0.000000e+00> : vector<2x96xf32>
    %821 = tpu.matmul %818, %816, %cst_141 {dimension_numbers = #tpu.dot_dimension_numbers<[1], [0], [0], [1], [0, 0, 1, 1], [], []>} : vector<2x32xf32>, vector<32x96xf32>, vector<2x96xf32> -> vector<2x96xf32>
    %822 = vector.broadcast %817 : vector<1x96xf32> to vector<2x96xf32>
    %823 = arith.addf %821, %822 : vector<2x96xf32>
    %824 = vector.extract_strided_slice %820 {offsets = [0, 0], sizes = [2, 32], strides = [1, 1]} : vector<2x96xf32> to vector<2x32xf32>
    %825 = vector.extract_strided_slice %823 {offsets = [0, 0], sizes = [2, 32], strides = [1, 1]} : vector<2x96xf32> to vector<2x32xf32>
    %826 = arith.addf %824, %825 : vector<2x32xf32>
    %827 = arith.negf %826 : vector<2x32xf32>
    %828 = math.exp %827 : vector<2x32xf32>
    %cst_142 = arith.constant 1.000000e+00 : f32
    %829 = vector.broadcast %cst_142 : f32 to vector<2x32xf32>
    %830 = arith.addf %829, %828 : vector<2x32xf32>
    %831 = arith.divf %829, %830 : vector<2x32xf32>
    %832 = vector.extract_strided_slice %820 {offsets = [0, 32], sizes = [2, 32], strides = [1, 1]} : vector<2x96xf32> to vector<2x32xf32>
    %833 = vector.extract_strided_slice %823 {offsets = [0, 32], sizes = [2, 32], strides = [1, 1]} : vector<2x96xf32> to vector<2x32xf32>
    %834 = arith.addf %832, %833 : vector<2x32xf32>
    %835 = arith.negf %834 : vector<2x32xf32>
    %836 = math.exp %835 : vector<2x32xf32>
    %cst_143 = arith.constant 1.000000e+00 : f32
    %837 = vector.broadcast %cst_143 : f32 to vector<2x32xf32>
    %838 = arith.addf %837, %836 : vector<2x32xf32>
    %839 = arith.divf %837, %838 : vector<2x32xf32>
    %840 = vector.extract_strided_slice %820 {offsets = [0, 64], sizes = [2, 32], strides = [1, 1]} : vector<2x96xf32> to vector<2x32xf32>
    %841 = vector.extract_strided_slice %823 {offsets = [0, 64], sizes = [2, 32], strides = [1, 1]} : vector<2x96xf32> to vector<2x32xf32>
    %842 = arith.mulf %831, %841 : vector<2x32xf32>
    %843 = arith.addf %840, %842 : vector<2x32xf32>
    %844 = math.tanh %843 : vector<2x32xf32>
    %cst_144 = arith.constant 1.000000e+00 : f32
    %845 = vector.broadcast %cst_144 : f32 to vector<2x32xf32>
    %846 = arith.subf %845, %839 : vector<2x32xf32>
    %847 = arith.mulf %846, %844 : vector<2x32xf32>
    %848 = arith.mulf %839, %818 : vector<2x32xf32>
    %849 = arith.addf %847, %848 : vector<2x32xf32>
    %850 = vector.extract_strided_slice %814 {offsets = [0, 1, 0], sizes = [2, 1, 96], strides = [1, 1, 1]} : vector<2x8x96xf32> to vector<2x1x96xf32>
    %851 = vector.shape_cast %850 : vector<2x1x96xf32> to vector<2x96xf32>
    %cst_145 = arith.constant dense<0.000000e+00> : vector<2x96xf32>
    %852 = tpu.matmul %849, %816, %cst_145 {dimension_numbers = #tpu.dot_dimension_numbers<[1], [0], [0], [1], [0, 0, 1, 1], [], []>} : vector<2x32xf32>, vector<32x96xf32>, vector<2x96xf32> -> vector<2x96xf32>
    %853 = vector.broadcast %817 : vector<1x96xf32> to vector<2x96xf32>
    %854 = arith.addf %852, %853 : vector<2x96xf32>
    %855 = vector.extract_strided_slice %851 {offsets = [0, 0], sizes = [2, 32], strides = [1, 1]} : vector<2x96xf32> to vector<2x32xf32>
    %856 = vector.extract_strided_slice %854 {offsets = [0, 0], sizes = [2, 32], strides = [1, 1]} : vector<2x96xf32> to vector<2x32xf32>
    %857 = arith.addf %855, %856 : vector<2x32xf32>
    %858 = arith.negf %857 : vector<2x32xf32>
    %859 = math.exp %858 : vector<2x32xf32>
    %cst_146 = arith.constant 1.000000e+00 : f32
    %860 = vector.broadcast %cst_146 : f32 to vector<2x32xf32>
    %861 = arith.addf %860, %859 : vector<2x32xf32>
    %862 = arith.divf %860, %861 : vector<2x32xf32>
    %863 = vector.extract_strided_slice %851 {offsets = [0, 32], sizes = [2, 32], strides = [1, 1]} : vector<2x96xf32> to vector<2x32xf32>
    %864 = vector.extract_strided_slice %854 {offsets = [0, 32], sizes = [2, 32], strides = [1, 1]} : vector<2x96xf32> to vector<2x32xf32>
    %865 = arith.addf %863, %864 : vector<2x32xf32>
    %866 = arith.negf %865 : vector<2x32xf32>
    %867 = math.exp %866 : vector<2x32xf32>
    %cst_147 = arith.constant 1.000000e+00 : f32
    %868 = vector.broadcast %cst_147 : f32 to vector<2x32xf32>
    %869 = arith.addf %868, %867 : vector<2x32xf32>
    %870 = arith.divf %868, %869 : vector<2x32xf32>
    %871 = vector.extract_strided_slice %851 {offsets = [0, 64], sizes = [2, 32], strides = [1, 1]} : vector<2x96xf32> to vector<2x32xf32>
    %872 = vector.extract_strided_slice %854 {offsets = [0, 64], sizes = [2, 32], strides = [1, 1]} : vector<2x96xf32> to vector<2x32xf32>
    %873 = arith.mulf %862, %872 : vector<2x32xf32>
    %874 = arith.addf %871, %873 : vector<2x32xf32>
    %875 = math.tanh %874 : vector<2x32xf32>
    %cst_148 = arith.constant 1.000000e+00 : f32
    %876 = vector.broadcast %cst_148 : f32 to vector<2x32xf32>
    %877 = arith.subf %876, %870 : vector<2x32xf32>
    %878 = arith.mulf %877, %875 : vector<2x32xf32>
    %879 = arith.mulf %870, %849 : vector<2x32xf32>
    %880 = arith.addf %878, %879 : vector<2x32xf32>
    %881 = vector.extract_strided_slice %814 {offsets = [0, 2, 0], sizes = [2, 1, 96], strides = [1, 1, 1]} : vector<2x8x96xf32> to vector<2x1x96xf32>
    %882 = vector.shape_cast %881 : vector<2x1x96xf32> to vector<2x96xf32>
    %cst_149 = arith.constant dense<0.000000e+00> : vector<2x96xf32>
    %883 = tpu.matmul %880, %816, %cst_149 {dimension_numbers = #tpu.dot_dimension_numbers<[1], [0], [0], [1], [0, 0, 1, 1], [], []>} : vector<2x32xf32>, vector<32x96xf32>, vector<2x96xf32> -> vector<2x96xf32>
    %884 = vector.broadcast %817 : vector<1x96xf32> to vector<2x96xf32>
    %885 = arith.addf %883, %884 : vector<2x96xf32>
    %886 = vector.extract_strided_slice %882 {offsets = [0, 0], sizes = [2, 32], strides = [1, 1]} : vector<2x96xf32> to vector<2x32xf32>
    %887 = vector.extract_strided_slice %885 {offsets = [0, 0], sizes = [2, 32], strides = [1, 1]} : vector<2x96xf32> to vector<2x32xf32>
    %888 = arith.addf %886, %887 : vector<2x32xf32>
    %889 = arith.negf %888 : vector<2x32xf32>
    %890 = math.exp %889 : vector<2x32xf32>
    %cst_150 = arith.constant 1.000000e+00 : f32
    %891 = vector.broadcast %cst_150 : f32 to vector<2x32xf32>
    %892 = arith.addf %891, %890 : vector<2x32xf32>
    %893 = arith.divf %891, %892 : vector<2x32xf32>
    %894 = vector.extract_strided_slice %882 {offsets = [0, 32], sizes = [2, 32], strides = [1, 1]} : vector<2x96xf32> to vector<2x32xf32>
    %895 = vector.extract_strided_slice %885 {offsets = [0, 32], sizes = [2, 32], strides = [1, 1]} : vector<2x96xf32> to vector<2x32xf32>
    %896 = arith.addf %894, %895 : vector<2x32xf32>
    %897 = arith.negf %896 : vector<2x32xf32>
    %898 = math.exp %897 : vector<2x32xf32>
    %cst_151 = arith.constant 1.000000e+00 : f32
    %899 = vector.broadcast %cst_151 : f32 to vector<2x32xf32>
    %900 = arith.addf %899, %898 : vector<2x32xf32>
    %901 = arith.divf %899, %900 : vector<2x32xf32>
    %902 = vector.extract_strided_slice %882 {offsets = [0, 64], sizes = [2, 32], strides = [1, 1]} : vector<2x96xf32> to vector<2x32xf32>
    %903 = vector.extract_strided_slice %885 {offsets = [0, 64], sizes = [2, 32], strides = [1, 1]} : vector<2x96xf32> to vector<2x32xf32>
    %904 = arith.mulf %893, %903 : vector<2x32xf32>
    %905 = arith.addf %902, %904 : vector<2x32xf32>
    %906 = math.tanh %905 : vector<2x32xf32>
    %cst_152 = arith.constant 1.000000e+00 : f32
    %907 = vector.broadcast %cst_152 : f32 to vector<2x32xf32>
    %908 = arith.subf %907, %901 : vector<2x32xf32>
    %909 = arith.mulf %908, %906 : vector<2x32xf32>
    %910 = arith.mulf %901, %880 : vector<2x32xf32>
    %911 = arith.addf %909, %910 : vector<2x32xf32>
    %912 = vector.extract_strided_slice %814 {offsets = [0, 3, 0], sizes = [2, 1, 96], strides = [1, 1, 1]} : vector<2x8x96xf32> to vector<2x1x96xf32>
    %913 = vector.shape_cast %912 : vector<2x1x96xf32> to vector<2x96xf32>
    %cst_153 = arith.constant dense<0.000000e+00> : vector<2x96xf32>
    %914 = tpu.matmul %911, %816, %cst_153 {dimension_numbers = #tpu.dot_dimension_numbers<[1], [0], [0], [1], [0, 0, 1, 1], [], []>} : vector<2x32xf32>, vector<32x96xf32>, vector<2x96xf32> -> vector<2x96xf32>
    %915 = vector.broadcast %817 : vector<1x96xf32> to vector<2x96xf32>
    %916 = arith.addf %914, %915 : vector<2x96xf32>
    %917 = vector.extract_strided_slice %913 {offsets = [0, 0], sizes = [2, 32], strides = [1, 1]} : vector<2x96xf32> to vector<2x32xf32>
    %918 = vector.extract_strided_slice %916 {offsets = [0, 0], sizes = [2, 32], strides = [1, 1]} : vector<2x96xf32> to vector<2x32xf32>
    %919 = arith.addf %917, %918 : vector<2x32xf32>
    %920 = arith.negf %919 : vector<2x32xf32>
    %921 = math.exp %920 : vector<2x32xf32>
    %cst_154 = arith.constant 1.000000e+00 : f32
    %922 = vector.broadcast %cst_154 : f32 to vector<2x32xf32>
    %923 = arith.addf %922, %921 : vector<2x32xf32>
    %924 = arith.divf %922, %923 : vector<2x32xf32>
    %925 = vector.extract_strided_slice %913 {offsets = [0, 32], sizes = [2, 32], strides = [1, 1]} : vector<2x96xf32> to vector<2x32xf32>
    %926 = vector.extract_strided_slice %916 {offsets = [0, 32], sizes = [2, 32], strides = [1, 1]} : vector<2x96xf32> to vector<2x32xf32>
    %927 = arith.addf %925, %926 : vector<2x32xf32>
    %928 = arith.negf %927 : vector<2x32xf32>
    %929 = math.exp %928 : vector<2x32xf32>
    %cst_155 = arith.constant 1.000000e+00 : f32
    %930 = vector.broadcast %cst_155 : f32 to vector<2x32xf32>
    %931 = arith.addf %930, %929 : vector<2x32xf32>
    %932 = arith.divf %930, %931 : vector<2x32xf32>
    %933 = vector.extract_strided_slice %913 {offsets = [0, 64], sizes = [2, 32], strides = [1, 1]} : vector<2x96xf32> to vector<2x32xf32>
    %934 = vector.extract_strided_slice %916 {offsets = [0, 64], sizes = [2, 32], strides = [1, 1]} : vector<2x96xf32> to vector<2x32xf32>
    %935 = arith.mulf %924, %934 : vector<2x32xf32>
    %936 = arith.addf %933, %935 : vector<2x32xf32>
    %937 = math.tanh %936 : vector<2x32xf32>
    %cst_156 = arith.constant 1.000000e+00 : f32
    %938 = vector.broadcast %cst_156 : f32 to vector<2x32xf32>
    %939 = arith.subf %938, %932 : vector<2x32xf32>
    %940 = arith.mulf %939, %937 : vector<2x32xf32>
    %941 = arith.mulf %932, %911 : vector<2x32xf32>
    %942 = arith.addf %940, %941 : vector<2x32xf32>
    %943 = vector.extract_strided_slice %814 {offsets = [0, 4, 0], sizes = [2, 1, 96], strides = [1, 1, 1]} : vector<2x8x96xf32> to vector<2x1x96xf32>
    %944 = vector.shape_cast %943 : vector<2x1x96xf32> to vector<2x96xf32>
    %cst_157 = arith.constant dense<0.000000e+00> : vector<2x96xf32>
    %945 = tpu.matmul %942, %816, %cst_157 {dimension_numbers = #tpu.dot_dimension_numbers<[1], [0], [0], [1], [0, 0, 1, 1], [], []>} : vector<2x32xf32>, vector<32x96xf32>, vector<2x96xf32> -> vector<2x96xf32>
    %946 = vector.broadcast %817 : vector<1x96xf32> to vector<2x96xf32>
    %947 = arith.addf %945, %946 : vector<2x96xf32>
    %948 = vector.extract_strided_slice %944 {offsets = [0, 0], sizes = [2, 32], strides = [1, 1]} : vector<2x96xf32> to vector<2x32xf32>
    %949 = vector.extract_strided_slice %947 {offsets = [0, 0], sizes = [2, 32], strides = [1, 1]} : vector<2x96xf32> to vector<2x32xf32>
    %950 = arith.addf %948, %949 : vector<2x32xf32>
    %951 = arith.negf %950 : vector<2x32xf32>
    %952 = math.exp %951 : vector<2x32xf32>
    %cst_158 = arith.constant 1.000000e+00 : f32
    %953 = vector.broadcast %cst_158 : f32 to vector<2x32xf32>
    %954 = arith.addf %953, %952 : vector<2x32xf32>
    %955 = arith.divf %953, %954 : vector<2x32xf32>
    %956 = vector.extract_strided_slice %944 {offsets = [0, 32], sizes = [2, 32], strides = [1, 1]} : vector<2x96xf32> to vector<2x32xf32>
    %957 = vector.extract_strided_slice %947 {offsets = [0, 32], sizes = [2, 32], strides = [1, 1]} : vector<2x96xf32> to vector<2x32xf32>
    %958 = arith.addf %956, %957 : vector<2x32xf32>
    %959 = arith.negf %958 : vector<2x32xf32>
    %960 = math.exp %959 : vector<2x32xf32>
    %cst_159 = arith.constant 1.000000e+00 : f32
    %961 = vector.broadcast %cst_159 : f32 to vector<2x32xf32>
    %962 = arith.addf %961, %960 : vector<2x32xf32>
    %963 = arith.divf %961, %962 : vector<2x32xf32>
    %964 = vector.extract_strided_slice %944 {offsets = [0, 64], sizes = [2, 32], strides = [1, 1]} : vector<2x96xf32> to vector<2x32xf32>
    %965 = vector.extract_strided_slice %947 {offsets = [0, 64], sizes = [2, 32], strides = [1, 1]} : vector<2x96xf32> to vector<2x32xf32>
    %966 = arith.mulf %955, %965 : vector<2x32xf32>
    %967 = arith.addf %964, %966 : vector<2x32xf32>
    %968 = math.tanh %967 : vector<2x32xf32>
    %cst_160 = arith.constant 1.000000e+00 : f32
    %969 = vector.broadcast %cst_160 : f32 to vector<2x32xf32>
    %970 = arith.subf %969, %963 : vector<2x32xf32>
    %971 = arith.mulf %970, %968 : vector<2x32xf32>
    %972 = arith.mulf %963, %942 : vector<2x32xf32>
    %973 = arith.addf %971, %972 : vector<2x32xf32>
    %974 = vector.extract_strided_slice %814 {offsets = [0, 5, 0], sizes = [2, 1, 96], strides = [1, 1, 1]} : vector<2x8x96xf32> to vector<2x1x96xf32>
    %975 = vector.shape_cast %974 : vector<2x1x96xf32> to vector<2x96xf32>
    %cst_161 = arith.constant dense<0.000000e+00> : vector<2x96xf32>
    %976 = tpu.matmul %973, %816, %cst_161 {dimension_numbers = #tpu.dot_dimension_numbers<[1], [0], [0], [1], [0, 0, 1, 1], [], []>} : vector<2x32xf32>, vector<32x96xf32>, vector<2x96xf32> -> vector<2x96xf32>
    %977 = vector.broadcast %817 : vector<1x96xf32> to vector<2x96xf32>
    %978 = arith.addf %976, %977 : vector<2x96xf32>
    %979 = vector.extract_strided_slice %975 {offsets = [0, 0], sizes = [2, 32], strides = [1, 1]} : vector<2x96xf32> to vector<2x32xf32>
    %980 = vector.extract_strided_slice %978 {offsets = [0, 0], sizes = [2, 32], strides = [1, 1]} : vector<2x96xf32> to vector<2x32xf32>
    %981 = arith.addf %979, %980 : vector<2x32xf32>
    %982 = arith.negf %981 : vector<2x32xf32>
    %983 = math.exp %982 : vector<2x32xf32>
    %cst_162 = arith.constant 1.000000e+00 : f32
    %984 = vector.broadcast %cst_162 : f32 to vector<2x32xf32>
    %985 = arith.addf %984, %983 : vector<2x32xf32>
    %986 = arith.divf %984, %985 : vector<2x32xf32>
    %987 = vector.extract_strided_slice %975 {offsets = [0, 32], sizes = [2, 32], strides = [1, 1]} : vector<2x96xf32> to vector<2x32xf32>
    %988 = vector.extract_strided_slice %978 {offsets = [0, 32], sizes = [2, 32], strides = [1, 1]} : vector<2x96xf32> to vector<2x32xf32>
    %989 = arith.addf %987, %988 : vector<2x32xf32>
    %990 = arith.negf %989 : vector<2x32xf32>
    %991 = math.exp %990 : vector<2x32xf32>
    %cst_163 = arith.constant 1.000000e+00 : f32
    %992 = vector.broadcast %cst_163 : f32 to vector<2x32xf32>
    %993 = arith.addf %992, %991 : vector<2x32xf32>
    %994 = arith.divf %992, %993 : vector<2x32xf32>
    %995 = vector.extract_strided_slice %975 {offsets = [0, 64], sizes = [2, 32], strides = [1, 1]} : vector<2x96xf32> to vector<2x32xf32>
    %996 = vector.extract_strided_slice %978 {offsets = [0, 64], sizes = [2, 32], strides = [1, 1]} : vector<2x96xf32> to vector<2x32xf32>
    %997 = arith.mulf %986, %996 : vector<2x32xf32>
    %998 = arith.addf %995, %997 : vector<2x32xf32>
    %999 = math.tanh %998 : vector<2x32xf32>
    %cst_164 = arith.constant 1.000000e+00 : f32
    %1000 = vector.broadcast %cst_164 : f32 to vector<2x32xf32>
    %1001 = arith.subf %1000, %994 : vector<2x32xf32>
    %1002 = arith.mulf %1001, %999 : vector<2x32xf32>
    %1003 = arith.mulf %994, %973 : vector<2x32xf32>
    %1004 = arith.addf %1002, %1003 : vector<2x32xf32>
    %1005 = vector.extract_strided_slice %814 {offsets = [0, 6, 0], sizes = [2, 1, 96], strides = [1, 1, 1]} : vector<2x8x96xf32> to vector<2x1x96xf32>
    %1006 = vector.shape_cast %1005 : vector<2x1x96xf32> to vector<2x96xf32>
    %cst_165 = arith.constant dense<0.000000e+00> : vector<2x96xf32>
    %1007 = tpu.matmul %1004, %816, %cst_165 {dimension_numbers = #tpu.dot_dimension_numbers<[1], [0], [0], [1], [0, 0, 1, 1], [], []>} : vector<2x32xf32>, vector<32x96xf32>, vector<2x96xf32> -> vector<2x96xf32>
    %1008 = vector.broadcast %817 : vector<1x96xf32> to vector<2x96xf32>
    %1009 = arith.addf %1007, %1008 : vector<2x96xf32>
    %1010 = vector.extract_strided_slice %1006 {offsets = [0, 0], sizes = [2, 32], strides = [1, 1]} : vector<2x96xf32> to vector<2x32xf32>
    %1011 = vector.extract_strided_slice %1009 {offsets = [0, 0], sizes = [2, 32], strides = [1, 1]} : vector<2x96xf32> to vector<2x32xf32>
    %1012 = arith.addf %1010, %1011 : vector<2x32xf32>
    %1013 = arith.negf %1012 : vector<2x32xf32>
    %1014 = math.exp %1013 : vector<2x32xf32>
    %cst_166 = arith.constant 1.000000e+00 : f32
    %1015 = vector.broadcast %cst_166 : f32 to vector<2x32xf32>
    %1016 = arith.addf %1015, %1014 : vector<2x32xf32>
    %1017 = arith.divf %1015, %1016 : vector<2x32xf32>
    %1018 = vector.extract_strided_slice %1006 {offsets = [0, 32], sizes = [2, 32], strides = [1, 1]} : vector<2x96xf32> to vector<2x32xf32>
    %1019 = vector.extract_strided_slice %1009 {offsets = [0, 32], sizes = [2, 32], strides = [1, 1]} : vector<2x96xf32> to vector<2x32xf32>
    %1020 = arith.addf %1018, %1019 : vector<2x32xf32>
    %1021 = arith.negf %1020 : vector<2x32xf32>
    %1022 = math.exp %1021 : vector<2x32xf32>
    %cst_167 = arith.constant 1.000000e+00 : f32
    %1023 = vector.broadcast %cst_167 : f32 to vector<2x32xf32>
    %1024 = arith.addf %1023, %1022 : vector<2x32xf32>
    %1025 = arith.divf %1023, %1024 : vector<2x32xf32>
    %1026 = vector.extract_strided_slice %1006 {offsets = [0, 64], sizes = [2, 32], strides = [1, 1]} : vector<2x96xf32> to vector<2x32xf32>
    %1027 = vector.extract_strided_slice %1009 {offsets = [0, 64], sizes = [2, 32], strides = [1, 1]} : vector<2x96xf32> to vector<2x32xf32>
    %1028 = arith.mulf %1017, %1027 : vector<2x32xf32>
    %1029 = arith.addf %1026, %1028 : vector<2x32xf32>
    %1030 = math.tanh %1029 : vector<2x32xf32>
    %cst_168 = arith.constant 1.000000e+00 : f32
    %1031 = vector.broadcast %cst_168 : f32 to vector<2x32xf32>
    %1032 = arith.subf %1031, %1025 : vector<2x32xf32>
    %1033 = arith.mulf %1032, %1030 : vector<2x32xf32>
    %1034 = arith.mulf %1025, %1004 : vector<2x32xf32>
    %1035 = arith.addf %1033, %1034 : vector<2x32xf32>
    %1036 = vector.extract_strided_slice %814 {offsets = [0, 7, 0], sizes = [2, 1, 96], strides = [1, 1, 1]} : vector<2x8x96xf32> to vector<2x1x96xf32>
    %1037 = vector.shape_cast %1036 : vector<2x1x96xf32> to vector<2x96xf32>
    %cst_169 = arith.constant dense<0.000000e+00> : vector<2x96xf32>
    %1038 = tpu.matmul %1035, %816, %cst_169 {dimension_numbers = #tpu.dot_dimension_numbers<[1], [0], [0], [1], [0, 0, 1, 1], [], []>} : vector<2x32xf32>, vector<32x96xf32>, vector<2x96xf32> -> vector<2x96xf32>
    %1039 = vector.broadcast %817 : vector<1x96xf32> to vector<2x96xf32>
    %1040 = arith.addf %1038, %1039 : vector<2x96xf32>
    %1041 = vector.extract_strided_slice %1037 {offsets = [0, 0], sizes = [2, 32], strides = [1, 1]} : vector<2x96xf32> to vector<2x32xf32>
    %1042 = vector.extract_strided_slice %1040 {offsets = [0, 0], sizes = [2, 32], strides = [1, 1]} : vector<2x96xf32> to vector<2x32xf32>
    %1043 = arith.addf %1041, %1042 : vector<2x32xf32>
    %1044 = arith.negf %1043 : vector<2x32xf32>
    %1045 = math.exp %1044 : vector<2x32xf32>
    %cst_170 = arith.constant 1.000000e+00 : f32
    %1046 = vector.broadcast %cst_170 : f32 to vector<2x32xf32>
    %1047 = arith.addf %1046, %1045 : vector<2x32xf32>
    %1048 = arith.divf %1046, %1047 : vector<2x32xf32>
    %1049 = vector.extract_strided_slice %1037 {offsets = [0, 32], sizes = [2, 32], strides = [1, 1]} : vector<2x96xf32> to vector<2x32xf32>
    %1050 = vector.extract_strided_slice %1040 {offsets = [0, 32], sizes = [2, 32], strides = [1, 1]} : vector<2x96xf32> to vector<2x32xf32>
    %1051 = arith.addf %1049, %1050 : vector<2x32xf32>
    %1052 = arith.negf %1051 : vector<2x32xf32>
    %1053 = math.exp %1052 : vector<2x32xf32>
    %cst_171 = arith.constant 1.000000e+00 : f32
    %1054 = vector.broadcast %cst_171 : f32 to vector<2x32xf32>
    %1055 = arith.addf %1054, %1053 : vector<2x32xf32>
    %1056 = arith.divf %1054, %1055 : vector<2x32xf32>
    %1057 = vector.extract_strided_slice %1037 {offsets = [0, 64], sizes = [2, 32], strides = [1, 1]} : vector<2x96xf32> to vector<2x32xf32>
    %1058 = vector.extract_strided_slice %1040 {offsets = [0, 64], sizes = [2, 32], strides = [1, 1]} : vector<2x96xf32> to vector<2x32xf32>
    %1059 = arith.mulf %1048, %1058 : vector<2x32xf32>
    %1060 = arith.addf %1057, %1059 : vector<2x32xf32>
    %1061 = math.tanh %1060 : vector<2x32xf32>
    %cst_172 = arith.constant 1.000000e+00 : f32
    %1062 = vector.broadcast %cst_172 : f32 to vector<2x32xf32>
    %1063 = arith.subf %1062, %1056 : vector<2x32xf32>
    %1064 = arith.mulf %1063, %1061 : vector<2x32xf32>
    %1065 = arith.mulf %1056, %1035 : vector<2x32xf32>
    %1066 = arith.addf %1064, %1065 : vector<2x32xf32>
    %c0_173 = arith.constant 0 : index
    %c0_174 = arith.constant 0 : index
    %1067 = vector.load %arg7[%c0_173, %c0_174] : memref<32x2xf32, #tpu.memory_space<vmem>>, vector<32x2xf32>
    %cst_175 = arith.constant dense<0.000000e+00> : vector<2x2xf32>
    %1068 = tpu.matmul %1066, %1067, %cst_175 {dimension_numbers = #tpu.dot_dimension_numbers<[1], [0], [0], [1], [0, 0, 1, 1], [], []>} : vector<2x32xf32>, vector<32x2xf32>, vector<2x2xf32> -> vector<2x2xf32>
    %c0_176 = arith.constant 0 : index
    %c0_177 = arith.constant 0 : index
    %1069 = vector.load %arg8[%c0_176, %c0_177] : memref<1x2xf32, #tpu.memory_space<vmem>>, vector<1x2xf32>
    %1070 = vector.broadcast %1069 : vector<1x2xf32> to vector<2x2xf32>
    %1071 = arith.addf %1068, %1070 : vector<2x2xf32>
    %c0_178 = arith.constant 0 : index
    %c0_179 = arith.constant 0 : index
    %1072 = vector.load %arg9[%c0_178, %c0_179] : memref<2x2xf32, #tpu.memory_space<vmem>>, vector<2x2xf32>
    tpu.vector_store %arg9[%c0_178, %c0_179], %1071 {strides = array<i32>} : memref<2x2xf32, #tpu.memory_space<vmem>>, vector<2x2xf32>,
    return
  }
  func.func @transform_0(%arg0: i32) -> (i32, i32, i32) {
    %c0_i32 = arith.constant 0 : i32
    %c0_i32_0 = arith.constant 0 : i32
    %c0_i32_1 = arith.constant 0 : i32
    %c0_i32_2 = arith.constant 0 : i32
    return %c0_i32, %c0_i32_0, %c0_i32_1 : i32, i32, i32
  }
  func.func @transform_1(%arg0: i32) -> (i32, i32) {
    %c0_i32 = arith.constant 0 : i32
    %c0_i32_0 = arith.constant 0 : i32
    %c0_i32_1 = arith.constant 0 : i32
    return %c0_i32, %c0_i32_0 : i32, i32
  }
  func.func @transform_2(%arg0: i32) -> (i32, i32, i32) {
    %c0_i32 = arith.constant 0 : i32
    %c0_i32_0 = arith.constant 0 : i32
    %c0_i32_1 = arith.constant 0 : i32
    %c0_i32_2 = arith.constant 0 : i32
    return %c0_i32, %c0_i32_0, %c0_i32_1 : i32, i32, i32
  }
  func.func @transform_3(%arg0: i32) -> (i32, i32, i32) {
    %c0_i32 = arith.constant 0 : i32
    %c0_i32_0 = arith.constant 0 : i32
    %c0_i32_1 = arith.constant 0 : i32
    %c0_i32_2 = arith.constant 0 : i32
    return %c0_i32, %c0_i32_0, %c0_i32_1 : i32, i32, i32
  }
  func.func @transform_4(%arg0: i32) -> (i32, i32) {
    %c0_i32 = arith.constant 0 : i32
    %c0_i32_0 = arith.constant 0 : i32
    %c0_i32_1 = arith.constant 0 : i32
    return %c0_i32, %c0_i32_0 : i32, i32
  }
  func.func @transform_5(%arg0: i32) -> (i32, i32) {
    %c0_i32 = arith.constant 0 : i32
    %c0_i32_0 = arith.constant 0 : i32
    %c0_i32_1 = arith.constant 0 : i32
    return %c0_i32, %c0_i32_0 : i32, i32
  }
  func.func @transform_6(%arg0: i32) -> (i32, i32) {
    %c0_i32 = arith.constant 0 : i32
    %c0_i32_0 = arith.constant 0 : i32
    %c0_i32_1 = arith.constant 0 : i32
    return %c0_i32, %c0_i32_0 : i32, i32
  }
  func.func @transform_7(%arg0: i32) -> (i32, i32) {
    %c0_i32 = arith.constant 0 : i32
    %c0_i32_0 = arith.constant 0 : i32
    %c0_i32_1 = arith.constant 0 : i32
    return %c0_i32, %c0_i32_0 : i32, i32
  }
  func.func @transform_8(%arg0: i32) -> (i32, i32) {
    %c0_i32 = arith.constant 0 : i32
    %c0_i32_0 = arith.constant 0 : i32
    %c0_i32_1 = arith.constant 0 : i32
    return %c0_i32, %c0_i32_0 : i32, i32
  }
}

</mosaic_0001>

<llo_original>
// kernel: deeplog_gru_forward.1
$region0: #{deeplog_gru_forward.1}
  #allocation0 [shape = 'u32[]', space=smem, size = 0x4, offset = 0x4, fixed_abs, tag = 'smem constant byte address 0x4 - core index']
  #allocation1 [shape = 'u32[144,128]{1,0:T(1,128)}', space=vmem, size = 0x12000, scoped, tag = 'internal scratch']
  %s0 = inlined_call_operand.vmem [shape: f32[2,8,16], index: 0, kind: input, shape index: {}]
  %s1 = inlined_call_operand.vmem [shape: f32[16,96], index: 1, kind: input, shape index: {}]
  %s2 = inlined_call_operand.hbm [shape: f32[3,32,96], index: 2, kind: input, shape index: {}]
  %s3 = inlined_call_operand.hbm [shape: f32[4,32,96], index: 3, kind: input, shape index: {}]
  %s4 = inlined_call_operand.vmem [shape: f32[4,96], index: 4, kind: input, shape index: {}]
  %s5 = inlined_call_operand.vmem [shape: f32[4,96], index: 5, kind: input, shape index: {}]
  %s6 = inlined_call_operand.vmem [shape: f32[32,2], index: 6, kind: input, shape index: {}]
  %s7 = inlined_call_operand.vmem [shape: f32[1,2], index: 7, kind: input, shape index: {}]
  %s8 = inlined_call_operand.hbm [shape: f32[2,2], index: 8, kind: output, shape index: {}]
  %s9 = sld [smem:[#allocation0]]
  $region50: #{deeplog_gru_forward.1} parent=0
    _
  %s11 = ssub.s32 1, %s9
  %s12 = scalar_select 0, %s11, %s9
  $region1: #{deeplog_gru_forward.1} parent=0
    #allocation2 [shape = 'u8[49152]{0}', space=vmem, size = 0xc000, scoped, tag = 'input window, operand 2, single buffered']
    #allocation3 [shape = 's32[1]{0}', space=sflag, size = 0x4, scoped, tag = 'scoped memory for deeplog_gru_forward.1']
    #allocation4 [shape = 's32[1]{0}', space=sflag, size = 0x4, scoped, tag = 'scoped memory for deeplog_gru_forward.1']
    #allocation5 [shape = 'u8[65536]{0}', space=vmem, size = 0x10000, scoped, tag = 'input window, operand 3, single buffered']
    #allocation6 [shape = 's32[1]{0}', space=sflag, size = 0x4, scoped, tag = 'scoped memory for deeplog_gru_forward.1']
    #allocation7 [shape = 'u8[1024]{0}', space=vmem, size = 0x400, scoped, tag = 'output window, operand 0, single buffered']
    %13 = vsyncpa [#allocation3], 0
    %14 = vsyncpa [#allocation6], 0
    %15 = vsyncpa [#allocation4], 0
    // Predicated region
    $region2: #{deeplog_gru_forward.1} parent=1 // pred_check
      _
    $region3: #{deeplog_gru_forward.1} parent=1 // pred_check_branch
      %17 = sbr.rel (0) target = $region5
    $region4: #{deeplog_gru_forward.1} parent=1 // pred_region
      _
    $region5: #{deeplog_gru_forward.1} parent=1 // pred_fallthru
      _
    // Predicated region
    $region6: #{deeplog_gru_forward.1} parent=1 // pred_check
      _
    $region7: #{deeplog_gru_forward.1} parent=1 // pred_check_branch
      %19 = sbr.rel (0) target = $region9
    $region8: #{deeplog_gru_forward.1} parent=1 // pred_region
      _
    $region9: #{deeplog_gru_forward.1} parent=1 // pred_fallthru
      _
    // Predicated region
    $region10: #{deeplog_gru_forward.1} parent=1 // pred_check
      _
    $region11: #{deeplog_gru_forward.1} parent=1 // pred_check_branch
      %21 = sbr.rel (0) target = $region13
    $region12: #{deeplog_gru_forward.1} parent=1 // pred_region
      %s23 = ssub.s32 1536, 1536
      %24 = vsyncadd [#allocation3], %s23
      %s25 = sshll.u32 [#allocation2], 4
      %s26 = int_to_ptr.vmem [resolvable:$true] %s25
      %31 = dma.hbm_to_vmem [thread:$0]  %s2, 1536, %s26, [#allocation3], 128, 128, 8
    $region13: #{deeplog_gru_forward.1} parent=1 // pred_fallthru
      _
    // Predicated region
    $region14: #{deeplog_gru_forward.1} parent=1 // pred_check
      _
    $region15: #{deeplog_gru_forward.1} parent=1 // pred_check_branch
      %33 = sbr.rel (0) target = $region17
    $region16: #{deeplog_gru_forward.1} parent=1 // pred_region
      %s35 = ssub.s32 2048, 2048
      %36 = vsyncadd [#allocation6], %s35
      %s37 = sshll.u32 [#allocation5], 4
      %s38 = int_to_ptr.vmem [resolvable:$true] %s37
      %43 = dma.hbm_to_vmem [thread:$0]  %s3, 2048, %s38, [#allocation6], 128, 128, 8
    $region17: #{deeplog_gru_forward.1} parent=1 // pred_fallthru
      _
    // Predicated region
    $region18: #{deeplog_gru_forward.1} parent=1 // pred_check
      _
    $region19: #{deeplog_gru_forward.1} parent=1 // pred_check_branch
      %45 = sbr.rel (0) target = $region21
    $region20: #{deeplog_gru_forward.1} parent=1 // pred_region
      _
    $region21: #{deeplog_gru_forward.1} parent=1 // pred_fallthru
      _
    // Predicated region
    $region22: #{deeplog_gru_forward.1} parent=1 // pred_check
      _
    $region23: #{deeplog_gru_forward.1} parent=1 // pred_check_branch
      %47 = sbr.rel (0) target = $region25
    $region24: #{deeplog_gru_forward.1} parent=1 // pred_region
      _
    $region25: #{deeplog_gru_forward.1} parent=1 // pred_fallthru
      _
    // Predicated region
    $region26: #{deeplog_gru_forward.1} parent=1 // pred_check
      _
    $region27: #{deeplog_gru_forward.1} parent=1 // pred_check_branch
      %49 = sbr.rel (0) target = $region29
    $region28: #{deeplog_gru_forward.1} parent=1 // pred_region
      _
    $region29: #{deeplog_gru_forward.1} parent=1 // pred_fallthru
      _
    // Predicated region
    $region30: #{deeplog_gru_forward.1} parent=1 // pred_check
      _
    $region31: #{deeplog_gru_forward.1} parent=1 // pred_check_branch
      %51 = sbr.rel (0) target = $region33
    $region32: #{deeplog_gru_forward.1} parent=1 // pred_region
      _
    $region33: #{deeplog_gru_forward.1} parent=1 // pred_fallthru
      _
    // Predicated region
    $region34: #{deeplog_gru_forward.1} parent=1 // pred_check
      _
    $region35: #{deeplog_gru_forward.1} parent=1 // pred_check_branch
      %53 = sbr.rel (0) target = $region37
    $region36: #{deeplog_gru_forward.1} parent=1 // pred_region
      %54 = dma.done [#allocation3], 1536
    $region37: #{deeplog_gru_forward.1} parent=1 // pred_fallthru
      _
    // Predicated region
    $region38: #{deeplog_gru_forward.1} parent=1 // pred_check
      _
    $region39: #{deeplog_gru_forward.1} parent=1 // pred_check_branch
      %56 = sbr.rel (0) target = $region41
    $region40: #{deeplog_gru_forward.1} parent=1 // pred_region
      %57 = dma.done [#allocation6], 2048
    $region41: #{deeplog_gru_forward.1} parent=1 // pred_fallthru
      _
    %v58 = vld [vmem:[%s0] sm:$0xff]
    %v59 = vld [vmem:[%s0 + $0x8] sm:$0xff]
    %v60 = vld [vmem:[%s1] sm:$0xff]
    %v61 = vld [vmem:[%s1 + $0x8] sm:$0xff]
    %v62 = vld [vmem:[%s4] sm:$0x1]
    %v63 = vlaneseq
    %v64 = vshrl.u32 %v63, 7
    %v65 = vsub.s32 0, %v64
    %v66 = vrot.slane %v62, %v65
    %vm67 = vcmask 130048
    %v69 = vsel %vm67, %v58, 0
    %v72 = vsel %vm67, %v59, 0
    %74 = vmatprep.subr.mxu0 0.0
    %75 = vmatpush1.msra.mxu0 %v60
    %76 = vmatprep.subr.mxu0 0.0
    %77 = vmatpush1.msra.mxu0 %v61
    %78 = vmatprep.subr.mxu0 0.0
    %79 = vmatpush1.msra.mxu0 0.0
    %80 = vmatprep.subr.mxu0 0.0
    %81 = vmatpush1.msra.mxu0 0.0
    %82 = vmatprep.subr.mxu0 0.0
    %83 = vmatpush1.msra.mxu0 0.0
    %84 = vmatprep.subr.mxu0 0.0
    %85 = vmatpush1.msra.mxu0 0.0
    %86 = vmatprep.subr.mxu0 0.0
    %87 = vmatpush1.msra.mxu0 0.0
    %88 = vmatprep.subr.mxu0 0.0
    %89 = vmatpush1.msra.mxu0 0.0
    %90 = vmatprep.subr.mxu0 0.0
    %91 = vmatpush1.msra.mxu0 0.0
    %92 = vmatprep.subr.mxu0 0.0
    %93 = vmatpush1.msra.mxu0 0.0
    %94 = vmatprep.subr.mxu0 0.0
    %95 = vmatpush1.msra.mxu0 0.0
    %96 = vmatprep.subr.mxu0 0.0
    %97 = vmatpush1.msra.mxu0 0.0
    %98 = vmatprep.subr.mxu0 0.0
    %99 = vmatpush1.msra.mxu0 0.0
    %100 = vmatprep.subr.mxu0 0.0
    %101 = vmatpush1.msra.mxu0 0.0
    %102 = vmatprep.subr.mxu0 0.0
    %103 = vmatpush1.msra.mxu0 0.0
    %104 = vmatprep.subr.mxu0 0.0
    %105 = vmatpush1.msra.mxu0 0.0
    %106 = vmatprep.subr.mxu0 0.0
    %107 = vmatpush1.msra.mxu0 0.0
    %108 = vmatprep.subr.mxu0 0.0
    %109 = vmatpush1.msra.mxu0 0.0
    %110 = vmatprep.subr.mxu0 0.0
    %111 = vmatpush1.msra.mxu0 0.0
    %112 = vmatprep.subr.mxu0 0.0
    %113 = vmatpush1.msra.mxu0 0.0
    %114 = vmatprep.subr.mxu0 0.0
    %115 = vmatpush1.msra.mxu0 0.0
    %116 = vmatprep.subr.mxu0 0.0
    %117 = vmatpush1.msra.mxu0 0.0
    %118 = vmatprep.subr.mxu0 0.0
    %119 = vmatpush1.msra.mxu0 0.0
    %120 = vmatprep.subr.mxu0 0.0
    %121 = vmatpush1.msra.mxu0 0.0
    %122 = vmatprep.subr.mxu0 0.0
    %123 = vmatpush1.msra.mxu0 0.0
    %124 = vmatprep.subr.mxu0 0.0
    %125 = vmatpush1.msra.mxu0 0.0
    %126 = vmatprep.subr.mxu0 0.0
    %127 = vmatpush1.msra.mxu0 0.0
    %128 = vmatprep.subr.mxu0 0.0
    %129 = vmatpush1.msra.mxu0 0.0
    %130 = vmatprep.subr.mxu0 0.0
    %131 = vmatpush1.msra.mxu0 0.0
    %132 = vmatprep.subr.mxu0 0.0
    %133 = vmatpush1.msra.mxu0 0.0
    %134 = vmatprep.subr.mxu0 0.0
    %135 = vmatpush1.msra.mxu0 0.0
    %136 = vmatprep.subr.mxu0 0.0
    %137 = vmatpush1.msra.mxu0 0.0
    %138 = vmatprep.mubr.f32.mxu0 0.0
    %139 = vmatmul.mubr.f32.gmra.mrb[0].mxu0 %v69
    %v140 = vpop.f32.mrb[0].mxu0
    %v141 = vadd.f32 %v66, %v140
    %v142 = vpop.f32.mrb[0].mxu0
    %143 = vmatprep.mubr.f32.mxu0 0.0
    %144 = vmatmul.mubr.f32.gmra.mrb[0].mxu0 %v72
    %v145 = vpop.f32.mrb[0].mxu0
    %v146 = vadd.f32 %v66, %v145
    %v147 = vpop.f32.mrb[0].mxu0
    %148 = vdwg.mxu0
    %v149 = vld [vmem:[#allocation5] sm:$0xff]
    %v150 = vld [vmem:[#allocation5 + $0x8] sm:$0xff]
    %v151 = vld [vmem:[#allocation5 + $0x10] sm:$0xff]
    %v152 = vld [vmem:[#allocation5 + $0x18] sm:$0xff]
    %v153 = vld [vmem:[%s5] sm:$0x1]
    %v154 = vlaneseq
    %v155 = vshrl.u32 %v154, 7
    %v156 = vsub.s32 0, %v155
    %v157 = vrot.slane %v153, %v156
    %vm158 = vcmask 261120
    %v160 = vsel %vm158, 0.0, 0
    %162 = vmatprep.subr.mxu0 0.0
    %163 = vmatpush1.msra.mxu0 %v149
    %164 = vmatprep.subr.mxu0 0.0
    %165 = vmatpush1.msra.mxu0 %v150
    %166 = vmatprep.subr.mxu0 0.0
    %167 = vmatpush1.msra.mxu0 %v151
    %168 = vmatprep.subr.mxu0 0.0
    %169 = vmatpush1.msra.mxu0 %v152
    %170 = vmatprep.subr.mxu0 0.0
    %171 = vmatpush1.msra.mxu0 0.0
    %172 = vmatprep.subr.mxu0 0.0
    %173 = vmatpush1.msra.mxu0 0.0
    %174 = vmatprep.subr.mxu0 0.0
    %175 = vmatpush1.msra.mxu0 0.0
    %176 = vmatprep.subr.mxu0 0.0
    %177 = vmatpush1.msra.mxu0 0.0
    %178 = vmatprep.subr.mxu0 0.0
    %179 = vmatpush1.msra.mxu0 0.0
    %180 = vmatprep.subr.mxu0 0.0
    %181 = vmatpush1.msra.mxu0 0.0
    %182 = vmatprep.subr.mxu0 0.0
    %183 = vmatpush1.msra.mxu0 0.0
    %184 = vmatprep.subr.mxu0 0.0
    %185 = vmatpush1.msra.mxu0 0.0
    %186 = vmatprep.subr.mxu0 0.0
    %187 = vmatpush1.msra.mxu0 0.0
    %188 = vmatprep.subr.mxu0 0.0
    %189 = vmatpush1.msra.mxu0 0.0
    %190 = vmatprep.subr.mxu0 0.0
    %191 = vmatpush1.msra.mxu0 0.0
    %192 = vmatprep.subr.mxu0 0.0
    %193 = vmatpush1.msra.mxu0 0.0
    %194 = vmatprep.subr.mxu0 0.0
    %195 = vmatpush1.msra.mxu0 0.0
    %196 = vmatprep.subr.mxu0 0.0
    %197 = vmatpush1.msra.mxu0 0.0
    %198 = vmatprep.subr.mxu0 0.0
    %199 = vmatpush1.msra.mxu0 0.0
    %200 = vmatprep.subr.mxu0 0.0
    %201 = vmatpush1.msra.mxu0 0.0
    %202 = vmatprep.subr.mxu0 0.0
    %203 = vmatpush1.msra.mxu0 0.0
    %204 = vmatprep.subr.mxu0 0.0
    %205 = vmatpush1.msra.mxu0 0.0
    %206 = vmatprep.subr.mxu0 0.0
    %207 = vmatpush1.msra.mxu0 0.0
    %208 = vmatprep.subr.mxu0 0.0
    %209 = vmatpush1.msra.mxu0 0.0
    %210 = vmatprep.subr.mxu0 0.0
    %211 = vmatpush1.msra.mxu0 0.0
    %212 = vmatprep.subr.mxu0 0.0
    %213 = vmatpush1.msra.mxu0 0.0
    %214 = vmatprep.subr.mxu0 0.0
    %215 = vmatpush1.msra.mxu0 0.0
    %216 = vmatprep.subr.mxu0 0.0
    %217 = vmatpush1.msra.mxu0 0.0
    %218 = vmatprep.subr.mxu0 0.0
    %219 = vmatpush1.msra.mxu0 0.0
    %220 = vmatprep.subr.mxu0 0.0
    %221 = vmatpush1.msra.mxu0 0.0
    %222 = vmatprep.subr.mxu0 0.0
    %223 = vmatpush1.msra.mxu0 0.0
    %224 = vmatprep.subr.mxu0 0.0
    %225 = vmatpush1.msra.mxu0 0.0
    %226 = vmatprep.mubr.f32.mxu0 0.0
    %227 = vmatmul.mubr.f32.gmra.mrb[0].mxu0 %v160
    %v228 = vpop.f32.mrb[0].mxu0
    %v229 = vadd.f32 %v157, %v228
    %v230 = vpop.f32.mrb[0].mxu0
    %231 = vdwg.mxu0
    %v233 = vrot.slane %v229, 1
    %v236 = vadd.f32 %v141, %v229
    %v237 = vadd.f32 %v146, %v233
    %v238 = vxor.u32 %v236, 2147483648
    %v239 = vxor.u32 %v237, 2147483648
    %v240 = vmul.f32 %v238, 1.442695
    %v241 = vpow.pop %v240
    %v242 = vmul.f32 %v239, 1.442695
    %v243 = vpow.pop %v242
    %v244 = vadd.f32 %v241, 1.0
    %v245 = vadd.f32 %v243, 1.0
    %v246 = vrcp.pop %v244
    %v247 = vmul.f32 1.0, %v246
    %v248 = vrcp.pop %v245
    %v249 = vmul.f32 1.0, %v248
    %250 = vrot.lane.b32.xlu0 %v229, 64
    %v251 = vpop.permute.xlu0 %250
    %252 = vrot.lane.b32.xlu0 %v233, 64
    %v253 = vpop.permute.xlu0 %252
    %v256 = vmul.f32 %v247, %v251
    %v257 = vmul.f32 %v249, %v253
    %260 = vrot.lane.b32.xlu0 %v256, 64
    %v261 = vpop.permute.xlu0 %260
    %262 = vrot.lane.b32.xlu0 %v257, 64
    %v263 = vpop.permute.xlu0 %262
    %v266 = vadd.f32 %v141, %v261
    %v267 = vadd.f32 %v146, %v263
    %v268 = vtanh.pop %v266
    %v269 = vtanh.pop %v267
    %v270 = vsub.f32 1.0, %v247
    %v271 = vsub.f32 1.0, %v249
    %274 = vrot.lane.b32.xlu0 %v268, 96
    %v275 = vpop.permute.xlu0 %274
    %276 = vrot.lane.b32.xlu0 %v269, 96
    %v277 = vpop.permute.xlu0 %276
    %v280 = vmul.f32 %v270, %v275
    %v281 = vmul.f32 %v271, %v277
    %v282 = vmul.f32 %v247, 0.0
    %v283 = vmul.f32 %v249, 0.0
    %v284 = vadd.f32 %v280, %v282
    %v285 = vadd.f32 %v281, %v283
    %v288 = vrot.slane %v285, 7
    %vm289 = vcmask 1041409
    %v290 = vsel %vm289, %v288, %v284
    %291 = vrot.lane.b32.xlu0 %v290, 96
    %v292 = vpop.permute.xlu0 %291
    %v293 = vsel %vm158, %v292, 0
    %295 = vmatprep.subr.mxu0 0.0
    %296 = vmatpush1.msra.mxu0 %v149
    %297 = vmatprep.subr.mxu0 0.0
    %298 = vmatpush1.msra.mxu0 %v150
    %299 = vmatprep.subr.mxu0 0.0
    %300 = vmatpush1.msra.mxu0 %v151
    %301 = vmatprep.subr.mxu0 0.0
    %302 = vmatpush1.msra.mxu0 %v152
    %303 = vmatprep.subr.mxu0 0.0
    %304 = vmatpush1.msra.mxu0 0.0
    %305 = vmatprep.subr.mxu0 0.0
    %306 = vmatpush1.msra.mxu0 0.0
    %307 = vmatprep.subr.mxu0 0.0
    %308 = vmatpush1.msra.mxu0 0.0
    %309 = vmatprep.subr.mxu0 0.0
    %310 = vmatpush1.msra.mxu0 0.0
    %311 = vmatprep.subr.mxu0 0.0
    %312 = vmatpush1.msra.mxu0 0.0
    %313 = vmatprep.subr.mxu0 0.0
    %314 = vmatpush1.msra.mxu0 0.0
    %315 = vmatprep.subr.mxu0 0.0
    %316 = vmatpush1.msra.mxu0 0.0
    %317 = vmatprep.subr.mxu0 0.0
    %318 = vmatpush1.msra.mxu0 0.0
    %319 = vmatprep.subr.mxu0 0.0
    %320 = vmatpush1.msra.mxu0 0.0
    %321 = vmatprep.subr.mxu0 0.0
    %322 = vmatpush1.msra.mxu0 0.0
    %323 = vmatprep.subr.mxu0 0.0
    %324 = vmatpush1.msra.mxu0 0.0
    %325 = vmatprep.subr.mxu0 0.0
    %326 = vmatpush1.msra.mxu0 0.0
    %327 = vmatprep.subr.mxu0 0.0
    %328 = vmatpush1.msra.mxu0 0.0
    %329 = vmatprep.subr.mxu0 0.0
    %330 = vmatpush1.msra.mxu0 0.0
    %331 = vmatprep.subr.mxu0 0.0
    %332 = vmatpush1.msra.mxu0 0.0
    %333 = vmatprep.subr.mxu0 0.0
    %334 = vmatpush1.msra.mxu0 0.0
    %335 = vmatprep.subr.mxu0 0.0
    %336 = vmatpush1.msra.mxu0 0.0
    %337 = vmatprep.subr.mxu0 0.0
    %338 = vmatpush1.msra.mxu0 0.0
    %339 = vmatprep.subr.mxu0 0.0
    %340 = vmatpush1.msra.mxu0 0.0
    %341 = vmatprep.subr.mxu0 0.0
    %342 = vmatpush1.msra.mxu0 0.0
    %343 = vmatprep.subr.mxu0 0.0
    %344 = vmatpush1.msra.mxu0 0.0
    %345 = vmatprep.subr.mxu0 0.0
    %346 = vmatpush1.msra.mxu0 0.0
    %347 = vmatprep.subr.mxu0 0.0
    %348 = vmatpush1.msra.mxu0 0.0
    %349 = vmatprep.subr.mxu0 0.0
    %350 = vmatpush1.msra.mxu0 0.0
    %351 = vmatprep.subr.mxu0 0.0
    %352 = vmatpush1.msra.mxu0 0.0
    %353 = vmatprep.subr.mxu0 0.0
    %354 = vmatpush1.msra.mxu0 0.0
    %355 = vmatprep.subr.mxu0 0.0
    %356 = vmatpush1.msra.mxu0 0.0
    %357 = vmatprep.subr.mxu0 0.0
    %358 = vmatpush1.msra.mxu0 0.0
    %359 = vmatprep.mubr.f32.mxu0 0.0
    %360 = vmatmul.mubr.f32.gmra.mrb[0].mxu0 %v293
    %v361 = vpop.f32.mrb[0].mxu0
    %v362 = vadd.f32 %v157, %v361
    %v363 = vpop.f32.mrb[0].mxu0
    %364 = vdwg.mxu0
    %v366 = vrot.slane %v362, 7
    %v369 = vadd.f32 %v141, %v366
    %v370 = vadd.f32 %v146, %v362
    %v371 = vxor.u32 %v369, 2147483648
    %v372 = vxor.u32 %v370, 2147483648
    %v373 = vmul.f32 %v371, 1.442695
    %v374 = vpow.pop %v373
    %v375 = vmul.f32 %v372, 1.442695
    %v376 = vpow.pop %v375
    %v377 = vadd.f32 %v374, 1.0
    %v378 = vadd.f32 %v376, 1.0
    %v379 = vrcp.pop %v377
    %v380 = vmul.f32 1.0, %v379
    %v381 = vrcp.pop %v378
    %v382 = vmul.f32 1.0, %v381
    %383 = vrot.lane.b32.xlu0 %v366, 64
    %v384 = vpop.permute.xlu0 %383
    %385 = vrot.lane.b32.xlu0 %v362, 64
    %v386 = vpop.permute.xlu0 %385
    %v389 = vmul.f32 %v380, %v384
    %v390 = vmul.f32 %v382, %v386
    %393 = vrot.lane.b32.xlu0 %v389, 64
    %v394 = vpop.permute.xlu0 %393
    %395 = vrot.lane.b32.xlu0 %v390, 64
    %v396 = vpop.permute.xlu0 %395
    %v399 = vadd.f32 %v141, %v394
    %v400 = vadd.f32 %v146, %v396
    %v401 = vtanh.pop %v399
    %v402 = vtanh.pop %v400
    %v403 = vsub.f32 1.0, %v380
    %v404 = vsub.f32 1.0, %v382
    %407 = vrot.lane.b32.xlu0 %v401, 96
    %v408 = vpop.permute.xlu0 %407
    %409 = vrot.lane.b32.xlu0 %v402, 96
    %v410 = vpop.permute.xlu0 %409
    %v413 = vmul.f32 %v403, %v408
    %v414 = vmul.f32 %v404, %v410
    %v415 = vrot.slane %v284, 7
    %v418 = vmul.f32 %v380, %v415
    %v419 = vmul.f32 %v382, %v288
    %v420 = vadd.f32 %v413, %v418
    %v421 = vadd.f32 %v414, %v419
    %v424 = vrot.slane %v420, 1
    %v425 = vsel %vm289, %v421, %v424
    %426 = vrot.lane.b32.xlu0 %v425, 96
    %v427 = vpop.permute.xlu0 %426
    %v428 = vsel %vm158, %v427, 0
    %430 = vmatprep.subr.mxu0 0.0
    %431 = vmatpush1.msra.mxu0 %v149
    %432 = vmatprep.subr.mxu0 0.0
    %433 = vmatpush1.msra.mxu0 %v150
    %434 = vmatprep.subr.mxu0 0.0
    %435 = vmatpush1.msra.mxu0 %v151
    %436 = vmatprep.subr.mxu0 0.0
    %437 = vmatpush1.msra.mxu0 %v152
    %438 = vmatprep.subr.mxu0 0.0
    %439 = vmatpush1.msra.mxu0 0.0
    %440 = vmatprep.subr.mxu0 0.0
    %441 = vmatpush1.msra.mxu0 0.0
    %442 = vmatprep.subr.mxu0 0.0
    %443 = vmatpush1.msra.mxu0 0.0
    %444 = vmatprep.subr.mxu0 0.0
    %445 = vmatpush1.msra.mxu0 0.0
    %446 = vmatprep.subr.mxu0 0.0
    %447 = vmatpush1.msra.mxu0 0.0
    %448 = vmatprep.subr.mxu0 0.0
    %449 = vmatpush1.msra.mxu0 0.0
    %450 = vmatprep.subr.mxu0 0.0
    %451 = vmatpush1.msra.mxu0 0.0
    %452 = vmatprep.subr.mxu0 0.0
    %453 = vmatpush1.msra.mxu0 0.0
    %454 = vmatprep.subr.mxu0 0.0
    %455 = vmatpush1.msra.mxu0 0.0
    %456 = vmatprep.subr.mxu0 0.0
    %457 = vmatpush1.msra.mxu0 0.0
    %458 = vmatprep.subr.mxu0 0.0
    %459 = vmatpush1.msra.mxu0 0.0
    %460 = vmatprep.subr.mxu0 0.0
    %461 = vmatpush1.msra.mxu0 0.0
    %462 = vmatprep.subr.mxu0 0.0
    %463 = vmatpush1.msra.mxu0 0.0
    %464 = vmatprep.subr.mxu0 0.0
    %465 = vmatpush1.msra.mxu0 0.0
    %466 = vmatprep.subr.mxu0 0.0
    %467 = vmatpush1.msra.mxu0 0.0
    %468 = vmatprep.subr.mxu0 0.0
    %469 = vmatpush1.msra.mxu0 0.0
    %470 = vmatprep.subr.mxu0 0.0
    %471 = vmatpush1.msra.mxu0 0.0
    %472 = vmatprep.subr.mxu0 0.0
    %473 = vmatpush1.msra.mxu0 0.0
    %474 = vmatprep.subr.mxu0 0.0
    %475 = vmatpush1.msra.mxu0 0.0
    %476 = vmatprep.subr.mxu0 0.0
    %477 = vmatpush1.msra.mxu0 0.0
    %478 = vmatprep.subr.mxu0 0.0
    %479 = vmatpush1.msra.mxu0 0.0
    %480 = vmatprep.subr.mxu0 0.0
    %481 = vmatpush1.msra.mxu0 0.0
    %482 = vmatprep.subr.mxu0 0.0
    %483 = vmatpush1.msra.mxu0 0.0
    %484 = vmatprep.subr.mxu0 0.0
    %485 = vmatpush1.msra.mxu0 0.0
    %486 = vmatprep.subr.mxu0 0.0
    %487 = vmatpush1.msra.mxu0 0.0
    %488 = vmatprep.subr.mxu0 0.0
    %489 = vmatpush1.msra.mxu0 0.0
    %490 = vmatprep.subr.mxu0 0.0
    %491 = vmatpush1.msra.mxu0 0.0
    %492 = vmatprep.subr.mxu0 0.0
    %493 = vmatpush1.msra.mxu0 0.0
    %494 = vmatprep.mubr.f32.mxu0 0.0
    %495 = vmatmul.mubr.f32.gmra.mrb[0].mxu0 %v428
    %v496 = vpop.f32.mrb[0].mxu0
    %v497 = vadd.f32 %v157, %v496
    %v498 = vpop.f32.mrb[0].mxu0
    %499 = vdwg.mxu0
    %v501 = vrot.slane %v497, 6
    %v502 = vrot.slane %v497, 7
    %v505 = vadd.f32 %v141, %v501
    %v506 = vadd.f32 %v146, %v502
    %v507 = vxor.u32 %v505, 2147483648
    %v508 = vxor.u32 %v506, 2147483648
    %v509 = vmul.f32 %v507, 1.442695
    %v510 = vpow.pop %v509
    %v511 = vmul.f32 %v508, 1.442695
    %v512 = vpow.pop %v511
    %v513 = vadd.f32 %v510, 1.0
    %v514 = vadd.f32 %v512, 1.0
    %v515 = vrcp.pop %v513
    %v516 = vmul.f32 1.0, %v515
    %v517 = vrcp.pop %v514
    %v518 = vmul.f32 1.0, %v517
    %519 = vrot.lane.b32.xlu0 %v501, 64
    %v520 = vpop.permute.xlu0 %519
    %521 = vrot.lane.b32.xlu0 %v502, 64
    %v522 = vpop.permute.xlu0 %521
    %v525 = vmul.f32 %v516, %v520
    %v526 = vmul.f32 %v518, %v522
    %529 = vrot.lane.b32.xlu0 %v525, 64
    %v530 = vpop.permute.xlu0 %529
    %531 = vrot.lane.b32.xlu0 %v526, 64
    %v532 = vpop.permute.xlu0 %531
    %v535 = vadd.f32 %v141, %v530
    %v536 = vadd.f32 %v146, %v532
    %v537 = vtanh.pop %v535
    %v538 = vtanh.pop %v536
    %v539 = vsub.f32 1.0, %v516
    %v540 = vsub.f32 1.0, %v518
    %543 = vrot.lane.b32.xlu0 %v537, 96
    %v544 = vpop.permute.xlu0 %543
    %545 = vrot.lane.b32.xlu0 %v538, 96
    %v546 = vpop.permute.xlu0 %545
    %v549 = vmul.f32 %v539, %v544
    %v550 = vmul.f32 %v540, %v546
    %v551 = vrot.slane %v420, 7
    %v552 = vrot.slane %v421, 7
    %v555 = vmul.f32 %v516, %v551
    %v556 = vmul.f32 %v518, %v552
    %v557 = vadd.f32 %v549, %v555
    %v558 = vadd.f32 %v550, %v556
    %v561 = vrot.slane %v557, 2
    %v562 = vrot.slane %v558, 1
    %v563 = vsel %vm289, %v562, %v561
    %564 = vrot.lane.b32.xlu0 %v563, 96
    %v565 = vpop.permute.xlu0 %564
    %v566 = vsel %vm158, %v565, 0
    %568 = vmatprep.subr.mxu0 0.0
    %569 = vmatpush1.msra.mxu0 %v149
    %570 = vmatprep.subr.mxu0 0.0
    %571 = vmatpush1.msra.mxu0 %v150
    %572 = vmatprep.subr.mxu0 0.0
    %573 = vmatpush1.msra.mxu0 %v151
    %574 = vmatprep.subr.mxu0 0.0
    %575 = vmatpush1.msra.mxu0 %v152
    %576 = vmatprep.subr.mxu0 0.0
    %577 = vmatpush1.msra.mxu0 0.0
    %578 = vmatprep.subr.mxu0 0.0
    %579 = vmatpush1.msra.mxu0 0.0
    %580 = vmatprep.subr.mxu0 0.0
    %581 = vmatpush1.msra.mxu0 0.0
    %582 = vmatprep.subr.mxu0 0.0
    %583 = vmatpush1.msra.mxu0 0.0
    %584 = vmatprep.subr.mxu0 0.0
    %585 = vmatpush1.msra.mxu0 0.0
    %586 = vmatprep.subr.mxu0 0.0
    %587 = vmatpush1.msra.mxu0 0.0
    %588 = vmatprep.subr.mxu0 0.0
    %589 = vmatpush1.msra.mxu0 0.0
    %590 = vmatprep.subr.mxu0 0.0
    %591 = vmatpush1.msra.mxu0 0.0
    %592 = vmatprep.subr.mxu0 0.0
    %593 = vmatpush1.msra.mxu0 0.0
    %594 = vmatprep.subr.mxu0 0.0
    %595 = vmatpush1.msra.mxu0 0.0
    %596 = vmatprep.subr.mxu0 0.0
    %597 = vmatpush1.msra.mxu0 0.0
    %598 = vmatprep.subr.mxu0 0.0
    %599 = vmatpush1.msra.mxu0 0.0
    %600 = vmatprep.subr.mxu0 0.0
    %601 = vmatpush1.msra.mxu0 0.0
    %602 = vmatprep.subr.mxu0 0.0
    %603 = vmatpush1.msra.mxu0 0.0
    %604 = vmatprep.subr.mxu0 0.0
    %605 = vmatpush1.msra.mxu0 0.0
    %606 = vmatprep.subr.mxu0 0.0
    %607 = vmatpush1.msra.mxu0 0.0
    %608 = vmatprep.subr.mxu0 0.0
    %609 = vmatpush1.msra.mxu0 0.0
    %610 = vmatprep.subr.mxu0 0.0
    %611 = vmatpush1.msra.mxu0 0.0
    %612 = vmatprep.subr.mxu0 0.0
    %613 = vmatpush1.msra.mxu0 0.0
    %614 = vmatprep.subr.mxu0 0.0
    %615 = vmatpush1.msra.mxu0 0.0
    %616 = vmatprep.subr.mxu0 0.0
    %617 = vmatpush1.msra.mxu0 0.0
    %618 = vmatprep.subr.mxu0 0.0
    %619 = vmatpush1.msra.mxu0 0.0
    %620 = vmatprep.subr.mxu0 0.0
    %621 = vmatpush1.msra.mxu0 0.0
    %622 = vmatprep.subr.mxu0 0.0
    %623 = vmatpush1.msra.mxu0 0.0
    %624 = vmatprep.subr.mxu0 0.0
    %625 = vmatpush1.msra.mxu0 0.0
    %626 = vmatprep.subr.mxu0 0.0
    %627 = vmatpush1.msra.mxu0 0.0
    %628 = vmatprep.subr.mxu0 0.0
    %629 = vmatpush1.msra.mxu0 0.0
    %630 = vmatprep.subr.mxu0 0.0
    %631 = vmatpush1.msra.mxu0 0.0
    %632 = vmatprep.mubr.f32.mxu0 0.0
    %633 = vmatmul.mubr.f32.gmra.mrb[0].mxu0 %v566
    %v634 = vpop.f32.mrb[0].mxu0
    %v635 = vadd.f32 %v157, %v634
    %v636 = vpop.f32.mrb[0].mxu0
    %637 = vdwg.mxu0
    %v639 = vrot.slane %v635, 5
    %v640 = vrot.slane %v635, 6
    %v643 = vadd.f32 %v141, %v639
    %v644 = vadd.f32 %v146, %v640
    %v645 = vxor.u32 %v643, 2147483648
    %v646 = vxor.u32 %v644, 2147483648
    %v647 = vmul.f32 %v645, 1.442695
    %v648 = vpow.pop %v647
    %v649 = vmul.f32 %v646, 1.442695
    %v650 = vpow.pop %v649
    %v651 = vadd.f32 %v648, 1.0
    %v652 = vadd.f32 %v650, 1.0
    %v653 = vrcp.pop %v651
    %v654 = vmul.f32 1.0, %v653
    %v655 = vrcp.pop %v652
    %v656 = vmul.f32 1.0, %v655
    %657 = vrot.lane.b32.xlu0 %v639, 64
    %v658 = vpop.permute.xlu0 %657
    %659 = vrot.lane.b32.xlu0 %v640, 64
    %v660 = vpop.permute.xlu0 %659
    %v663 = vmul.f32 %v654, %v658
    %v664 = vmul.f32 %v656, %v660
    %667 = vrot.lane.b32.xlu0 %v663, 64
    %v668 = vpop.permute.xlu0 %667
    %669 = vrot.lane.b32.xlu0 %v664, 64
    %v670 = vpop.permute.xlu0 %669
    %v673 = vadd.f32 %v141, %v668
    %v674 = vadd.f32 %v146, %v670
    %v675 = vtanh.pop %v673
    %v676 = vtanh.pop %v674
    %v677 = vsub.f32 1.0, %v654
    %v678 = vsub.f32 1.0, %v656
    %681 = vrot.lane.b32.xlu0 %v675, 96
    %v682 = vpop.permute.xlu0 %681
    %683 = vrot.lane.b32.xlu0 %v676, 96
    %v684 = vpop.permute.xlu0 %683
    %v687 = vmul.f32 %v677, %v682
    %v688 = vmul.f32 %v678, %v684
    %v689 = vrot.slane %v557, 7
    %v690 = vrot.slane %v558, 7
    %v693 = vmul.f32 %v654, %v689
    %v694 = vmul.f32 %v656, %v690
    %v695 = vadd.f32 %v687, %v693
    %v696 = vadd.f32 %v688, %v694
    %v699 = vrot.slane %v695, 3
    %v700 = vrot.slane %v696, 2
    %v701 = vsel %vm289, %v700, %v699
    %702 = vrot.lane.b32.xlu0 %v701, 96
    %v703 = vpop.permute.xlu0 %702
    %v704 = vsel %vm158, %v703, 0
    %706 = vmatprep.subr.mxu0 0.0
    %707 = vmatpush1.msra.mxu0 %v149
    %708 = vmatprep.subr.mxu0 0.0
    %709 = vmatpush1.msra.mxu0 %v150
    %710 = vmatprep.subr.mxu0 0.0
    %711 = vmatpush1.msra.mxu0 %v151
    %712 = vmatprep.subr.mxu0 0.0
    %713 = vmatpush1.msra.mxu0 %v152
    %714 = vmatprep.subr.mxu0 0.0
    %715 = vmatpush1.msra.mxu0 0.0
    %716 = vmatprep.subr.mxu0 0.0
    %717 = vmatpush1.msra.mxu0 0.0
    %718 = vmatprep.subr.mxu0 0.0
    %719 = vmatpush1.msra.mxu0 0.0
    %720 = vmatprep.subr.mxu0 0.0
    %721 = vmatpush1.msra.mxu0 0.0
    %722 = vmatprep.subr.mxu0 0.0
    %723 = vmatpush1.msra.mxu0 0.0
    %724 = vmatprep.subr.mxu0 0.0
    %725 = vmatpush1.msra.mxu0 0.0
    %726 = vmatprep.subr.mxu0 0.0
    %727 = vmatpush1.msra.mxu0 0.0
    %728 = vmatprep.subr.mxu0 0.0
    %729 = vmatpush1.msra.mxu0 0.0
    %730 = vmatprep.subr.mxu0 0.0
    %731 = vmatpush1.msra.mxu0 0.0
    %732 = vmatprep.subr.mxu0 0.0
    %733 = vmatpush1.msra.mxu0 0.0
    %734 = vmatprep.subr.mxu0 0.0
    %735 = vmatpush1.msra.mxu0 0.0
    %736 = vmatprep.subr.mxu0 0.0
    %737 = vmatpush1.msra.mxu0 0.0
    %738 = vmatprep.subr.mxu0 0.0
    %739 = vmatpush1.msra.mxu0 0.0
    %740 = vmatprep.subr.mxu0 0.0
    %741 = vmatpush1.msra.mxu0 0.0
    %742 = vmatprep.subr.mxu0 0.0
    %743 = vmatpush1.msra.mxu0 0.0
    %744 = vmatprep.subr.mxu0 0.0
    %745 = vmatpush1.msra.mxu0 0.0
    %746 = vmatprep.subr.mxu0 0.0
    %747 = vmatpush1.msra.mxu0 0.0
    %748 = vmatprep.subr.mxu0 0.0
    %749 = vmatpush1.msra.mxu0 0.0
    %750 = vmatprep.subr.mxu0 0.0
    %751 = vmatpush1.msra.mxu0 0.0
    %752 = vmatprep.subr.mxu0 0.0
    %753 = vmatpush1.msra.mxu0 0.0
    %754 = vmatprep.subr.mxu0 0.0
    %755 = vmatpush1.msra.mxu0 0.0
    %756 = vmatprep.subr.mxu0 0.0
    %757 = vmatpush1.msra.mxu0 0.0
    %758 = vmatprep.subr.mxu0 0.0
    %759 = vmatpush1.msra.mxu0 0.0
    %760 = vmatprep.subr.mxu0 0.0
    %761 = vmatpush1.msra.mxu0 0.0
    %762 = vmatprep.subr.mxu0 0.0
    %763 = vmatpush1.msra.mxu0 0.0
    %764 = vmatprep.subr.mxu0 0.0
    %765 = vmatpush1.msra.mxu0 0.0
    %766 = vmatprep.subr.mxu0 0.0
    %767 = vmatpush1.msra.mxu0 0.0
    %768 = vmatprep.subr.mxu0 0.0
    %769 = vmatpush1.msra.mxu0 0.0
    %770 = vmatprep.mubr.f32.mxu0 0.0
    %771 = vmatmul.mubr.f32.gmra.mrb[0].mxu0 %v704
    %v772 = vpop.f32.mrb[0].mxu0
    %v773 = vadd.f32 %v157, %v772
    %v774 = vpop.f32.mrb[0].mxu0
    %775 = vdwg.mxu0
    %v777 = vrot.slane %v773, 4
    %v778 = vrot.slane %v773, 5
    %v781 = vadd.f32 %v141, %v777
    %v782 = vadd.f32 %v146, %v778
    %v783 = vxor.u32 %v781, 2147483648
    %v784 = vxor.u32 %v782, 2147483648
    %v785 = vmul.f32 %v783, 1.442695
    %v786 = vpow.pop %v785
    %v787 = vmul.f32 %v784, 1.442695
    %v788 = vpow.pop %v787
    %v789 = vadd.f32 %v786, 1.0
    %v790 = vadd.f32 %v788, 1.0
    %v791 = vrcp.pop %v789
    %v792 = vmul.f32 1.0, %v791
    %v793 = vrcp.pop %v790
    %v794 = vmul.f32 1.0, %v793
    %795 = vrot.lane.b32.xlu0 %v777, 64
    %v796 = vpop.permute.xlu0 %795
    %797 = vrot.lane.b32.xlu0 %v778, 64
    %v798 = vpop.permute.xlu0 %797
    %v801 = vmul.f32 %v792, %v796
    %v802 = vmul.f32 %v794, %v798
    %805 = vrot.lane.b32.xlu0 %v801, 64
    %v806 = vpop.permute.xlu0 %805
    %807 = vrot.lane.b32.xlu0 %v802, 64
    %v808 = vpop.permute.xlu0 %807
    %v811 = vadd.f32 %v141, %v806
    %v812 = vadd.f32 %v146, %v808
    %v813 = vtanh.pop %v811
    %v814 = vtanh.pop %v812
    %v815 = vsub.f32 1.0, %v792
    %v816 = vsub.f32 1.0, %v794
    %819 = vrot.lane.b32.xlu0 %v813, 96
    %v820 = vpop.permute.xlu0 %819
    %821 = vrot.lane.b32.xlu0 %v814, 96
    %v822 = vpop.permute.xlu0 %821
    %v825 = vmul.f32 %v815, %v820
    %v826 = vmul.f32 %v816, %v822
    %v827 = vrot.slane %v695, 7
    %v828 = vrot.slane %v696, 7
    %v831 = vmul.f32 %v792, %v827
    %v832 = vmul.f32 %v794, %v828
    %v833 = vadd.f32 %v825, %v831
    %v834 = vadd.f32 %v826, %v832
    %v837 = vrot.slane %v833, 4
    %v838 = vrot.slane %v834, 3
    %v839 = vsel %vm289, %v838, %v837
    %840 = vrot.lane.b32.xlu0 %v839, 96
    %v841 = vpop.permute.xlu0 %840
    %v842 = vsel %vm158, %v841, 0
    %844 = vmatprep.subr.mxu0 0.0
    %845 = vmatpush1.msra.mxu0 %v149
    %846 = vmatprep.subr.mxu0 0.0
    %847 = vmatpush1.msra.mxu0 %v150
    %848 = vmatprep.subr.mxu0 0.0
    %849 = vmatpush1.msra.mxu0 %v151
    %850 = vmatprep.subr.mxu0 0.0
    %851 = vmatpush1.msra.mxu0 %v152
    %852 = vmatprep.subr.mxu0 0.0
    %853 = vmatpush1.msra.mxu0 0.0
    %854 = vmatprep.subr.mxu0 0.0
    %855 = vmatpush1.msra.mxu0 0.0
    %856 = vmatprep.subr.mxu0 0.0
    %857 = vmatpush1.msra.mxu0 0.0
    %858 = vmatprep.subr.mxu0 0.0
    %859 = vmatpush1.msra.mxu0 0.0
    %860 = vmatprep.subr.mxu0 0.0
    %861 = vmatpush1.msra.mxu0 0.0
    %862 = vmatprep.subr.mxu0 0.0
    %863 = vmatpush1.msra.mxu0 0.0
    %864 = vmatprep.subr.mxu0 0.0
    %865 = vmatpush1.msra.mxu0 0.0
    %866 = vmatprep.subr.mxu0 0.0
    %867 = vmatpush1.msra.mxu0 0.0
    %868 = vmatprep.subr.mxu0 0.0
    %869 = vmatpush1.msra.mxu0 0.0
    %870 = vmatprep.subr.mxu0 0.0
    %871 = vmatpush1.msra.mxu0 0.0
    %872 = vmatprep.subr.mxu0 0.0
    %873 = vmatpush1.msra.mxu0 0.0
    %874 = vmatprep.subr.mxu0 0.0
    %875 = vmatpush1.msra.mxu0 0.0
    %876 = vmatprep.subr.mxu0 0.0
    %877 = vmatpush1.msra.mxu0 0.0
    %878 = vmatprep.subr.mxu0 0.0
    %879 = vmatpush1.msra.mxu0 0.0
    %880 = vmatprep.subr.mxu0 0.0
    %881 = vmatpush1.msra.mxu0 0.0
    %882 = vmatprep.subr.mxu0 0.0
    %883 = vmatpush1.msra.mxu0 0.0
    %884 = vmatprep.subr.mxu0 0.0
    %885 = vmatpush1.msra.mxu0 0.0
    %886 = vmatprep.subr.mxu0 0.0
    %887 = vmatpush1.msra.mxu0 0.0
    %888 = vmatprep.subr.mxu0 0.0
    %889 = vmatpush1.msra.mxu0 0.0
    %890 = vmatprep.subr.mxu0 0.0
    %891 = vmatpush1.msra.mxu0 0.0
    %892 = vmatprep.subr.mxu0 0.0
    %893 = vmatpush1.msra.mxu0 0.0
    %894 = vmatprep.subr.mxu0 0.0
    %895 = vmatpush1.msra.mxu0 0.0
    %896 = vmatprep.subr.mxu0 0.0
    %897 = vmatpush1.msra.mxu0 0.0
    %898 = vmatprep.subr.mxu0 0.0
    %899 = vmatpush1.msra.mxu0 0.0
    %900 = vmatprep.subr.mxu0 0.0
    %901 = vmatpush1.msra.mxu0 0.0
    %902 = vmatprep.subr.mxu0 0.0
    %903 = vmatpush1.msra.mxu0 0.0
    %904 = vmatprep.subr.mxu0 0.0
    %905 = vmatpush1.msra.mxu0 0.0
    %906 = vmatprep.subr.mxu0 0.0
    %907 = vmatpush1.msra.mxu0 0.0
    %908 = vmatprep.mubr.f32.mxu0 0.0
    %909 = vmatmul.mubr.f32.gmra.mrb[0].mxu0 %v842
    %v910 = vpop.f32.mrb[0].mxu0
    %v911 = vadd.f32 %v157, %v910
    %v912 = vpop.f32.mrb[0].mxu0
    %913 = vdwg.mxu0
    %v915 = vrot.slane %v911, 3
    %v916 = vrot.slane %v911, 4
    %v919 = vadd.f32 %v141, %v915
    %v920 = vadd.f32 %v146, %v916
    %v921 = vxor.u32 %v919, 2147483648
    %v922 = vxor.u32 %v920, 2147483648
    %v923 = vmul.f32 %v921, 1.442695
    %v924 = vpow.pop %v923
    %v925 = vmul.f32 %v922, 1.442695
    %v926 = vpow.pop %v925
    %v927 = vadd.f32 %v924, 1.0
    %v928 = vadd.f32 %v926, 1.0
    %v929 = vrcp.pop %v927
    %v930 = vmul.f32 1.0, %v929
    %v931 = vrcp.pop %v928
    %v932 = vmul.f32 1.0, %v931
    %933 = vrot.lane.b32.xlu0 %v915, 64
    %v934 = vpop.permute.xlu0 %933
    %935 = vrot.lane.b32.xlu0 %v916, 64
    %v936 = vpop.permute.xlu0 %935
    %v939 = vmul.f32 %v930, %v934
    %v940 = vmul.f32 %v932, %v936
    %943 = vrot.lane.b32.xlu0 %v939, 64
    %v944 = vpop.permute.xlu0 %943
    %945 = vrot.lane.b32.xlu0 %v940, 64
    %v946 = vpop.permute.xlu0 %945
    %v949 = vadd.f32 %v141, %v944
    %v950 = vadd.f32 %v146, %v946
    %v951 = vtanh.pop %v949
    %v952 = vtanh.pop %v950
    %v953 = vsub.f32 1.0, %v930
    %v954 = vsub.f32 1.0, %v932
    %957 = vrot.lane.b32.xlu0 %v951, 96
    %v958 = vpop.permute.xlu0 %957
    %959 = vrot.lane.b32.xlu0 %v952, 96
    %v960 = vpop.permute.xlu0 %959
    %v963 = vmul.f32 %v953, %v958
    %v964 = vmul.f32 %v954, %v960
    %v965 = vrot.slane %v833, 7
    %v966 = vrot.slane %v834, 7
    %v969 = vmul.f32 %v930, %v965
    %v970 = vmul.f32 %v932, %v966
    %v971 = vadd.f32 %v963, %v969
    %v972 = vadd.f32 %v964, %v970
    %v975 = vrot.slane %v971, 5
    %v976 = vrot.slane %v972, 4
    %v977 = vsel %vm289, %v976, %v975
    %978 = vrot.lane.b32.xlu0 %v977, 96
    %v979 = vpop.permute.xlu0 %978
    %v980 = vsel %vm158, %v979, 0
    %982 = vmatprep.subr.mxu0 0.0
    %983 = vmatpush1.msra.mxu0 %v149
    %984 = vmatprep.subr.mxu0 0.0
    %985 = vmatpush1.msra.mxu0 %v150
    %986 = vmatprep.subr.mxu0 0.0
    %987 = vmatpush1.msra.mxu0 %v151
    %988 = vmatprep.subr.mxu0 0.0
    %989 = vmatpush1.msra.mxu0 %v152
    %990 = vmatprep.subr.mxu0 0.0
    %991 = vmatpush1.msra.mxu0 0.0
    %992 = vmatprep.subr.mxu0 0.0
    %993 = vmatpush1.msra.mxu0 0.0
    %994 = vmatprep.subr.mxu0 0.0
    %995 = vmatpush1.msra.mxu0 0.0
    %996 = vmatprep.subr.mxu0 0.0
    %997 = vmatpush1.msra.mxu0 0.0
    %998 = vmatprep.subr.mxu0 0.0
    %999 = vmatpush1.msra.mxu0 0.0
    %1000 = vmatprep.subr.mxu0 0.0
    %1001 = vmatpush1.msra.mxu0 0.0
    %1002 = vmatprep.subr.mxu0 0.0
    %1003 = vmatpush1.msra.mxu0 0.0
    %1004 = vmatprep.subr.mxu0 0.0
    %1005 = vmatpush1.msra.mxu0 0.0
    %1006 = vmatprep.subr.mxu0 0.0
    %1007 = vmatpush1.msra.mxu0 0.0
    %1008 = vmatprep.subr.mxu0 0.0
    %1009 = vmatpush1.msra.mxu0 0.0
    %1010 = vmatprep.subr.mxu0 0.0
    %1011 = vmatpush1.msra.mxu0 0.0
    %1012 = vmatprep.subr.mxu0 0.0
    %1013 = vmatpush1.msra.mxu0 0.0
    %1014 = vmatprep.subr.mxu0 0.0
    %1015 = vmatpush1.msra.mxu0 0.0
    %1016 = vmatprep.subr.mxu0 0.0
    %1017 = vmatpush1.msra.mxu0 0.0
    %1018 = vmatprep.subr.mxu0 0.0
    %1019 = vmatpush1.msra.mxu0 0.0
    %1020 = vmatprep.subr.mxu0 0.0
    %1021 = vmatpush1.msra.mxu0 0.0
    %1022 = vmatprep.subr.mxu0 0.0
    %1023 = vmatpush1.msra.mxu0 0.0
    %1024 = vmatprep.subr.mxu0 0.0
    %1025 = vmatpush1.msra.mxu0 0.0
    %1026 = vmatprep.subr.mxu0 0.0
    %1027 = vmatpush1.msra.mxu0 0.0
    %1028 = vmatprep.subr.mxu0 0.0
    %1029 = vmatpush1.msra.mxu0 0.0
    %1030 = vmatprep.subr.mxu0 0.0
    %1031 = vmatpush1.msra.mxu0 0.0
    %1032 = vmatprep.subr.mxu0 0.0
    %1033 = vmatpush1.msra.mxu0 0.0
    %1034 = vmatprep.subr.mxu0 0.0
    %1035 = vmatpush1.msra.mxu0 0.0
    %1036 = vmatprep.subr.mxu0 0.0
    %1037 = vmatpush1.msra.mxu0 0.0
    %1038 = vmatprep.subr.mxu0 0.0
    %1039 = vmatpush1.msra.mxu0 0.0
    %1040 = vmatprep.subr.mxu0 0.0
    %1041 = vmatpush1.msra.mxu0 0.0
    %1042 = vmatprep.subr.mxu0 0.0
    %1043 = vmatpush1.msra.mxu0 0.0
    %1044 = vmatprep.subr.mxu0 0.0
    %1045 = vmatpush1.msra.mxu0 0.0
    %1046 = vmatprep.mubr.f32.mxu0 0.0
    %1047 = vmatmul.mubr.f32.gmra.mrb[0].mxu0 %v980
    %v1048 = vpop.f32.mrb[0].mxu0
    %v1049 = vadd.f32 %v157, %v1048
    %v1050 = vpop.f32.mrb[0].mxu0
    %1051 = vdwg.mxu0
    %v1053 = vrot.slane %v1049, 2
    %v1054 = vrot.slane %v1049, 3
    %v1057 = vadd.f32 %v141, %v1053
    %v1058 = vadd.f32 %v146, %v1054
    %v1059 = vxor.u32 %v1057, 2147483648
    %v1060 = vxor.u32 %v1058, 2147483648
    %v1061 = vmul.f32 %v1059, 1.442695
    %v1062 = vpow.pop %v1061
    %v1063 = vmul.f32 %v1060, 1.442695
    %v1064 = vpow.pop %v1063
    %v1065 = vadd.f32 %v1062, 1.0
    %v1066 = vadd.f32 %v1064, 1.0
    %v1067 = vrcp.pop %v1065
    %v1068 = vmul.f32 1.0, %v1067
    %v1069 = vrcp.pop %v1066
    %v1070 = vmul.f32 1.0, %v1069
    %1071 = vrot.lane.b32.xlu0 %v1053, 64
    %v1072 = vpop.permute.xlu0 %1071
    %1073 = vrot.lane.b32.xlu0 %v1054, 64
    %v1074 = vpop.permute.xlu0 %1073
    %v1077 = vmul.f32 %v1068, %v1072
    %v1078 = vmul.f32 %v1070, %v1074
    %1081 = vrot.lane.b32.xlu0 %v1077, 64
    %v1082 = vpop.permute.xlu0 %1081
    %1083 = vrot.lane.b32.xlu0 %v1078, 64
    %v1084 = vpop.permute.xlu0 %1083
    %v1087 = vadd.f32 %v141, %v1082
    %v1088 = vadd.f32 %v146, %v1084
    %v1089 = vtanh.pop %v1087
    %v1090 = vtanh.pop %v1088
    %v1091 = vsub.f32 1.0, %v1068
    %v1092 = vsub.f32 1.0, %v1070
    %1095 = vrot.lane.b32.xlu0 %v1089, 96
    %v1096 = vpop.permute.xlu0 %1095
    %1097 = vrot.lane.b32.xlu0 %v1090, 96
    %v1098 = vpop.permute.xlu0 %1097
    %v1101 = vmul.f32 %v1091, %v1096
    %v1102 = vmul.f32 %v1092, %v1098
    %v1103 = vrot.slane %v971, 7
    %v1104 = vrot.slane %v972, 7
    %v1107 = vmul.f32 %v1068, %v1103
    %v1108 = vmul.f32 %v1070, %v1104
    %v1109 = vadd.f32 %v1101, %v1107
    %v1110 = vadd.f32 %v1102, %v1108
    %v1113 = vrot.slane %v1109, 6
    %v1114 = vrot.slane %v1110, 5
    %v1115 = vsel %vm289, %v1114, %v1113
    %1116 = vrot.lane.b32.xlu0 %v1115, 96
    %v1117 = vpop.permute.xlu0 %1116
    %v1118 = vsel %vm158, %v1117, 0
    %1120 = vmatprep.subr.mxu0 0.0
    %1121 = vmatpush1.msra.mxu0 %v149
    %1122 = vmatprep.subr.mxu0 0.0
    %1123 = vmatpush1.msra.mxu0 %v150
    %1124 = vmatprep.subr.mxu0 0.0
    %1125 = vmatpush1.msra.mxu0 %v151
    %1126 = vmatprep.subr.mxu0 0.0
    %1127 = vmatpush1.msra.mxu0 %v152
    %1128 = vmatprep.subr.mxu0 0.0
    %1129 = vmatpush1.msra.mxu0 0.0
    %1130 = vmatprep.subr.mxu0 0.0
    %1131 = vmatpush1.msra.mxu0 0.0
    %1132 = vmatprep.subr.mxu0 0.0
    %1133 = vmatpush1.msra.mxu0 0.0
    %1134 = vmatprep.subr.mxu0 0.0
    %1135 = vmatpush1.msra.mxu0 0.0
    %1136 = vmatprep.subr.mxu0 0.0
    %1137 = vmatpush1.msra.mxu0 0.0
    %1138 = vmatprep.subr.mxu0 0.0
    %1139 = vmatpush1.msra.mxu0 0.0
    %1140 = vmatprep.subr.mxu0 0.0
    %1141 = vmatpush1.msra.mxu0 0.0
    %1142 = vmatprep.subr.mxu0 0.0
    %1143 = vmatpush1.msra.mxu0 0.0
    %1144 = vmatprep.subr.mxu0 0.0
    %1145 = vmatpush1.msra.mxu0 0.0
    %1146 = vmatprep.subr.mxu0 0.0
    %1147 = vmatpush1.msra.mxu0 0.0
    %1148 = vmatprep.subr.mxu0 0.0
    %1149 = vmatpush1.msra.mxu0 0.0
    %1150 = vmatprep.subr.mxu0 0.0
    %1151 = vmatpush1.msra.mxu0 0.0
    %1152 = vmatprep.subr.mxu0 0.0
    %1153 = vmatpush1.msra.mxu0 0.0
    %1154 = vmatprep.subr.mxu0 0.0
    %1155 = vmatpush1.msra.mxu0 0.0
    %1156 = vmatprep.subr.mxu0 0.0
    %1157 = vmatpush1.msra.mxu0 0.0
    %1158 = vmatprep.subr.mxu0 0.0
    %1159 = vmatpush1.msra.mxu0 0.0
    %1160 = vmatprep.subr.mxu0 0.0
    %1161 = vmatpush1.msra.mxu0 0.0
    %1162 = vmatprep.subr.mxu0 0.0
    %1163 = vmatpush1.msra.mxu0 0.0
    %1164 = vmatprep.subr.mxu0 0.0
    %1165 = vmatpush1.msra.mxu0 0.0
    %1166 = vmatprep.subr.mxu0 0.0
    %1167 = vmatpush1.msra.mxu0 0.0
    %1168 = vmatprep.subr.mxu0 0.0
    %1169 = vmatpush1.msra.mxu0 0.0
    %1170 = vmatprep.subr.mxu0 0.0
    %1171 = vmatpush1.msra.mxu0 0.0
    %1172 = vmatprep.subr.mxu0 0.0
    %1173 = vmatpush1.msra.mxu0 0.0
    %1174 = vmatprep.subr.mxu0 0.0
    %1175 = vmatpush1.msra.mxu0 0.0
    %1176 = vmatprep.subr.mxu0 0.0
    %1177 = vmatpush1.msra.mxu0 0.0
    %1178 = vmatprep.subr.mxu0 0.0
    %1179 = vmatpush1.msra.mxu0 0.0
    %1180 = vmatprep.subr.mxu0 0.0
    %1181 = vmatpush1.msra.mxu0 0.0
    %1182 = vmatprep.subr.mxu0 0.0
    %1183 = vmatpush1.msra.mxu0 0.0
    %1184 = vmatprep.mubr.f32.mxu0 0.0
    %1185 = vmatmul.mubr.f32.gmra.mrb[0].mxu0 %v1118
    %v1186 = vpop.f32.mrb[0].mxu0
    %v1187 = vadd.f32 %v157, %v1186
    %v1188 = vpop.f32.mrb[0].mxu0
    %1189 = vdwg.mxu0
    %v1191 = vrot.slane %v1187, 1
    %v1192 = vrot.slane %v1187, 2
    %v1195 = vadd.f32 %v141, %v1191
    %v1196 = vadd.f32 %v146, %v1192
    %v1197 = vxor.u32 %v1195, 2147483648
    %v1198 = vxor.u32 %v1196, 2147483648
    %v1199 = vmul.f32 %v1197, 1.442695
    %v1200 = vpow.pop %v1199
    %v1201 = vmul.f32 %v1198, 1.442695
    %v1202 = vpow.pop %v1201
    %v1203 = vadd.f32 %v1200, 1.0
    %v1204 = vadd.f32 %v1202, 1.0
    %v1205 = vrcp.pop %v1203
    %v1206 = vmul.f32 1.0, %v1205
    %v1207 = vrcp.pop %v1204
    %v1208 = vmul.f32 1.0, %v1207
    %1209 = vrot.lane.b32.xlu0 %v1191, 64
    %v1210 = vpop.permute.xlu0 %1209
    %1211 = vrot.lane.b32.xlu0 %v1192, 64
    %v1212 = vpop.permute.xlu0 %1211
    %v1215 = vmul.f32 %v1206, %v1210
    %v1216 = vmul.f32 %v1208, %v1212
    %1219 = vrot.lane.b32.xlu0 %v1215, 64
    %v1220 = vpop.permute.xlu0 %1219
    %1221 = vrot.lane.b32.xlu0 %v1216, 64
    %v1222 = vpop.permute.xlu0 %1221
    %v1225 = vadd.f32 %v141, %v1220
    %v1226 = vadd.f32 %v146, %v1222
    %v1227 = vtanh.pop %v1225
    %v1228 = vtanh.pop %v1226
    %v1229 = vsub.f32 1.0, %v1206
    %v1230 = vsub.f32 1.0, %v1208
    %1233 = vrot.lane.b32.xlu0 %v1227, 96
    %v1234 = vpop.permute.xlu0 %1233
    %1235 = vrot.lane.b32.xlu0 %v1228, 96
    %v1236 = vpop.permute.xlu0 %1235
    %v1239 = vmul.f32 %v1229, %v1234
    %v1240 = vmul.f32 %v1230, %v1236
    %v1241 = vrot.slane %v1109, 7
    %v1242 = vrot.slane %v1110, 7
    %v1245 = vmul.f32 %v1206, %v1241
    %v1246 = vmul.f32 %v1208, %v1242
    %v1247 = vadd.f32 %v1239, %v1245
    %v1248 = vadd.f32 %v1240, %v1246
    %vm1249 = vcmask 1040384
    %v1250 = vsel %vm1249, %v284, %v420
    %v1251 = vsel %vm1249, %v285, %v421
    %vm1252 = vcmask 1041408
    %v1253 = vsel %vm1252, %v1250, %v557
    %v1254 = vsel %vm1252, %v1251, %v558
    %vm1255 = vcmask 1042432
    %v1256 = vsel %vm1255, %v1253, %v695
    %v1257 = vsel %vm1255, %v1254, %v696
    %vm1258 = vcmask 1043456
    %v1259 = vsel %vm1258, %v1256, %v833
    %v1260 = vsel %vm1258, %v1257, %v834
    %vm1261 = vcmask 1044480
    %v1262 = vsel %vm1261, %v1259, %v971
    %v1263 = vsel %vm1261, %v1260, %v972
    %vm1264 = vcmask 1045504
    %v1265 = vsel %vm1264, %v1262, %v1109
    %v1266 = vsel %vm1264, %v1263, %v1110
    %vm1267 = vcmask 1046528
    %v1268 = vsel %vm1267, %v1265, %v1247
    %v1269 = vsel %vm1267, %v1266, %v1248
    %v1270 = vld [vmem:[#allocation2] sm:$0xff]
    %v1271 = vld [vmem:[#allocation2 + $0x8] sm:$0xff]
    %v1272 = vld [vmem:[#allocation2 + $0x10] sm:$0xff]
    %v1273 = vld [vmem:[#allocation2 + $0x18] sm:$0xff]
    %v1274 = vld [vmem:[%s4 + $0x1] sm:$0x1]
    %v1275 = vlaneseq
    %v1276 = vshrl.u32 %v1275, 7
    %v1277 = vsub.s32 0, %v1276
    %v1278 = vrot.slane %v1274, %v1277
    %1281 = vrot.lane.b32.xlu0 %v1268, 96
    %v1282 = vpop.permute.xlu0 %1281
    %1283 = vrot.lane.b32.xlu0 %v1269, 96
    %v1284 = vpop.permute.xlu0 %1283
    %v1285 = vsel %vm158, %v1282, 0
    %v1287 = vsel %vm158, %v1284, 0
    %1289 = vmatprep.subr.mxu0 0.0
    %1290 = vmatpush1.msra.mxu0 %v1270
    %1291 = vmatprep.subr.mxu0 0.0
    %1292 = vmatpush1.msra.mxu0 %v1271
    %1293 = vmatprep.subr.mxu0 0.0
    %1294 = vmatpush1.msra.mxu0 %v1272
    %1295 = vmatprep.subr.mxu0 0.0
    %1296 = vmatpush1.msra.mxu0 %v1273
    %1297 = vmatprep.subr.mxu0 0.0
    %1298 = vmatpush1.msra.mxu0 0.0
    %1299 = vmatprep.subr.mxu0 0.0
    %1300 = vmatpush1.msra.mxu0 0.0
    %1301 = vmatprep.subr.mxu0 0.0
    %1302 = vmatpush1.msra.mxu0 0.0
    %1303 = vmatprep.subr.mxu0 0.0
    %1304 = vmatpush1.msra.mxu0 0.0
    %1305 = vmatprep.subr.mxu0 0.0
    %1306 = vmatpush1.msra.mxu0 0.0
    %1307 = vmatprep.subr.mxu0 0.0
    %1308 = vmatpush1.msra.mxu0 0.0
    %1309 = vmatprep.subr.mxu0 0.0
    %1310 = vmatpush1.msra.mxu0 0.0
    %1311 = vmatprep.subr.mxu0 0.0
    %1312 = vmatpush1.msra.mxu0 0.0
    %1313 = vmatprep.subr.mxu0 0.0
    %1314 = vmatpush1.msra.mxu0 0.0
    %1315 = vmatprep.subr.mxu0 0.0
    %1316 = vmatpush1.msra.mxu0 0.0
    %1317 = vmatprep.subr.mxu0 0.0
    %1318 = vmatpush1.msra.mxu0 0.0
    %1319 = vmatprep.subr.mxu0 0.0
    %1320 = vmatpush1.msra.mxu0 0.0
    %1321 = vmatprep.subr.mxu0 0.0
    %1322 = vmatpush1.msra.mxu0 0.0
    %1323 = vmatprep.subr.mxu0 0.0
    %1324 = vmatpush1.msra.mxu0 0.0
    %1325 = vmatprep.subr.mxu0 0.0
    %1326 = vmatpush1.msra.mxu0 0.0
    %1327 = vmatprep.subr.mxu0 0.0
    %1328 = vmatpush1.msra.mxu0 0.0
    %1329 = vmatprep.subr.mxu0 0.0
    %1330 = vmatpush1.msra.mxu0 0.0
    %1331 = vmatprep.subr.mxu0 0.0
    %1332 = vmatpush1.msra.mxu0 0.0
    %1333 = vmatprep.subr.mxu0 0.0
    %1334 = vmatpush1.msra.mxu0 0.0
    %1335 = vmatprep.subr.mxu0 0.0
    %1336 = vmatpush1.msra.mxu0 0.0
    %1337 = vmatprep.subr.mxu0 0.0
    %1338 = vmatpush1.msra.mxu0 0.0
    %1339 = vmatprep.subr.mxu0 0.0
    %1340 = vmatpush1.msra.mxu0 0.0
    %1341 = vmatprep.subr.mxu0 0.0
    %1342 = vmatpush1.msra.mxu0 0.0
    %1343 = vmatprep.subr.mxu0 0.0
    %1344 = vmatpush1.msra.mxu0 0.0
    %1345 = vmatprep.subr.mxu0 0.0
    %1346 = vmatpush1.msra.mxu0 0.0
    %1347 = vmatprep.subr.mxu0 0.0
    %1348 = vmatpush1.msra.mxu0 0.0
    %1349 = vmatprep.subr.mxu0 0.0
    %1350 = vmatpush1.msra.mxu0 0.0
    %1351 = vmatprep.subr.mxu0 0.0
    %1352 = vmatpush1.msra.mxu0 0.0
    %1353 = vmatprep.mubr.f32.mxu0 0.0
    %1354 = vmatmul.mubr.f32.gmra.mrb[0].mxu0 %v1285
    %v1355 = vpop.f32.mrb[0].mxu0
    %v1356 = vadd.f32 %v1278, %v1355
    %v1357 = vpop.f32.mrb[0].mxu0
    %1358 = vmatprep.mubr.f32.mxu0 0.0
    %1359 = vmatmul.mubr.f32.gmra.mrb[0].mxu0 %v1287
    %v1360 = vpop.f32.mrb[0].mxu0
    %v1361 = vadd.f32 %v1278, %v1360
    %v1362 = vpop.f32.mrb[0].mxu0
    %1363 = vdwg.mxu0
    %s1364 = scalar_lea.vmem [#allocation5], 32
    %v1365 = vld [vmem:[%s1364] sm:$0xff]
    %v1366 = vld [vmem:[%s1364 + $0x8] sm:$0xff]
    %v1367 = vld [vmem:[%s1364 + $0x10] sm:$0xff]
    %v1368 = vld [vmem:[%s1364 + $0x18] sm:$0xff]
    %v1369 = vld [vmem:[%s5 + $0x1] sm:$0x1]
    %v1370 = vlaneseq
    %v1371 = vshrl.u32 %v1370, 7
    %v1372 = vsub.s32 0, %v1371
    %v1373 = vrot.slane %v1369, %v1372
    %1374 = vmatprep.subr.mxu0 0.0
    %1375 = vmatpush1.msra.mxu0 %v1365
    %1376 = vmatprep.subr.mxu0 0.0
    %1377 = vmatpush1.msra.mxu0 %v1366
    %1378 = vmatprep.subr.mxu0 0.0
    %1379 = vmatpush1.msra.mxu0 %v1367
    %1380 = vmatprep.subr.mxu0 0.0
    %1381 = vmatpush1.msra.mxu0 %v1368
    %1382 = vmatprep.subr.mxu0 0.0
    %1383 = vmatpush1.msra.mxu0 0.0
    %1384 = vmatprep.subr.mxu0 0.0
    %1385 = vmatpush1.msra.mxu0 0.0
    %1386 = vmatprep.subr.mxu0 0.0
    %1387 = vmatpush1.msra.mxu0 0.0
    %1388 = vmatprep.subr.mxu0 0.0
    %1389 = vmatpush1.msra.mxu0 0.0
    %1390 = vmatprep.subr.mxu0 0.0
    %1391 = vmatpush1.msra.mxu0 0.0
    %1392 = vmatprep.subr.mxu0 0.0
    %1393 = vmatpush1.msra.mxu0 0.0
    %1394 = vmatprep.subr.mxu0 0.0
    %1395 = vmatpush1.msra.mxu0 0.0
    %1396 = vmatprep.subr.mxu0 0.0
    %1397 = vmatpush1.msra.mxu0 0.0
    %1398 = vmatprep.subr.mxu0 0.0
    %1399 = vmatpush1.msra.mxu0 0.0
    %1400 = vmatprep.subr.mxu0 0.0
    %1401 = vmatpush1.msra.mxu0 0.0
    %1402 = vmatprep.subr.mxu0 0.0
    %1403 = vmatpush1.msra.mxu0 0.0
    %1404 = vmatprep.subr.mxu0 0.0
    %1405 = vmatpush1.msra.mxu0 0.0
    %1406 = vmatprep.subr.mxu0 0.0
    %1407 = vmatpush1.msra.mxu0 0.0
    %1408 = vmatprep.subr.mxu0 0.0
    %1409 = vmatpush1.msra.mxu0 0.0
    %1410 = vmatprep.subr.mxu0 0.0
    %1411 = vmatpush1.msra.mxu0 0.0
    %1412 = vmatprep.subr.mxu0 0.0
    %1413 = vmatpush1.msra.mxu0 0.0
    %1414 = vmatprep.subr.mxu0 0.0
    %1415 = vmatpush1.msra.mxu0 0.0
    %1416 = vmatprep.subr.mxu0 0.0
    %1417 = vmatpush1.msra.mxu0 0.0
    %1418 = vmatprep.subr.mxu0 0.0
    %1419 = vmatpush1.msra.mxu0 0.0
    %1420 = vmatprep.subr.mxu0 0.0
    %1421 = vmatpush1.msra.mxu0 0.0
    %1422 = vmatprep.subr.mxu0 0.0
    %1423 = vmatpush1.msra.mxu0 0.0
    %1424 = vmatprep.subr.mxu0 0.0
    %1425 = vmatpush1.msra.mxu0 0.0
    %1426 = vmatprep.subr.mxu0 0.0
    %1427 = vmatpush1.msra.mxu0 0.0
    %1428 = vmatprep.subr.mxu0 0.0
    %1429 = vmatpush1.msra.mxu0 0.0
    %1430 = vmatprep.subr.mxu0 0.0
    %1431 = vmatpush1.msra.mxu0 0.0
    %1432 = vmatprep.subr.mxu0 0.0
    %1433 = vmatpush1.msra.mxu0 0.0
    %1434 = vmatprep.subr.mxu0 0.0
    %1435 = vmatpush1.msra.mxu0 0.0
    %1436 = vmatprep.subr.mxu0 0.0
    %1437 = vmatpush1.msra.mxu0 0.0
    %1438 = vmatprep.mubr.f32.mxu0 0.0
    %1439 = vmatmul.mubr.f32.gmra.mrb[0].mxu0 %v160
    %v1440 = vpop.f32.mrb[0].mxu0
    %v1441 = vadd.f32 %v1373, %v1440
    %v1442 = vpop.f32.mrb[0].mxu0
    %1443 = vdwg.mxu0
    %v1445 = vrot.slane %v1441, 1
    %v1448 = vadd.f32 %v1356, %v1441
    %v1449 = vadd.f32 %v1361, %v1445
    %v1450 = vxor.u32 %v1448, 2147483648
    %v1451 = vxor.u32 %v1449, 2147483648
    %v1452 = vmul.f32 %v1450, 1.442695
    %v1453 = vpow.pop %v1452
    %v1454 = vmul.f32 %v1451, 1.442695
    %v1455 = vpow.pop %v1454
    %v1456 = vadd.f32 %v1453, 1.0
    %v1457 = vadd.f32 %v1455, 1.0
    %v1458 = vrcp.pop %v1456
    %v1459 = vmul.f32 1.0, %v1458
    %v1460 = vrcp.pop %v1457
    %v1461 = vmul.f32 1.0, %v1460
    %1462 = vrot.lane.b32.xlu0 %v1441, 64
    %v1463 = vpop.permute.xlu0 %1462
    %1464 = vrot.lane.b32.xlu0 %v1445, 64
    %v1465 = vpop.permute.xlu0 %1464
    %v1468 = vmul.f32 %v1459, %v1463
    %v1469 = vmul.f32 %v1461, %v1465
    %1472 = vrot.lane.b32.xlu0 %v1468, 64
    %v1473 = vpop.permute.xlu0 %1472
    %1474 = vrot.lane.b32.xlu0 %v1469, 64
    %v1475 = vpop.permute.xlu0 %1474
    %v1478 = vadd.f32 %v1356, %v1473
    %v1479 = vadd.f32 %v1361, %v1475
    %v1480 = vtanh.pop %v1478
    %v1481 = vtanh.pop %v1479
    %v1482 = vsub.f32 1.0, %v1459
    %v1483 = vsub.f32 1.0, %v1461
    %1486 = vrot.lane.b32.xlu0 %v1480, 96
    %v1487 = vpop.permute.xlu0 %1486
    %1488 = vrot.lane.b32.xlu0 %v1481, 96
    %v1489 = vpop.permute.xlu0 %1488
    %v1492 = vmul.f32 %v1482, %v1487
    %v1493 = vmul.f32 %v1483, %v1489
    %v1494 = vmul.f32 %v1459, 0.0
    %v1495 = vmul.f32 %v1461, 0.0
    %v1496 = vadd.f32 %v1492, %v1494
    %v1497 = vadd.f32 %v1493, %v1495
    %v1500 = vrot.slane %v1497, 7
    %v1501 = vsel %vm289, %v1500, %v1496
    %1502 = vrot.lane.b32.xlu0 %v1501, 96
    %v1503 = vpop.permute.xlu0 %1502
    %v1504 = vsel %vm158, %v1503, 0
    %1506 = vmatprep.subr.mxu0 0.0
    %1507 = vmatpush1.msra.mxu0 %v1365
    %1508 = vmatprep.subr.mxu0 0.0
    %1509 = vmatpush1.msra.mxu0 %v1366
    %1510 = vmatprep.subr.mxu0 0.0
    %1511 = vmatpush1.msra.mxu0 %v1367
    %1512 = vmatprep.subr.mxu0 0.0
    %1513 = vmatpush1.msra.mxu0 %v1368
    %1514 = vmatprep.subr.mxu0 0.0
    %1515 = vmatpush1.msra.mxu0 0.0
    %1516 = vmatprep.subr.mxu0 0.0
    %1517 = vmatpush1.msra.mxu0 0.0
    %1518 = vmatprep.subr.mxu0 0.0
    %1519 = vmatpush1.msra.mxu0 0.0
    %1520 = vmatprep.subr.mxu0 0.0
    %1521 = vmatpush1.msra.mxu0 0.0
    %1522 = vmatprep.subr.mxu0 0.0
    %1523 = vmatpush1.msra.mxu0 0.0
    %1524 = vmatprep.subr.mxu0 0.0
    %1525 = vmatpush1.msra.mxu0 0.0
    %1526 = vmatprep.subr.mxu0 0.0
    %1527 = vmatpush1.msra.mxu0 0.0
    %1528 = vmatprep.subr.mxu0 0.0
    %1529 = vmatpush1.msra.mxu0 0.0
    %1530 = vmatprep.subr.mxu0 0.0
    %1531 = vmatpush1.msra.mxu0 0.0
    %1532 = vmatprep.subr.mxu0 0.0
    %1533 = vmatpush1.msra.mxu0 0.0
    %1534 = vmatprep.subr.mxu0 0.0
    %1535 = vmatpush1.msra.mxu0 0.0
    %1536 = vmatprep.subr.mxu0 0.0
    %1537 = vmatpush1.msra.mxu0 0.0
    %1538 = vmatprep.subr.mxu0 0.0
    %1539 = vmatpush1.msra.mxu0 0.0
    %1540 = vmatprep.subr.mxu0 0.0
    %1541 = vmatpush1.msra.mxu0 0.0
    %1542 = vmatprep.subr.mxu0 0.0
    %1543 = vmatpush1.msra.mxu0 0.0
    %1544 = vmatprep.subr.mxu0 0.0
    %1545 = vmatpush1.msra.mxu0 0.0
    %1546 = vmatprep.subr.mxu0 0.0
    %1547 = vmatpush1.msra.mxu0 0.0
    %1548 = vmatprep.subr.mxu0 0.0
    %1549 = vmatpush1.msra.mxu0 0.0
    %1550 = vmatprep.subr.mxu0 0.0
    %1551 = vmatpush1.msra.mxu0 0.0
    %1552 = vmatprep.subr.mxu0 0.0
    %1553 = vmatpush1.msra.mxu0 0.0
    %1554 = vmatprep.subr.mxu0 0.0
    %1555 = vmatpush1.msra.mxu0 0.0
    %1556 = vmatprep.subr.mxu0 0.0
    %1557 = vmatpush1.msra.mxu0 0.0
    %1558 = vmatprep.subr.mxu0 0.0
    %1559 = vmatpush1.msra.mxu0 0.0
    %1560 = vmatprep.subr.mxu0 0.0
    %1561 = vmatpush1.msra.mxu0 0.0
    %1562 = vmatprep.subr.mxu0 0.0
    %1563 = vmatpush1.msra.mxu0 0.0
    %1564 = vmatprep.subr.mxu0 0.0
    %1565 = vmatpush1.msra.mxu0 0.0
    %1566 = vmatprep.subr.mxu0 0.0
    %1567 = vmatpush1.msra.mxu0 0.0
    %1568 = vmatprep.subr.mxu0 0.0
    %1569 = vmatpush1.msra.mxu0 0.0
    %1570 = vmatprep.mubr.f32.mxu0 0.0
    %1571 = vmatmul.mubr.f32.gmra.mrb[0].mxu0 %v1504
    %v1572 = vpop.f32.mrb[0].mxu0
    %v1573 = vadd.f32 %v1373, %v1572
    %v1574 = vpop.f32.mrb[0].mxu0
    %1575 = vdwg.mxu0
    %v1577 = vrot.slane %v1573, 7
    %v1580 = vadd.f32 %v1356, %v1577
    %v1581 = vadd.f32 %v1361, %v1573
    %v1582 = vxor.u32 %v1580, 2147483648
    %v1583 = vxor.u32 %v1581, 2147483648
    %v1584 = vmul.f32 %v1582, 1.442695
    %v1585 = vpow.pop %v1584
    %v1586 = vmul.f32 %v1583, 1.442695
    %v1587 = vpow.pop %v1586
    %v1588 = vadd.f32 %v1585, 1.0
    %v1589 = vadd.f32 %v1587, 1.0
    %v1590 = vrcp.pop %v1588
    %v1591 = vmul.f32 1.0, %v1590
    %v1592 = vrcp.pop %v1589
    %v1593 = vmul.f32 1.0, %v1592
    %1594 = vrot.lane.b32.xlu0 %v1577, 64
    %v1595 = vpop.permute.xlu0 %1594
    %1596 = vrot.lane.b32.xlu0 %v1573, 64
    %v1597 = vpop.permute.xlu0 %1596
    %v1600 = vmul.f32 %v1591, %v1595
    %v1601 = vmul.f32 %v1593, %v1597
    %1604 = vrot.lane.b32.xlu0 %v1600, 64
    %v1605 = vpop.permute.xlu0 %1604
    %1606 = vrot.lane.b32.xlu0 %v1601, 64
    %v1607 = vpop.permute.xlu0 %1606
    %v1610 = vadd.f32 %v1356, %v1605
    %v1611 = vadd.f32 %v1361, %v1607
    %v1612 = vtanh.pop %v1610
    %v1613 = vtanh.pop %v1611
    %v1614 = vsub.f32 1.0, %v1591
    %v1615 = vsub.f32 1.0, %v1593
    %1618 = vrot.lane.b32.xlu0 %v1612, 96
    %v1619 = vpop.permute.xlu0 %1618
    %1620 = vrot.lane.b32.xlu0 %v1613, 96
    %v1621 = vpop.permute.xlu0 %1620
    %v1624 = vmul.f32 %v1614, %v1619
    %v1625 = vmul.f32 %v1615, %v1621
    %v1626 = vrot.slane %v1496, 7
    %v1629 = vmul.f32 %v1591, %v1626
    %v1630 = vmul.f32 %v1593, %v1500
    %v1631 = vadd.f32 %v1624, %v1629
    %v1632 = vadd.f32 %v1625, %v1630
    %v1635 = vrot.slane %v1631, 1
    %v1636 = vsel %vm289, %v1632, %v1635
    %1637 = vrot.lane.b32.xlu0 %v1636, 96
    %v1638 = vpop.permute.xlu0 %1637
    %v1639 = vsel %vm158, %v1638, 0
    %1641 = vmatprep.subr.mxu0 0.0
    %1642 = vmatpush1.msra.mxu0 %v1365
    %1643 = vmatprep.subr.mxu0 0.0
    %1644 = vmatpush1.msra.mxu0 %v1366
    %1645 = vmatprep.subr.mxu0 0.0
    %1646 = vmatpush1.msra.mxu0 %v1367
    %1647 = vmatprep.subr.mxu0 0.0
    %1648 = vmatpush1.msra.mxu0 %v1368
    %1649 = vmatprep.subr.mxu0 0.0
    %1650 = vmatpush1.msra.mxu0 0.0
    %1651 = vmatprep.subr.mxu0 0.0
    %1652 = vmatpush1.msra.mxu0 0.0
    %1653 = vmatprep.subr.mxu0 0.0
    %1654 = vmatpush1.msra.mxu0 0.0
    %1655 = vmatprep.subr.mxu0 0.0
    %1656 = vmatpush1.msra.mxu0 0.0
    %1657 = vmatprep.subr.mxu0 0.0
    %1658 = vmatpush1.msra.mxu0 0.0
    %1659 = vmatprep.subr.mxu0 0.0
    %1660 = vmatpush1.msra.mxu0 0.0
    %1661 = vmatprep.subr.mxu0 0.0
    %1662 = vmatpush1.msra.mxu0 0.0
    %1663 = vmatprep.subr.mxu0 0.0
    %1664 = vmatpush1.msra.mxu0 0.0
    %1665 = vmatprep.subr.mxu0 0.0
    %1666 = vmatpush1.msra.mxu0 0.0
    %1667 = vmatprep.subr.mxu0 0.0
    %1668 = vmatpush1.msra.mxu0 0.0
    %1669 = vmatprep.subr.mxu0 0.0
    %1670 = vmatpush1.msra.mxu0 0.0
    %1671 = vmatprep.subr.mxu0 0.0
    %1672 = vmatpush1.msra.mxu0 0.0
    %1673 = vmatprep.subr.mxu0 0.0
    %1674 = vmatpush1.msra.mxu0 0.0
    %1675 = vmatprep.subr.mxu0 0.0
    %1676 = vmatpush1.msra.mxu0 0.0
    %1677 = vmatprep.subr.mxu0 0.0
    %1678 = vmatpush1.msra.mxu0 0.0
    %1679 = vmatprep.subr.mxu0 0.0
    %1680 = vmatpush1.msra.mxu0 0.0
    %1681 = vmatprep.subr.mxu0 0.0
    %1682 = vmatpush1.msra.mxu0 0.0
    %1683 = vmatprep.subr.mxu0 0.0
    %1684 = vmatpush1.msra.mxu0 0.0
    %1685 = vmatprep.subr.mxu0 0.0
    %1686 = vmatpush1.msra.mxu0 0.0
    %1687 = vmatprep.subr.mxu0 0.0
    %1688 = vmatpush1.msra.mxu0 0.0
    %1689 = vmatprep.subr.mxu0 0.0
    %1690 = vmatpush1.msra.mxu0 0.0
    %1691 = vmatprep.subr.mxu0 0.0
    %1692 = vmatpush1.msra.mxu0 0.0
    %1693 = vmatprep.subr.mxu0 0.0
    %1694 = vmatpush1.msra.mxu0 0.0
    %1695 = vmatprep.subr.mxu0 0.0
    %1696 = vmatpush1.msra.mxu0 0.0
    %1697 = vmatprep.subr.mxu0 0.0
    %1698 = vmatpush1.msra.mxu0 0.0
    %1699 = vmatprep.subr.mxu0 0.0
    %1700 = vmatpush1.msra.mxu0 0.0
    %1701 = vmatprep.subr.mxu0 0.0
    %1702 = vmatpush1.msra.mxu0 0.0
    %1703 = vmatprep.subr.mxu0 0.0
    %1704 = vmatpush1.msra.mxu0 0.0
    %1705 = vmatprep.mubr.f32.mxu0 0.0
    %1706 = vmatmul.mubr.f32.gmra.mrb[0].mxu0 %v1639
    %v1707 = vpop.f32.mrb[0].mxu0
    %v1708 = vadd.f32 %v1373, %v1707
    %v1709 = vpop.f32.mrb[0].mxu0
    %1710 = vdwg.mxu0
    %v1712 = vrot.slane %v1708, 6
    %v1713 = vrot.slane %v1708, 7
    %v1716 = vadd.f32 %v1356, %v1712
    %v1717 = vadd.f32 %v1361, %v1713
    %v1718 = vxor.u32 %v1716, 2147483648
    %v1719 = vxor.u32 %v1717, 2147483648
    %v1720 = vmul.f32 %v1718, 1.442695
    %v1721 = vpow.pop %v1720
    %v1722 = vmul.f32 %v1719, 1.442695
    %v1723 = vpow.pop %v1722
    %v1724 = vadd.f32 %v1721, 1.0
    %v1725 = vadd.f32 %v1723, 1.0
    %v1726 = vrcp.pop %v1724
    %v1727 = vmul.f32 1.0, %v1726
    %v1728 = vrcp.pop %v1725
    %v1729 = vmul.f32 1.0, %v1728
    %1730 = vrot.lane.b32.xlu0 %v1712, 64
    %v1731 = vpop.permute.xlu0 %1730
    %1732 = vrot.lane.b32.xlu0 %v1713, 64
    %v1733 = vpop.permute.xlu0 %1732
    %v1736 = vmul.f32 %v1727, %v1731
    %v1737 = vmul.f32 %v1729, %v1733
    %1740 = vrot.lane.b32.xlu0 %v1736, 64
    %v1741 = vpop.permute.xlu0 %1740
    %1742 = vrot.lane.b32.xlu0 %v1737, 64
    %v1743 = vpop.permute.xlu0 %1742
    %v1746 = vadd.f32 %v1356, %v1741
    %v1747 = vadd.f32 %v1361, %v1743
    %v1748 = vtanh.pop %v1746
    %v1749 = vtanh.pop %v1747
    %v1750 = vsub.f32 1.0, %v1727
    %v1751 = vsub.f32 1.0, %v1729
    %1754 = vrot.lane.b32.xlu0 %v1748, 96
    %v1755 = vpop.permute.xlu0 %1754
    %1756 = vrot.lane.b32.xlu0 %v1749, 96
    %v1757 = vpop.permute.xlu0 %1756
    %v1760 = vmul.f32 %v1750, %v1755
    %v1761 = vmul.f32 %v1751, %v1757
    %v1762 = vrot.slane %v1631, 7
    %v1763 = vrot.slane %v1632, 7
    %v1766 = vmul.f32 %v1727, %v1762
    %v1767 = vmul.f32 %v1729, %v1763
    %v1768 = vadd.f32 %v1760, %v1766
    %v1769 = vadd.f32 %v1761, %v1767
    %v1772 = vrot.slane %v1768, 2
    %v1773 = vrot.slane %v1769, 1
    %v1774 = vsel %vm289, %v1773, %v1772
    %1775 = vrot.lane.b32.xlu0 %v1774, 96
    %v1776 = vpop.permute.xlu0 %1775
    %v1777 = vsel %vm158, %v1776, 0
    %1779 = vmatprep.subr.mxu0 0.0
    %1780 = vmatpush1.msra.mxu0 %v1365
    %1781 = vmatprep.subr.mxu0 0.0
    %1782 = vmatpush1.msra.mxu0 %v1366
    %1783 = vmatprep.subr.mxu0 0.0
    %1784 = vmatpush1.msra.mxu0 %v1367
    %1785 = vmatprep.subr.mxu0 0.0
    %1786 = vmatpush1.msra.mxu0 %v1368
    %1787 = vmatprep.subr.mxu0 0.0
    %1788 = vmatpush1.msra.mxu0 0.0
    %1789 = vmatprep.subr.mxu0 0.0
    %1790 = vmatpush1.msra.mxu0 0.0
    %1791 = vmatprep.subr.mxu0 0.0
    %1792 = vmatpush1.msra.mxu0 0.0
    %1793 = vmatprep.subr.mxu0 0.0
    %1794 = vmatpush1.msra.mxu0 0.0
    %1795 = vmatprep.subr.mxu0 0.0
    %1796 = vmatpush1.msra.mxu0 0.0
    %1797 = vmatprep.subr.mxu0 0.0
    %1798 = vmatpush1.msra.mxu0 0.0
    %1799 = vmatprep.subr.mxu0 0.0
    %1800 = vmatpush1.msra.mxu0 0.0
    %1801 = vmatprep.subr.mxu0 0.0
    %1802 = vmatpush1.msra.mxu0 0.0
    %1803 = vmatprep.subr.mxu0 0.0
    %1804 = vmatpush1.msra.mxu0 0.0
    %1805 = vmatprep.subr.mxu0 0.0
    %1806 = vmatpush1.msra.mxu0 0.0
    %1807 = vmatprep.subr.mxu0 0.0
    %1808 = vmatpush1.msra.mxu0 0.0
    %1809 = vmatprep.subr.mxu0 0.0
    %1810 = vmatpush1.msra.mxu0 0.0
    %1811 = vmatprep.subr.mxu0 0.0
    %1812 = vmatpush1.msra.mxu0 0.0
    %1813 = vmatprep.subr.mxu0 0.0
    %1814 = vmatpush1.msra.mxu0 0.0
    %1815 = vmatprep.subr.mxu0 0.0
    %1816 = vmatpush1.msra.mxu0 0.0
    %1817 = vmatprep.subr.mxu0 0.0
    %1818 = vmatpush1.msra.mxu0 0.0
    %1819 = vmatprep.subr.mxu0 0.0
    %1820 = vmatpush1.msra.mxu0 0.0
    %1821 = vmatprep.subr.mxu0 0.0
    %1822 = vmatpush1.msra.mxu0 0.0
    %1823 = vmatprep.subr.mxu0 0.0
    %1824 = vmatpush1.msra.mxu0 0.0
    %1825 = vmatprep.subr.mxu0 0.0
    %1826 = vmatpush1.msra.mxu0 0.0
    %1827 = vmatprep.subr.mxu0 0.0
    %1828 = vmatpush1.msra.mxu0 0.0
    %1829 = vmatprep.subr.mxu0 0.0
    %1830 = vmatpush1.msra.mxu0 0.0
    %1831 = vmatprep.subr.mxu0 0.0
    %1832 = vmatpush1.msra.mxu0 0.0
    %1833 = vmatprep.subr.mxu0 0.0
    %1834 = vmatpush1.msra.mxu0 0.0
    %1835 = vmatprep.subr.mxu0 0.0
    %1836 = vmatpush1.msra.mxu0 0.0
    %1837 = vmatprep.subr.mxu0 0.0
    %1838 = vmatpush1.msra.mxu0 0.0
    %1839 = vmatprep.subr.mxu0 0.0
    %1840 = vmatpush1.msra.mxu0 0.0
    %1841 = vmatprep.subr.mxu0 0.0
    %1842 = vmatpush1.msra.mxu0 0.0
    %1843 = vmatprep.mubr.f32.mxu0 0.0
    %1844 = vmatmul.mubr.f32.gmra.mrb[0].mxu0 %v1777
    %v1845 = vpop.f32.mrb[0].mxu0
    %v1846 = vadd.f32 %v1373, %v1845
    %v1847 = vpop.f32.mrb[0].mxu0
    %1848 = vdwg.mxu0
    %v1850 = vrot.slane %v1846, 5
    %v1851 = vrot.slane %v1846, 6
    %v1854 = vadd.f32 %v1356, %v1850
    %v1855 = vadd.f32 %v1361, %v1851
    %v1856 = vxor.u32 %v1854, 2147483648
    %v1857 = vxor.u32 %v1855, 2147483648
    %v1858 = vmul.f32 %v1856, 1.442695
    %v1859 = vpow.pop %v1858
    %v1860 = vmul.f32 %v1857, 1.442695
    %v1861 = vpow.pop %v1860
    %v1862 = vadd.f32 %v1859, 1.0
    %v1863 = vadd.f32 %v1861, 1.0
    %v1864 = vrcp.pop %v1862
    %v1865 = vmul.f32 1.0, %v1864
    %v1866 = vrcp.pop %v1863
    %v1867 = vmul.f32 1.0, %v1866
    %1868 = vrot.lane.b32.xlu0 %v1850, 64
    %v1869 = vpop.permute.xlu0 %1868
    %1870 = vrot.lane.b32.xlu0 %v1851, 64
    %v1871 = vpop.permute.xlu0 %1870
    %v1874 = vmul.f32 %v1865, %v1869
    %v1875 = vmul.f32 %v1867, %v1871
    %1878 = vrot.lane.b32.xlu0 %v1874, 64
    %v1879 = vpop.permute.xlu0 %1878
    %1880 = vrot.lane.b32.xlu0 %v1875, 64
    %v1881 = vpop.permute.xlu0 %1880
    %v1884 = vadd.f32 %v1356, %v1879
    %v1885 = vadd.f32 %v1361, %v1881
    %v1886 = vtanh.pop %v1884
    %v1887 = vtanh.pop %v1885
    %v1888 = vsub.f32 1.0, %v1865
    %v1889 = vsub.f32 1.0, %v1867
    %1892 = vrot.lane.b32.xlu0 %v1886, 96
    %v1893 = vpop.permute.xlu0 %1892
    %1894 = vrot.lane.b32.xlu0 %v1887, 96
    %v1895 = vpop.permute.xlu0 %1894
    %v1898 = vmul.f32 %v1888, %v1893
    %v1899 = vmul.f32 %v1889, %v1895
    %v1900 = vrot.slane %v1768, 7
    %v1901 = vrot.slane %v1769, 7
    %v1904 = vmul.f32 %v1865, %v1900
    %v1905 = vmul.f32 %v1867, %v1901
    %v1906 = vadd.f32 %v1898, %v1904
    %v1907 = vadd.f32 %v1899, %v1905
    %v1910 = vrot.slane %v1906, 3
    %v1911 = vrot.slane %v1907, 2
    %v1912 = vsel %vm289, %v1911, %v1910
    %1913 = vrot.lane.b32.xlu0 %v1912, 96
    %v1914 = vpop.permute.xlu0 %1913
    %v1915 = vsel %vm158, %v1914, 0
    %1917 = vmatprep.subr.mxu0 0.0
    %1918 = vmatpush1.msra.mxu0 %v1365
    %1919 = vmatprep.subr.mxu0 0.0
    %1920 = vmatpush1.msra.mxu0 %v1366
    %1921 = vmatprep.subr.mxu0 0.0
    %1922 = vmatpush1.msra.mxu0 %v1367
    %1923 = vmatprep.subr.mxu0 0.0
    %1924 = vmatpush1.msra.mxu0 %v1368
    %1925 = vmatprep.subr.mxu0 0.0
    %1926 = vmatpush1.msra.mxu0 0.0
    %1927 = vmatprep.subr.mxu0 0.0
    %1928 = vmatpush1.msra.mxu0 0.0
    %1929 = vmatprep.subr.mxu0 0.0
    %1930 = vmatpush1.msra.mxu0 0.0
    %1931 = vmatprep.subr.mxu0 0.0
    %1932 = vmatpush1.msra.mxu0 0.0
    %1933 = vmatprep.subr.mxu0 0.0
    %1934 = vmatpush1.msra.mxu0 0.0
    %1935 = vmatprep.subr.mxu0 0.0
    %1936 = vmatpush1.msra.mxu0 0.0
    %1937 = vmatprep.subr.mxu0 0.0
    %1938 = vmatpush1.msra.mxu0 0.0
    %1939 = vmatprep.subr.mxu0 0.0
    %1940 = vmatpush1.msra.mxu0 0.0
    %1941 = vmatprep.subr.mxu0 0.0
    %1942 = vmatpush1.msra.mxu0 0.0
    %1943 = vmatprep.subr.mxu0 0.0
    %1944 = vmatpush1.msra.mxu0 0.0
    %1945 = vmatprep.subr.mxu0 0.0
    %1946 = vmatpush1.msra.mxu0 0.0
    %1947 = vmatprep.subr.mxu0 0.0
    %1948 = vmatpush1.msra.mxu0 0.0
    %1949 = vmatprep.subr.mxu0 0.0
    %1950 = vmatpush1.msra.mxu0 0.0
    %1951 = vmatprep.subr.mxu0 0.0
    %1952 = vmatpush1.msra.mxu0 0.0
    %1953 = vmatprep.subr.mxu0 0.0
    %1954 = vmatpush1.msra.mxu0 0.0
    %1955 = vmatprep.subr.mxu0 0.0
    %1956 = vmatpush1.msra.mxu0 0.0
    %1957 = vmatprep.subr.mxu0 0.0
    %1958 = vmatpush1.msra.mxu0 0.0
    %1959 = vmatprep.subr.mxu0 0.0
    %1960 = vmatpush1.msra.mxu0 0.0
    %1961 = vmatprep.subr.mxu0 0.0
    %1962 = vmatpush1.msra.mxu0 0.0
    %1963 = vmatprep.subr.mxu0 0.0
    %1964 = vmatpush1.msra.mxu0 0.0
    %1965 = vmatprep.subr.mxu0 0.0
    %1966 = vmatpush1.msra.mxu0 0.0
    %1967 = vmatprep.subr.mxu0 0.0
    %1968 = vmatpush1.msra.mxu0 0.0
    %1969 = vmatprep.subr.mxu0 0.0
    %1970 = vmatpush1.msra.mxu0 0.0
    %1971 = vmatprep.subr.mxu0 0.0
    %1972 = vmatpush1.msra.mxu0 0.0
    %1973 = vmatprep.subr.mxu0 0.0
    %1974 = vmatpush1.msra.mxu0 0.0
    %1975 = vmatprep.subr.mxu0 0.0
    %1976 = vmatpush1.msra.mxu0 0.0
    %1977 = vmatprep.subr.mxu0 0.0
    %1978 = vmatpush1.msra.mxu0 0.0
    %1979 = vmatprep.subr.mxu0 0.0
    %1980 = vmatpush1.msra.mxu0 0.0
    %1981 = vmatprep.mubr.f32.mxu0 0.0
    %1982 = vmatmul.mubr.f32.gmra.mrb[0].mxu0 %v1915
    %v1983 = vpop.f32.mrb[0].mxu0
    %v1984 = vadd.f32 %v1373, %v1983
    %v1985 = vpop.f32.mrb[0].mxu0
    %1986 = vdwg.mxu0
    %v1988 = vrot.slane %v1984, 4
    %v1989 = vrot.slane %v1984, 5
    %v1992 = vadd.f32 %v1356, %v1988
    %v1993 = vadd.f32 %v1361, %v1989
    %v1994 = vxor.u32 %v1992, 2147483648
    %v1995 = vxor.u32 %v1993, 2147483648
    %v1996 = vmul.f32 %v1994, 1.442695
    %v1997 = vpow.pop %v1996
    %v1998 = vmul.f32 %v1995, 1.442695
    %v1999 = vpow.pop %v1998
    %v2000 = vadd.f32 %v1997, 1.0
    %v2001 = vadd.f32 %v1999, 1.0
    %v2002 = vrcp.pop %v2000
    %v2003 = vmul.f32 1.0, %v2002
    %v2004 = vrcp.pop %v2001
    %v2005 = vmul.f32 1.0, %v2004
    %2006 = vrot.lane.b32.xlu0 %v1988, 64
    %v2007 = vpop.permute.xlu0 %2006
    %2008 = vrot.lane.b32.xlu0 %v1989, 64
    %v2009 = vpop.permute.xlu0 %2008
    %v2012 = vmul.f32 %v2003, %v2007
    %v2013 = vmul.f32 %v2005, %v2009
    %2016 = vrot.lane.b32.xlu0 %v2012, 64
    %v2017 = vpop.permute.xlu0 %2016
    %2018 = vrot.lane.b32.xlu0 %v2013, 64
    %v2019 = vpop.permute.xlu0 %2018
    %v2022 = vadd.f32 %v1356, %v2017
    %v2023 = vadd.f32 %v1361, %v2019
    %v2024 = vtanh.pop %v2022
    %v2025 = vtanh.pop %v2023
    %v2026 = vsub.f32 1.0, %v2003
    %v2027 = vsub.f32 1.0, %v2005
    %2030 = vrot.lane.b32.xlu0 %v2024, 96
    %v2031 = vpop.permute.xlu0 %2030
    %2032 = vrot.lane.b32.xlu0 %v2025, 96
    %v2033 = vpop.permute.xlu0 %2032
    %v2036 = vmul.f32 %v2026, %v2031
    %v2037 = vmul.f32 %v2027, %v2033
    %v2038 = vrot.slane %v1906, 7
    %v2039 = vrot.slane %v1907, 7
    %v2042 = vmul.f32 %v2003, %v2038
    %v2043 = vmul.f32 %v2005, %v2039
    %v2044 = vadd.f32 %v2036, %v2042
    %v2045 = vadd.f32 %v2037, %v2043
    %v2048 = vrot.slane %v2044, 4
    %v2049 = vrot.slane %v2045, 3
    %v2050 = vsel %vm289, %v2049, %v2048
    %2051 = vrot.lane.b32.xlu0 %v2050, 96
    %v2052 = vpop.permute.xlu0 %2051
    %v2053 = vsel %vm158, %v2052, 0
    %2055 = vmatprep.subr.mxu0 0.0
    %2056 = vmatpush1.msra.mxu0 %v1365
    %2057 = vmatprep.subr.mxu0 0.0
    %2058 = vmatpush1.msra.mxu0 %v1366
    %2059 = vmatprep.subr.mxu0 0.0
    %2060 = vmatpush1.msra.mxu0 %v1367
    %2061 = vmatprep.subr.mxu0 0.0
    %2062 = vmatpush1.msra.mxu0 %v1368
    %2063 = vmatprep.subr.mxu0 0.0
    %2064 = vmatpush1.msra.mxu0 0.0
    %2065 = vmatprep.subr.mxu0 0.0
    %2066 = vmatpush1.msra.mxu0 0.0
    %2067 = vmatprep.subr.mxu0 0.0
    %2068 = vmatpush1.msra.mxu0 0.0
    %2069 = vmatprep.subr.mxu0 0.0
    %2070 = vmatpush1.msra.mxu0 0.0
    %2071 = vmatprep.subr.mxu0 0.0
    %2072 = vmatpush1.msra.mxu0 0.0
    %2073 = vmatprep.subr.mxu0 0.0
    %2074 = vmatpush1.msra.mxu0 0.0
    %2075 = vmatprep.subr.mxu0 0.0
    %2076 = vmatpush1.msra.mxu0 0.0
    %2077 = vmatprep.subr.mxu0 0.0
    %2078 = vmatpush1.msra.mxu0 0.0
    %2079 = vmatprep.subr.mxu0 0.0
    %2080 = vmatpush1.msra.mxu0 0.0
    %2081 = vmatprep.subr.mxu0 0.0
    %2082 = vmatpush1.msra.mxu0 0.0
    %2083 = vmatprep.subr.mxu0 0.0
    %2084 = vmatpush1.msra.mxu0 0.0
    %2085 = vmatprep.subr.mxu0 0.0
    %2086 = vmatpush1.msra.mxu0 0.0
    %2087 = vmatprep.subr.mxu0 0.0
    %2088 = vmatpush1.msra.mxu0 0.0
    %2089 = vmatprep.subr.mxu0 0.0
    %2090 = vmatpush1.msra.mxu0 0.0
    %2091 = vmatprep.subr.mxu0 0.0
    %2092 = vmatpush1.msra.mxu0 0.0
    %2093 = vmatprep.subr.mxu0 0.0
    %2094 = vmatpush1.msra.mxu0 0.0
    %2095 = vmatprep.subr.mxu0 0.0
    %2096 = vmatpush1.msra.mxu0 0.0
    %2097 = vmatprep.subr.mxu0 0.0
    %2098 = vmatpush1.msra.mxu0 0.0
    %2099 = vmatprep.subr.mxu0 0.0
    %2100 = vmatpush1.msra.mxu0 0.0
    %2101 = vmatprep.subr.mxu0 0.0
    %2102 = vmatpush1.msra.mxu0 0.0
    %2103 = vmatprep.subr.mxu0 0.0
    %2104 = vmatpush1.msra.mxu0 0.0
    %2105 = vmatprep.subr.mxu0 0.0
    %2106 = vmatpush1.msra.mxu0 0.0
    %2107 = vmatprep.subr.mxu0 0.0
    %2108 = vmatpush1.msra.mxu0 0.0
    %2109 = vmatprep.subr.mxu0 0.0
    %2110 = vmatpush1.msra.mxu0 0.0
    %2111 = vmatprep.subr.mxu0 0.0
    %2112 = vmatpush1.msra.mxu0 0.0
    %2113 = vmatprep.subr.mxu0 0.0
    %2114 = vmatpush1.msra.mxu0 0.0
    %2115 = vmatprep.subr.mxu0 0.0
    %2116 = vmatpush1.msra.mxu0 0.0
    %2117 = vmatprep.subr.mxu0 0.0
    %2118 = vmatpush1.msra.mxu0 0.0
    %2119 = vmatprep.mubr.f32.mxu0 0.0
    %2120 = vmatmul.mubr.f32.gmra.mrb[0].mxu0 %v2053
    %v2121 = vpop.f32.mrb[0].mxu0
    %v2122 = vadd.f32 %v1373, %v2121
    %v2123 = vpop.f32.mrb[0].mxu0
    %2124 = vdwg.mxu0
    %v2126 = vrot.slane %v2122, 3
    %v2127 = vrot.slane %v2122, 4
    %v2130 = vadd.f32 %v1356, %v2126
    %v2131 = vadd.f32 %v1361, %v2127
    %v2132 = vxor.u32 %v2130, 2147483648
    %v2133 = vxor.u32 %v2131, 2147483648
    %v2134 = vmul.f32 %v2132, 1.442695
    %v2135 = vpow.pop %v2134
    %v2136 = vmul.f32 %v2133, 1.442695
    %v2137 = vpow.pop %v2136
    %v2138 = vadd.f32 %v2135, 1.0
    %v2139 = vadd.f32 %v2137, 1.0
    %v2140 = vrcp.pop %v2138
    %v2141 = vmul.f32 1.0, %v2140
    %v2142 = vrcp.pop %v2139
    %v2143 = vmul.f32 1.0, %v2142
    %2144 = vrot.lane.b32.xlu0 %v2126, 64
    %v2145 = vpop.permute.xlu0 %2144
    %2146 = vrot.lane.b32.xlu0 %v2127, 64
    %v2147 = vpop.permute.xlu0 %2146
    %v2150 = vmul.f32 %v2141, %v2145
    %v2151 = vmul.f32 %v2143, %v2147
    %2154 = vrot.lane.b32.xlu0 %v2150, 64
    %v2155 = vpop.permute.xlu0 %2154
    %2156 = vrot.lane.b32.xlu0 %v2151, 64
    %v2157 = vpop.permute.xlu0 %2156
    %v2160 = vadd.f32 %v1356, %v2155
    %v2161 = vadd.f32 %v1361, %v2157
    %v2162 = vtanh.pop %v2160
    %v2163 = vtanh.pop %v2161
    %v2164 = vsub.f32 1.0, %v2141
    %v2165 = vsub.f32 1.0, %v2143
    %2168 = vrot.lane.b32.xlu0 %v2162, 96
    %v2169 = vpop.permute.xlu0 %2168
    %2170 = vrot.lane.b32.xlu0 %v2163, 96
    %v2171 = vpop.permute.xlu0 %2170
    %v2174 = vmul.f32 %v2164, %v2169
    %v2175 = vmul.f32 %v2165, %v2171
    %v2176 = vrot.slane %v2044, 7
    %v2177 = vrot.slane %v2045, 7
    %v2180 = vmul.f32 %v2141, %v2176
    %v2181 = vmul.f32 %v2143, %v2177
    %v2182 = vadd.f32 %v2174, %v2180
    %v2183 = vadd.f32 %v2175, %v2181
    %v2186 = vrot.slane %v2182, 5
    %v2187 = vrot.slane %v2183, 4
    %v2188 = vsel %vm289, %v2187, %v2186
    %2189 = vrot.lane.b32.xlu0 %v2188, 96
    %v2190 = vpop.permute.xlu0 %2189
    %v2191 = vsel %vm158, %v2190, 0
    %2193 = vmatprep.subr.mxu0 0.0
    %2194 = vmatpush1.msra.mxu0 %v1365
    %2195 = vmatprep.subr.mxu0 0.0
    %2196 = vmatpush1.msra.mxu0 %v1366
    %2197 = vmatprep.subr.mxu0 0.0
    %2198 = vmatpush1.msra.mxu0 %v1367
    %2199 = vmatprep.subr.mxu0 0.0
    %2200 = vmatpush1.msra.mxu0 %v1368
    %2201 = vmatprep.subr.mxu0 0.0
    %2202 = vmatpush1.msra.mxu0 0.0
    %2203 = vmatprep.subr.mxu0 0.0
    %2204 = vmatpush1.msra.mxu0 0.0
    %2205 = vmatprep.subr.mxu0 0.0
    %2206 = vmatpush1.msra.mxu0 0.0
    %2207 = vmatprep.subr.mxu0 0.0
    %2208 = vmatpush1.msra.mxu0 0.0
    %2209 = vmatprep.subr.mxu0 0.0
    %2210 = vmatpush1.msra.mxu0 0.0
    %2211 = vmatprep.subr.mxu0 0.0
    %2212 = vmatpush1.msra.mxu0 0.0
    %2213 = vmatprep.subr.mxu0 0.0
    %2214 = vmatpush1.msra.mxu0 0.0
    %2215 = vmatprep.subr.mxu0 0.0
    %2216 = vmatpush1.msra.mxu0 0.0
    %2217 = vmatprep.subr.mxu0 0.0
    %2218 = vmatpush1.msra.mxu0 0.0
    %2219 = vmatprep.subr.mxu0 0.0
    %2220 = vmatpush1.msra.mxu0 0.0
    %2221 = vmatprep.subr.mxu0 0.0
    %2222 = vmatpush1.msra.mxu0 0.0
    %2223 = vmatprep.subr.mxu0 0.0
    %2224 = vmatpush1.msra.mxu0 0.0
    %2225 = vmatprep.subr.mxu0 0.0
    %2226 = vmatpush1.msra.mxu0 0.0
    %2227 = vmatprep.subr.mxu0 0.0
    %2228 = vmatpush1.msra.mxu0 0.0
    %2229 = vmatprep.subr.mxu0 0.0
    %2230 = vmatpush1.msra.mxu0 0.0
    %2231 = vmatprep.subr.mxu0 0.0
    %2232 = vmatpush1.msra.mxu0 0.0
    %2233 = vmatprep.subr.mxu0 0.0
    %2234 = vmatpush1.msra.mxu0 0.0
    %2235 = vmatprep.subr.mxu0 0.0
    %2236 = vmatpush1.msra.mxu0 0.0
    %2237 = vmatprep.subr.mxu0 0.0
    %2238 = vmatpush1.msra.mxu0 0.0
    %2239 = vmatprep.subr.mxu0 0.0
    %2240 = vmatpush1.msra.mxu0 0.0
    %2241 = vmatprep.subr.mxu0 0.0
    %2242 = vmatpush1.msra.mxu0 0.0
    %2243 = vmatprep.subr.mxu0 0.0
    %2244 = vmatpush1.msra.mxu0 0.0
    %2245 = vmatprep.subr.mxu0 0.0
    %2246 = vmatpush1.msra.mxu0 0.0
    %2247 = vmatprep.subr.mxu0 0.0
    %2248 = vmatpush1.msra.mxu0 0.0
    %2249 = vmatprep.subr.mxu0 0.0
    %2250 = vmatpush1.msra.mxu0 0.0
    %2251 = vmatprep.subr.mxu0 0.0
    %2252 = vmatpush1.msra.mxu0 0.0
    %2253 = vmatprep.subr.mxu0 0.0
    %2254 = vmatpush1.msra.mxu0 0.0
    %2255 = vmatprep.subr.mxu0 0.0
    %2256 = vmatpush1.msra.mxu0 0.0
    %2257 = vmatprep.mubr.f32.mxu0 0.0
    %2258 = vmatmul.mubr.f32.gmra.mrb[0].mxu0 %v2191
    %v2259 = vpop.f32.mrb[0].mxu0
    %v2260 = vadd.f32 %v1373, %v2259
    %v2261 = vpop.f32.mrb[0].mxu0
    %2262 = vdwg.mxu0
    %v2264 = vrot.slane %v2260, 2
    %v2265 = vrot.slane %v2260, 3
    %v2268 = vadd.f32 %v1356, %v2264
    %v2269 = vadd.f32 %v1361, %v2265
    %v2270 = vxor.u32 %v2268, 2147483648
    %v2271 = vxor.u32 %v2269, 2147483648
    %v2272 = vmul.f32 %v2270, 1.442695
    %v2273 = vpow.pop %v2272
    %v2274 = vmul.f32 %v2271, 1.442695
    %v2275 = vpow.pop %v2274
    %v2276 = vadd.f32 %v2273, 1.0
    %v2277 = vadd.f32 %v2275, 1.0
    %v2278 = vrcp.pop %v2276
    %v2279 = vmul.f32 1.0, %v2278
    %v2280 = vrcp.pop %v2277
    %v2281 = vmul.f32 1.0, %v2280
    %2282 = vrot.lane.b32.xlu0 %v2264, 64
    %v2283 = vpop.permute.xlu0 %2282
    %2284 = vrot.lane.b32.xlu0 %v2265, 64
    %v2285 = vpop.permute.xlu0 %2284
    %v2288 = vmul.f32 %v2279, %v2283
    %v2289 = vmul.f32 %v2281, %v2285
    %2292 = vrot.lane.b32.xlu0 %v2288, 64
    %v2293 = vpop.permute.xlu0 %2292
    %2294 = vrot.lane.b32.xlu0 %v2289, 64
    %v2295 = vpop.permute.xlu0 %2294
    %v2298 = vadd.f32 %v1356, %v2293
    %v2299 = vadd.f32 %v1361, %v2295
    %v2300 = vtanh.pop %v2298
    %v2301 = vtanh.pop %v2299
    %v2302 = vsub.f32 1.0, %v2279
    %v2303 = vsub.f32 1.0, %v2281
    %2306 = vrot.lane.b32.xlu0 %v2300, 96
    %v2307 = vpop.permute.xlu0 %2306
    %2308 = vrot.lane.b32.xlu0 %v2301, 96
    %v2309 = vpop.permute.xlu0 %2308
    %v2312 = vmul.f32 %v2302, %v2307
    %v2313 = vmul.f32 %v2303, %v2309
    %v2314 = vrot.slane %v2182, 7
    %v2315 = vrot.slane %v2183, 7
    %v2318 = vmul.f32 %v2279, %v2314
    %v2319 = vmul.f32 %v2281, %v2315
    %v2320 = vadd.f32 %v2312, %v2318
    %v2321 = vadd.f32 %v2313, %v2319
    %v2324 = vrot.slane %v2320, 6
    %v2325 = vrot.slane %v2321, 5
    %v2326 = vsel %vm289, %v2325, %v2324
    %2327 = vrot.lane.b32.xlu0 %v2326, 96
    %v2328 = vpop.permute.xlu0 %2327
    %v2329 = vsel %vm158, %v2328, 0
    %2331 = vmatprep.subr.mxu0 0.0
    %2332 = vmatpush1.msra.mxu0 %v1365
    %2333 = vmatprep.subr.mxu0 0.0
    %2334 = vmatpush1.msra.mxu0 %v1366
    %2335 = vmatprep.subr.mxu0 0.0
    %2336 = vmatpush1.msra.mxu0 %v1367
    %2337 = vmatprep.subr.mxu0 0.0
    %2338 = vmatpush1.msra.mxu0 %v1368
    %2339 = vmatprep.subr.mxu0 0.0
    %2340 = vmatpush1.msra.mxu0 0.0
    %2341 = vmatprep.subr.mxu0 0.0
    %2342 = vmatpush1.msra.mxu0 0.0
    %2343 = vmatprep.subr.mxu0 0.0
    %2344 = vmatpush1.msra.mxu0 0.0
    %2345 = vmatprep.subr.mxu0 0.0
    %2346 = vmatpush1.msra.mxu0 0.0
    %2347 = vmatprep.subr.mxu0 0.0
    %2348 = vmatpush1.msra.mxu0 0.0
    %2349 = vmatprep.subr.mxu0 0.0
    %2350 = vmatpush1.msra.mxu0 0.0
    %2351 = vmatprep.subr.mxu0 0.0
    %2352 = vmatpush1.msra.mxu0 0.0
    %2353 = vmatprep.subr.mxu0 0.0
    %2354 = vmatpush1.msra.mxu0 0.0
    %2355 = vmatprep.subr.mxu0 0.0
    %2356 = vmatpush1.msra.mxu0 0.0
    %2357 = vmatprep.subr.mxu0 0.0
    %2358 = vmatpush1.msra.mxu0 0.0
    %2359 = vmatprep.subr.mxu0 0.0
    %2360 = vmatpush1.msra.mxu0 0.0
    %2361 = vmatprep.subr.mxu0 0.0
    %2362 = vmatpush1.msra.mxu0 0.0
    %2363 = vmatprep.subr.mxu0 0.0
    %2364 = vmatpush1.msra.mxu0 0.0
    %2365 = vmatprep.subr.mxu0 0.0
    %2366 = vmatpush1.msra.mxu0 0.0
    %2367 = vmatprep.subr.mxu0 0.0
    %2368 = vmatpush1.msra.mxu0 0.0
    %2369 = vmatprep.subr.mxu0 0.0
    %2370 = vmatpush1.msra.mxu0 0.0
    %2371 = vmatprep.subr.mxu0 0.0
    %2372 = vmatpush1.msra.mxu0 0.0
    %2373 = vmatprep.subr.mxu0 0.0
    %2374 = vmatpush1.msra.mxu0 0.0
    %2375 = vmatprep.subr.mxu0 0.0
    %2376 = vmatpush1.msra.mxu0 0.0
    %2377 = vmatprep.subr.mxu0 0.0
    %2378 = vmatpush1.msra.mxu0 0.0
    %2379 = vmatprep.subr.mxu0 0.0
    %2380 = vmatpush1.msra.mxu0 0.0
    %2381 = vmatprep.subr.mxu0 0.0
    %2382 = vmatpush1.msra.mxu0 0.0
    %2383 = vmatprep.subr.mxu0 0.0
    %2384 = vmatpush1.msra.mxu0 0.0
    %2385 = vmatprep.subr.mxu0 0.0
    %2386 = vmatpush1.msra.mxu0 0.0
    %2387 = vmatprep.subr.mxu0 0.0
    %2388 = vmatpush1.msra.mxu0 0.0
    %2389 = vmatprep.subr.mxu0 0.0
    %2390 = vmatpush1.msra.mxu0 0.0
    %2391 = vmatprep.subr.mxu0 0.0
    %2392 = vmatpush1.msra.mxu0 0.0
    %2393 = vmatprep.subr.mxu0 0.0
    %2394 = vmatpush1.msra.mxu0 0.0
    %2395 = vmatprep.mubr.f32.mxu0 0.0
    %2396 = vmatmul.mubr.f32.gmra.mrb[0].mxu0 %v2329
    %v2397 = vpop.f32.mrb[0].mxu0
    %v2398 = vadd.f32 %v1373, %v2397
    %v2399 = vpop.f32.mrb[0].mxu0
    %2400 = vdwg.mxu0
    %v2402 = vrot.slane %v2398, 1
    %v2403 = vrot.slane %v2398, 2
    %v2406 = vadd.f32 %v1356, %v2402
    %v2407 = vadd.f32 %v1361, %v2403
    %v2408 = vxor.u32 %v2406, 2147483648
    %v2409 = vxor.u32 %v2407, 2147483648
    %v2410 = vmul.f32 %v2408, 1.442695
    %v2411 = vpow.pop %v2410
    %v2412 = vmul.f32 %v2409, 1.442695
    %v2413 = vpow.pop %v2412
    %v2414 = vadd.f32 %v2411, 1.0
    %v2415 = vadd.f32 %v2413, 1.0
    %v2416 = vrcp.pop %v2414
    %v2417 = vmul.f32 1.0, %v2416
    %v2418 = vrcp.pop %v2415
    %v2419 = vmul.f32 1.0, %v2418
    %2420 = vrot.lane.b32.xlu0 %v2402, 64
    %v2421 = vpop.permute.xlu0 %2420
    %2422 = vrot.lane.b32.xlu0 %v2403, 64
    %v2423 = vpop.permute.xlu0 %2422
    %v2426 = vmul.f32 %v2417, %v2421
    %v2427 = vmul.f32 %v2419, %v2423
    %2430 = vrot.lane.b32.xlu0 %v2426, 64
    %v2431 = vpop.permute.xlu0 %2430
    %2432 = vrot.lane.b32.xlu0 %v2427, 64
    %v2433 = vpop.permute.xlu0 %2432
    %v2436 = vadd.f32 %v1356, %v2431
    %v2437 = vadd.f32 %v1361, %v2433
    %v2438 = vtanh.pop %v2436
    %v2439 = vtanh.pop %v2437
    %v2440 = vsub.f32 1.0, %v2417
    %v2441 = vsub.f32 1.0, %v2419
    %2444 = vrot.lane.b32.xlu0 %v2438, 96
    %v2445 = vpop.permute.xlu0 %2444
    %2446 = vrot.lane.b32.xlu0 %v2439, 96
    %v2447 = vpop.permute.xlu0 %2446
    %v2450 = vmul.f32 %v2440, %v2445
    %v2451 = vmul.f32 %v2441, %v2447
    %v2452 = vrot.slane %v2320, 7
    %v2453 = vrot.slane %v2321, 7
    %v2456 = vmul.f32 %v2417, %v2452
    %v2457 = vmul.f32 %v2419, %v2453
    %v2458 = vadd.f32 %v2450, %v2456
    %v2459 = vadd.f32 %v2451, %v2457
    %v2460 = vsel %vm1249, %v1496, %v1631
    %v2461 = vsel %vm1249, %v1497, %v1632
    %v2462 = vsel %vm1252, %v2460, %v1768
    %v2463 = vsel %vm1252, %v2461, %v1769
    %v2464 = vsel %vm1255, %v2462, %v1906
    %v2465 = vsel %vm1255, %v2463, %v1907
    %v2466 = vsel %vm1258, %v2464, %v2044
    %v2467 = vsel %vm1258, %v2465, %v2045
    %v2468 = vsel %vm1261, %v2466, %v2182
    %v2469 = vsel %vm1261, %v2467, %v2183
    %v2470 = vsel %vm1264, %v2468, %v2320
    %v2471 = vsel %vm1264, %v2469, %v2321
    %v2472 = vsel %vm1267, %v2470, %v2458
    %v2473 = vsel %vm1267, %v2471, %v2459
    %s2474 = scalar_lea.vmem [#allocation2], 32
    %v2475 = vld [vmem:[%s2474] sm:$0xff]
    %v2476 = vld [vmem:[%s2474 + $0x8] sm:$0xff]
    %v2477 = vld [vmem:[%s2474 + $0x10] sm:$0xff]
    %v2478 = vld [vmem:[%s2474 + $0x18] sm:$0xff]
    %v2479 = vld [vmem:[%s4 + $0x2] sm:$0x1]
    %v2480 = vlaneseq
    %v2481 = vshrl.u32 %v2480, 7
    %v2482 = vsub.s32 0, %v2481
    %v2483 = vrot.slane %v2479, %v2482
    %2486 = vrot.lane.b32.xlu0 %v2472, 96
    %v2487 = vpop.permute.xlu0 %2486
    %2488 = vrot.lane.b32.xlu0 %v2473, 96
    %v2489 = vpop.permute.xlu0 %2488
    %v2490 = vsel %vm158, %v2487, 0
    %v2492 = vsel %vm158, %v2489, 0
    %2494 = vmatprep.subr.mxu0 0.0
    %2495 = vmatpush1.msra.mxu0 %v2475
    %2496 = vmatprep.subr.mxu0 0.0
    %2497 = vmatpush1.msra.mxu0 %v2476
    %2498 = vmatprep.subr.mxu0 0.0
    %2499 = vmatpush1.msra.mxu0 %v2477
    %2500 = vmatprep.subr.mxu0 0.0
    %2501 = vmatpush1.msra.mxu0 %v2478
    %2502 = vmatprep.subr.mxu0 0.0
    %2503 = vmatpush1.msra.mxu0 0.0
    %2504 = vmatprep.subr.mxu0 0.0
    %2505 = vmatpush1.msra.mxu0 0.0
    %2506 = vmatprep.subr.mxu0 0.0
    %2507 = vmatpush1.msra.mxu0 0.0
    %2508 = vmatprep.subr.mxu0 0.0
    %2509 = vmatpush1.msra.mxu0 0.0
    %2510 = vmatprep.subr.mxu0 0.0
    %2511 = vmatpush1.msra.mxu0 0.0
    %2512 = vmatprep.subr.mxu0 0.0
    %2513 = vmatpush1.msra.mxu0 0.0
    %2514 = vmatprep.subr.mxu0 0.0
    %2515 = vmatpush1.msra.mxu0 0.0
    %2516 = vmatprep.subr.mxu0 0.0
    %2517 = vmatpush1.msra.mxu0 0.0
    %2518 = vmatprep.subr.mxu0 0.0
    %2519 = vmatpush1.msra.mxu0 0.0
    %2520 = vmatprep.subr.mxu0 0.0
    %2521 = vmatpush1.msra.mxu0 0.0
    %2522 = vmatprep.subr.mxu0 0.0
    %2523 = vmatpush1.msra.mxu0 0.0
    %2524 = vmatprep.subr.mxu0 0.0
    %2525 = vmatpush1.msra.mxu0 0.0
    %2526 = vmatprep.subr.mxu0 0.0
    %2527 = vmatpush1.msra.mxu0 0.0
    %2528 = vmatprep.subr.mxu0 0.0
    %2529 = vmatpush1.msra.mxu0 0.0
    %2530 = vmatprep.subr.mxu0 0.0
    %2531 = vmatpush1.msra.mxu0 0.0
    %2532 = vmatprep.subr.mxu0 0.0
    %2533 = vmatpush1.msra.mxu0 0.0
    %2534 = vmatprep.subr.mxu0 0.0
    %2535 = vmatpush1.msra.mxu0 0.0
    %2536 = vmatprep.subr.mxu0 0.0
    %2537 = vmatpush1.msra.mxu0 0.0
    %2538 = vmatprep.subr.mxu0 0.0
    %2539 = vmatpush1.msra.mxu0 0.0
    %2540 = vmatprep.subr.mxu0 0.0
    %2541 = vmatpush1.msra.mxu0 0.0
    %2542 = vmatprep.subr.mxu0 0.0
    %2543 = vmatpush1.msra.mxu0 0.0
    %2544 = vmatprep.subr.mxu0 0.0
    %2545 = vmatpush1.msra.mxu0 0.0
    %2546 = vmatprep.subr.mxu0 0.0
    %2547 = vmatpush1.msra.mxu0 0.0
    %2548 = vmatprep.subr.mxu0 0.0
    %2549 = vmatpush1.msra.mxu0 0.0
    %2550 = vmatprep.subr.mxu0 0.0
    %2551 = vmatpush1.msra.mxu0 0.0
    %2552 = vmatprep.subr.mxu0 0.0
    %2553 = vmatpush1.msra.mxu0 0.0
    %2554 = vmatprep.subr.mxu0 0.0
    %2555 = vmatpush1.msra.mxu0 0.0
    %2556 = vmatprep.subr.mxu0 0.0
    %2557 = vmatpush1.msra.mxu0 0.0
    %2558 = vmatprep.mubr.f32.mxu0 0.0
    %2559 = vmatmul.mubr.f32.gmra.mrb[0].mxu0 %v2490
    %v2560 = vpop.f32.mrb[0].mxu0
    %v2561 = vadd.f32 %v2483, %v2560
    %v2562 = vpop.f32.mrb[0].mxu0
    %2563 = vmatprep.mubr.f32.mxu0 0.0
    %2564 = vmatmul.mubr.f32.gmra.mrb[0].mxu0 %v2492
    %v2565 = vpop.f32.mrb[0].mxu0
    %v2566 = vadd.f32 %v2483, %v2565
    %v2567 = vpop.f32.mrb[0].mxu0
    %2568 = vdwg.mxu0
    %s2569 = scalar_lea.vmem [#allocation5], 64
    %v2570 = vld [vmem:[%s2569] sm:$0xff]
    %v2571 = vld [vmem:[%s2569 + $0x8] sm:$0xff]
    %v2572 = vld [vmem:[%s2569 + $0x10] sm:$0xff]
    %v2573 = vld [vmem:[%s2569 + $0x18] sm:$0xff]
    %v2574 = vld [vmem:[%s5 + $0x2] sm:$0x1]
    %v2575 = vlaneseq
    %v2576 = vshrl.u32 %v2575, 7
    %v2577 = vsub.s32 0, %v2576
    %v2578 = vrot.slane %v2574, %v2577
    %2579 = vmatprep.subr.mxu0 0.0
    %2580 = vmatpush1.msra.mxu0 %v2570
    %2581 = vmatprep.subr.mxu0 0.0
    %2582 = vmatpush1.msra.mxu0 %v2571
    %2583 = vmatprep.subr.mxu0 0.0
    %2584 = vmatpush1.msra.mxu0 %v2572
    %2585 = vmatprep.subr.mxu0 0.0
    %2586 = vmatpush1.msra.mxu0 %v2573
    %2587 = vmatprep.subr.mxu0 0.0
    %2588 = vmatpush1.msra.mxu0 0.0
    %2589 = vmatprep.subr.mxu0 0.0
    %2590 = vmatpush1.msra.mxu0 0.0
    %2591 = vmatprep.subr.mxu0 0.0
    %2592 = vmatpush1.msra.mxu0 0.0
    %2593 = vmatprep.subr.mxu0 0.0
    %2594 = vmatpush1.msra.mxu0 0.0
    %2595 = vmatprep.subr.mxu0 0.0
    %2596 = vmatpush1.msra.mxu0 0.0
    %2597 = vmatprep.subr.mxu0 0.0
    %2598 = vmatpush1.msra.mxu0 0.0
    %2599 = vmatprep.subr.mxu0 0.0
    %2600 = vmatpush1.msra.mxu0 0.0
    %2601 = vmatprep.subr.mxu0 0.0
    %2602 = vmatpush1.msra.mxu0 0.0
    %2603 = vmatprep.subr.mxu0 0.0
    %2604 = vmatpush1.msra.mxu0 0.0
    %2605 = vmatprep.subr.mxu0 0.0
    %2606 = vmatpush1.msra.mxu0 0.0
    %2607 = vmatprep.subr.mxu0 0.0
    %2608 = vmatpush1.msra.mxu0 0.0
    %2609 = vmatprep.subr.mxu0 0.0
    %2610 = vmatpush1.msra.mxu0 0.0
    %2611 = vmatprep.subr.mxu0 0.0
    %2612 = vmatpush1.msra.mxu0 0.0
    %2613 = vmatprep.subr.mxu0 0.0
    %2614 = vmatpush1.msra.mxu0 0.0
    %2615 = vmatprep.subr.mxu0 0.0
    %2616 = vmatpush1.msra.mxu0 0.0
    %2617 = vmatprep.subr.mxu0 0.0
    %2618 = vmatpush1.msra.mxu0 0.0
    %2619 = vmatprep.subr.mxu0 0.0
    %2620 = vmatpush1.msra.mxu0 0.0
    %2621 = vmatprep.subr.mxu0 0.0
    %2622 = vmatpush1.msra.mxu0 0.0
    %2623 = vmatprep.subr.mxu0 0.0
    %2624 = vmatpush1.msra.mxu0 0.0
    %2625 = vmatprep.subr.mxu0 0.0
    %2626 = vmatpush1.msra.mxu0 0.0
    %2627 = vmatprep.subr.mxu0 0.0
    %2628 = vmatpush1.msra.mxu0 0.0
    %2629 = vmatprep.subr.mxu0 0.0
    %2630 = vmatpush1.msra.mxu0 0.0
    %2631 = vmatprep.subr.mxu0 0.0
    %2632 = vmatpush1.msra.mxu0 0.0
    %2633 = vmatprep.subr.mxu0 0.0
    %2634 = vmatpush1.msra.mxu0 0.0
    %2635 = vmatprep.subr.mxu0 0.0
    %2636 = vmatpush1.msra.mxu0 0.0
    %2637 = vmatprep.subr.mxu0 0.0
    %2638 = vmatpush1.msra.mxu0 0.0
    %2639 = vmatprep.subr.mxu0 0.0
    %2640 = vmatpush1.msra.mxu0 0.0
    %2641 = vmatprep.subr.mxu0 0.0
    %2642 = vmatpush1.msra.mxu0 0.0
    %2643 = vmatprep.mubr.f32.mxu0 0.0
    %2644 = vmatmul.mubr.f32.gmra.mrb[0].mxu0 %v160
    %v2645 = vpop.f32.mrb[0].mxu0
    %v2646 = vadd.f32 %v2578, %v2645
    %v2647 = vpop.f32.mrb[0].mxu0
    %2648 = vdwg.mxu0
    %v2650 = vrot.slane %v2646, 1
    %v2653 = vadd.f32 %v2561, %v2646
    %v2654 = vadd.f32 %v2566, %v2650
    %v2655 = vxor.u32 %v2653, 2147483648
    %v2656 = vxor.u32 %v2654, 2147483648
    %v2657 = vmul.f32 %v2655, 1.442695
    %v2658 = vpow.pop %v2657
    %v2659 = vmul.f32 %v2656, 1.442695
    %v2660 = vpow.pop %v2659
    %v2661 = vadd.f32 %v2658, 1.0
    %v2662 = vadd.f32 %v2660, 1.0
    %v2663 = vrcp.pop %v2661
    %v2664 = vmul.f32 1.0, %v2663
    %v2665 = vrcp.pop %v2662
    %v2666 = vmul.f32 1.0, %v2665
    %2667 = vrot.lane.b32.xlu0 %v2646, 64
    %v2668 = vpop.permute.xlu0 %2667
    %2669 = vrot.lane.b32.xlu0 %v2650, 64
    %v2670 = vpop.permute.xlu0 %2669
    %v2673 = vmul.f32 %v2664, %v2668
    %v2674 = vmul.f32 %v2666, %v2670
    %2677 = vrot.lane.b32.xlu0 %v2673, 64
    %v2678 = vpop.permute.xlu0 %2677
    %2679 = vrot.lane.b32.xlu0 %v2674, 64
    %v2680 = vpop.permute.xlu0 %2679
    %v2683 = vadd.f32 %v2561, %v2678
    %v2684 = vadd.f32 %v2566, %v2680
    %v2685 = vtanh.pop %v2683
    %v2686 = vtanh.pop %v2684
    %v2687 = vsub.f32 1.0, %v2664
    %v2688 = vsub.f32 1.0, %v2666
    %2691 = vrot.lane.b32.xlu0 %v2685, 96
    %v2692 = vpop.permute.xlu0 %2691
    %2693 = vrot.lane.b32.xlu0 %v2686, 96
    %v2694 = vpop.permute.xlu0 %2693
    %v2697 = vmul.f32 %v2687, %v2692
    %v2698 = vmul.f32 %v2688, %v2694
    %v2699 = vmul.f32 %v2664, 0.0
    %v2700 = vmul.f32 %v2666, 0.0
    %v2701 = vadd.f32 %v2697, %v2699
    %v2702 = vadd.f32 %v2698, %v2700
    %v2705 = vrot.slane %v2702, 7
    %v2706 = vsel %vm289, %v2705, %v2701
    %2707 = vrot.lane.b32.xlu0 %v2706, 96
    %v2708 = vpop.permute.xlu0 %2707
    %v2709 = vsel %vm158, %v2708, 0
    %2711 = vmatprep.subr.mxu0 0.0
    %2712 = vmatpush1.msra.mxu0 %v2570
    %2713 = vmatprep.subr.mxu0 0.0
    %2714 = vmatpush1.msra.mxu0 %v2571
    %2715 = vmatprep.subr.mxu0 0.0
    %2716 = vmatpush1.msra.mxu0 %v2572
    %2717 = vmatprep.subr.mxu0 0.0
    %2718 = vmatpush1.msra.mxu0 %v2573
    %2719 = vmatprep.subr.mxu0 0.0
    %2720 = vmatpush1.msra.mxu0 0.0
    %2721 = vmatprep.subr.mxu0 0.0
    %2722 = vmatpush1.msra.mxu0 0.0
    %2723 = vmatprep.subr.mxu0 0.0
    %2724 = vmatpush1.msra.mxu0 0.0
    %2725 = vmatprep.subr.mxu0 0.0
    %2726 = vmatpush1.msra.mxu0 0.0
    %2727 = vmatprep.subr.mxu0 0.0
    %2728 = vmatpush1.msra.mxu0 0.0
    %2729 = vmatprep.subr.mxu0 0.0
    %2730 = vmatpush1.msra.mxu0 0.0
    %2731 = vmatprep.subr.mxu0 0.0
    %2732 = vmatpush1.msra.mxu0 0.0
    %2733 = vmatprep.subr.mxu0 0.0
    %2734 = vmatpush1.msra.mxu0 0.0
    %2735 = vmatprep.subr.mxu0 0.0
    %2736 = vmatpush1.msra.mxu0 0.0
    %2737 = vmatprep.subr.mxu0 0.0
    %2738 = vmatpush1.msra.mxu0 0.0
    %2739 = vmatprep.subr.mxu0 0.0
    %2740 = vmatpush1.msra.mxu0 0.0
    %2741 = vmatprep.subr.mxu0 0.0
    %2742 = vmatpush1.msra.mxu0 0.0
    %2743 = vmatprep.subr.mxu0 0.0
    %2744 = vmatpush1.msra.mxu0 0.0
    %2745 = vmatprep.subr.mxu0 0.0
    %2746 = vmatpush1.msra.mxu0 0.0
    %2747 = vmatprep.subr.mxu0 0.0
    %2748 = vmatpush1.msra.mxu0 0.0
    %2749 = vmatprep.subr.mxu0 0.0
    %2750 = vmatpush1.msra.mxu0 0.0
    %2751 = vmatprep.subr.mxu0 0.0
    %2752 = vmatpush1.msra.mxu0 0.0
    %2753 = vmatprep.subr.mxu0 0.0
    %2754 = vmatpush1.msra.mxu0 0.0
    %2755 = vmatprep.subr.mxu0 0.0
    %2756 = vmatpush1.msra.mxu0 0.0
    %2757 = vmatprep.subr.mxu0 0.0
    %2758 = vmatpush1.msra.mxu0 0.0
    %2759 = vmatprep.subr.mxu0 0.0
    %2760 = vmatpush1.msra.mxu0 0.0
    %2761 = vmatprep.subr.mxu0 0.0
    %2762 = vmatpush1.msra.mxu0 0.0
    %2763 = vmatprep.subr.mxu0 0.0
    %2764 = vmatpush1.msra.mxu0 0.0
    %2765 = vmatprep.subr.mxu0 0.0
    %2766 = vmatpush1.msra.mxu0 0.0
    %2767 = vmatprep.subr.mxu0 0.0
    %2768 = vmatpush1.msra.mxu0 0.0
    %2769 = vmatprep.subr.mxu0 0.0
    %2770 = vmatpush1.msra.mxu0 0.0
    %2771 = vmatprep.subr.mxu0 0.0
    %2772 = vmatpush1.msra.mxu0 0.0
    %2773 = vmatprep.subr.mxu0 0.0
    %2774 = vmatpush1.msra.mxu0 0.0
    %2775 = vmatprep.mubr.f32.mxu0 0.0
    %2776 = vmatmul.mubr.f32.gmra.mrb[0].mxu0 %v2709
    %v2777 = vpop.f32.mrb[0].mxu0
    %v2778 = vadd.f32 %v2578, %v2777
    %v2779 = vpop.f32.mrb[0].mxu0
    %2780 = vdwg.mxu0
    %v2782 = vrot.slane %v2778, 7
    %v2785 = vadd.f32 %v2561, %v2782
    %v2786 = vadd.f32 %v2566, %v2778
    %v2787 = vxor.u32 %v2785, 2147483648
    %v2788 = vxor.u32 %v2786, 2147483648
    %v2789 = vmul.f32 %v2787, 1.442695
    %v2790 = vpow.pop %v2789
    %v2791 = vmul.f32 %v2788, 1.442695
    %v2792 = vpow.pop %v2791
    %v2793 = vadd.f32 %v2790, 1.0
    %v2794 = vadd.f32 %v2792, 1.0
    %v2795 = vrcp.pop %v2793
    %v2796 = vmul.f32 1.0, %v2795
    %v2797 = vrcp.pop %v2794
    %v2798 = vmul.f32 1.0, %v2797
    %2799 = vrot.lane.b32.xlu0 %v2782, 64
    %v2800 = vpop.permute.xlu0 %2799
    %2801 = vrot.lane.b32.xlu0 %v2778, 64
    %v2802 = vpop.permute.xlu0 %2801
    %v2805 = vmul.f32 %v2796, %v2800
    %v2806 = vmul.f32 %v2798, %v2802
    %2809 = vrot.lane.b32.xlu0 %v2805, 64
    %v2810 = vpop.permute.xlu0 %2809
    %2811 = vrot.lane.b32.xlu0 %v2806, 64
    %v2812 = vpop.permute.xlu0 %2811
    %v2815 = vadd.f32 %v2561, %v2810
    %v2816 = vadd.f32 %v2566, %v2812
    %v2817 = vtanh.pop %v2815
    %v2818 = vtanh.pop %v2816
    %v2819 = vsub.f32 1.0, %v2796
    %v2820 = vsub.f32 1.0, %v2798
    %2823 = vrot.lane.b32.xlu0 %v2817, 96
    %v2824 = vpop.permute.xlu0 %2823
    %2825 = vrot.lane.b32.xlu0 %v2818, 96
    %v2826 = vpop.permute.xlu0 %2825
    %v2829 = vmul.f32 %v2819, %v2824
    %v2830 = vmul.f32 %v2820, %v2826
    %v2831 = vrot.slane %v2701, 7
    %v2834 = vmul.f32 %v2796, %v2831
    %v2835 = vmul.f32 %v2798, %v2705
    %v2836 = vadd.f32 %v2829, %v2834
    %v2837 = vadd.f32 %v2830, %v2835
    %v2840 = vrot.slane %v2836, 1
    %v2841 = vsel %vm289, %v2837, %v2840
    %2842 = vrot.lane.b32.xlu0 %v2841, 96
    %v2843 = vpop.permute.xlu0 %2842
    %v2844 = vsel %vm158, %v2843, 0
    %2846 = vmatprep.subr.mxu0 0.0
    %2847 = vmatpush1.msra.mxu0 %v2570
    %2848 = vmatprep.subr.mxu0 0.0
    %2849 = vmatpush1.msra.mxu0 %v2571
    %2850 = vmatprep.subr.mxu0 0.0
    %2851 = vmatpush1.msra.mxu0 %v2572
    %2852 = vmatprep.subr.mxu0 0.0
    %2853 = vmatpush1.msra.mxu0 %v2573
    %2854 = vmatprep.subr.mxu0 0.0
    %2855 = vmatpush1.msra.mxu0 0.0
    %2856 = vmatprep.subr.mxu0 0.0
    %2857 = vmatpush1.msra.mxu0 0.0
    %2858 = vmatprep.subr.mxu0 0.0
    %2859 = vmatpush1.msra.mxu0 0.0
    %2860 = vmatprep.subr.mxu0 0.0
    %2861 = vmatpush1.msra.mxu0 0.0
    %2862 = vmatprep.subr.mxu0 0.0
    %2863 = vmatpush1.msra.mxu0 0.0
    %2864 = vmatprep.subr.mxu0 0.0
    %2865 = vmatpush1.msra.mxu0 0.0
    %2866 = vmatprep.subr.mxu0 0.0
    %2867 = vmatpush1.msra.mxu0 0.0
    %2868 = vmatprep.subr.mxu0 0.0
    %2869 = vmatpush1.msra.mxu0 0.0
    %2870 = vmatprep.subr.mxu0 0.0
    %2871 = vmatpush1.msra.mxu0 0.0
    %2872 = vmatprep.subr.mxu0 0.0
    %2873 = vmatpush1.msra.mxu0 0.0
    %2874 = vmatprep.subr.mxu0 0.0
    %2875 = vmatpush1.msra.mxu0 0.0
    %2876 = vmatprep.subr.mxu0 0.0
    %2877 = vmatpush1.msra.mxu0 0.0
    %2878 = vmatprep.subr.mxu0 0.0
    %2879 = vmatpush1.msra.mxu0 0.0
    %2880 = vmatprep.subr.mxu0 0.0
    %2881 = vmatpush1.msra.mxu0 0.0
    %2882 = vmatprep.subr.mxu0 0.0
    %2883 = vmatpush1.msra.mxu0 0.0
    %2884 = vmatprep.subr.mxu0 0.0
    %2885 = vmatpush1.msra.mxu0 0.0
    %2886 = vmatprep.subr.mxu0 0.0
    %2887 = vmatpush1.msra.mxu0 0.0
    %2888 = vmatprep.subr.mxu0 0.0
    %2889 = vmatpush1.msra.mxu0 0.0
    %2890 = vmatprep.subr.mxu0 0.0
    %2891 = vmatpush1.msra.mxu0 0.0
    %2892 = vmatprep.subr.mxu0 0.0
    %2893 = vmatpush1.msra.mxu0 0.0
    %2894 = vmatprep.subr.mxu0 0.0
    %2895 = vmatpush1.msra.mxu0 0.0
    %2896 = vmatprep.subr.mxu0 0.0
    %2897 = vmatpush1.msra.mxu0 0.0
    %2898 = vmatprep.subr.mxu0 0.0
    %2899 = vmatpush1.msra.mxu0 0.0
    %2900 = vmatprep.subr.mxu0 0.0
    %2901 = vmatpush1.msra.mxu0 0.0
    %2902 = vmatprep.subr.mxu0 0.0
    %2903 = vmatpush1.msra.mxu0 0.0
    %2904 = vmatprep.subr.mxu0 0.0
    %2905 = vmatpush1.msra.mxu0 0.0
    %2906 = vmatprep.subr.mxu0 0.0
    %2907 = vmatpush1.msra.mxu0 0.0
    %2908 = vmatprep.subr.mxu0 0.0
    %2909 = vmatpush1.msra.mxu0 0.0
    %2910 = vmatprep.mubr.f32.mxu0 0.0
    %2911 = vmatmul.mubr.f32.gmra.mrb[0].mxu0 %v2844
    %v2912 = vpop.f32.mrb[0].mxu0
    %v2913 = vadd.f32 %v2578, %v2912
    %v2914 = vpop.f32.mrb[0].mxu0
    %2915 = vdwg.mxu0
    %v2917 = vrot.slane %v2913, 6
    %v2918 = vrot.slane %v2913, 7
    %v2921 = vadd.f32 %v2561, %v2917
    %v2922 = vadd.f32 %v2566, %v2918
    %v2923 = vxor.u32 %v2921, 2147483648
    %v2924 = vxor.u32 %v2922, 2147483648
    %v2925 = vmul.f32 %v2923, 1.442695
    %v2926 = vpow.pop %v2925
    %v2927 = vmul.f32 %v2924, 1.442695
    %v2928 = vpow.pop %v2927
    %v2929 = vadd.f32 %v2926, 1.0
    %v2930 = vadd.f32 %v2928, 1.0
    %v2931 = vrcp.pop %v2929
    %v2932 = vmul.f32 1.0, %v2931
    %v2933 = vrcp.pop %v2930
    %v2934 = vmul.f32 1.0, %v2933
    %2935 = vrot.lane.b32.xlu0 %v2917, 64
    %v2936 = vpop.permute.xlu0 %2935
    %2937 = vrot.lane.b32.xlu0 %v2918, 64
    %v2938 = vpop.permute.xlu0 %2937
    %v2941 = vmul.f32 %v2932, %v2936
    %v2942 = vmul.f32 %v2934, %v2938
    %2945 = vrot.lane.b32.xlu0 %v2941, 64
    %v2946 = vpop.permute.xlu0 %2945
    %2947 = vrot.lane.b32.xlu0 %v2942, 64
    %v2948 = vpop.permute.xlu0 %2947
    %v2951 = vadd.f32 %v2561, %v2946
    %v2952 = vadd.f32 %v2566, %v2948
    %v2953 = vtanh.pop %v2951
    %v2954 = vtanh.pop %v2952
    %v2955 = vsub.f32 1.0, %v2932
    %v2956 = vsub.f32 1.0, %v2934
    %2959 = vrot.lane.b32.xlu0 %v2953, 96
    %v2960 = vpop.permute.xlu0 %2959
    %2961 = vrot.lane.b32.xlu0 %v2954, 96
    %v2962 = vpop.permute.xlu0 %2961
    %v2965 = vmul.f32 %v2955, %v2960
    %v2966 = vmul.f32 %v2956, %v2962
    %v2967 = vrot.slane %v2836, 7
    %v2968 = vrot.slane %v2837, 7
    %v2971 = vmul.f32 %v2932, %v2967
    %v2972 = vmul.f32 %v2934, %v2968
    %v2973 = vadd.f32 %v2965, %v2971
    %v2974 = vadd.f32 %v2966, %v2972
    %v2977 = vrot.slane %v2973, 2
    %v2978 = vrot.slane %v2974, 1
    %v2979 = vsel %vm289, %v2978, %v2977
    %2980 = vrot.lane.b32.xlu0 %v2979, 96
    %v2981 = vpop.permute.xlu0 %2980
    %v2982 = vsel %vm158, %v2981, 0
    %2984 = vmatprep.subr.mxu0 0.0
    %2985 = vmatpush1.msra.mxu0 %v2570
    %2986 = vmatprep.subr.mxu0 0.0
    %2987 = vmatpush1.msra.mxu0 %v2571
    %2988 = vmatprep.subr.mxu0 0.0
    %2989 = vmatpush1.msra.mxu0 %v2572
    %2990 = vmatprep.subr.mxu0 0.0
    %2991 = vmatpush1.msra.mxu0 %v2573
    %2992 = vmatprep.subr.mxu0 0.0
    %2993 = vmatpush1.msra.mxu0 0.0
    %2994 = vmatprep.subr.mxu0 0.0
    %2995 = vmatpush1.msra.mxu0 0.0
    %2996 = vmatprep.subr.mxu0 0.0
    %2997 = vmatpush1.msra.mxu0 0.0
    %2998 = vmatprep.subr.mxu0 0.0
    %2999 = vmatpush1.msra.mxu0 0.0
    %3000 = vmatprep.subr.mxu0 0.0
    %3001 = vmatpush1.msra.mxu0 0.0
    %3002 = vmatprep.subr.mxu0 0.0
    %3003 = vmatpush1.msra.mxu0 0.0
    %3004 = vmatprep.subr.mxu0 0.0
    %3005 = vmatpush1.msra.mxu0 0.0
    %3006 = vmatprep.subr.mxu0 0.0
    %3007 = vmatpush1.msra.mxu0 0.0
    %3008 = vmatprep.subr.mxu0 0.0
    %3009 = vmatpush1.msra.mxu0 0.0
    %3010 = vmatprep.subr.mxu0 0.0
    %3011 = vmatpush1.msra.mxu0 0.0
    %3012 = vmatprep.subr.mxu0 0.0
    %3013 = vmatpush1.msra.mxu0 0.0
    %3014 = vmatprep.subr.mxu0 0.0
    %3015 = vmatpush1.msra.mxu0 0.0
    %3016 = vmatprep.subr.mxu0 0.0
    %3017 = vmatpush1.msra.mxu0 0.0
    %3018 = vmatprep.subr.mxu0 0.0
    %3019 = vmatpush1.msra.mxu0 0.0
    %3020 = vmatprep.subr.mxu0 0.0
    %3021 = vmatpush1.msra.mxu0 0.0
    %3022 = vmatprep.subr.mxu0 0.0
    %3023 = vmatpush1.msra.mxu0 0.0
    %3024 = vmatprep.subr.mxu0 0.0
    %3025 = vmatpush1.msra.mxu0 0.0
    %3026 = vmatprep.subr.mxu0 0.0
    %3027 = vmatpush1.msra.mxu0 0.0
    %3028 = vmatprep.subr.mxu0 0.0
    %3029 = vmatpush1.msra.mxu0 0.0
    %3030 = vmatprep.subr.mxu0 0.0
    %3031 = vmatpush1.msra.mxu0 0.0
    %3032 = vmatprep.subr.mxu0 0.0
    %3033 = vmatpush1.msra.mxu0 0.0
    %3034 = vmatprep.subr.mxu0 0.0
    %3035 = vmatpush1.msra.mxu0 0.0
    %3036 = vmatprep.subr.mxu0 0.0
    %3037 = vmatpush1.msra.mxu0 0.0
    %3038 = vmatprep.subr.mxu0 0.0
    %3039 = vmatpush1.msra.mxu0 0.0
    %3040 = vmatprep.subr.mxu0 0.0
    %3041 = vmatpush1.msra.mxu0 0.0
    %3042 = vmatprep.subr.mxu0 0.0
    %3043 = vmatpush1.msra.mxu0 0.0
    %3044 = vmatprep.subr.mxu0 0.0
    %3045 = vmatpush1.msra.mxu0 0.0
    %3046 = vmatprep.subr.mxu0 0.0
    %3047 = vmatpush1.msra.mxu0 0.0
    %3048 = vmatprep.mubr.f32.mxu0 0.0
    %3049 = vmatmul.mubr.f32.gmra.mrb[0].mxu0 %v2982
    %v3050 = vpop.f32.mrb[0].mxu0
    %v3051 = vadd.f32 %v2578, %v3050
    %v3052 = vpop.f32.mrb[0].mxu0
    %3053 = vdwg.mxu0
    %v3055 = vrot.slane %v3051, 5
    %v3056 = vrot.slane %v3051, 6
    %v3059 = vadd.f32 %v2561, %v3055
    %v3060 = vadd.f32 %v2566, %v3056
    %v3061 = vxor.u32 %v3059, 2147483648
    %v3062 = vxor.u32 %v3060, 2147483648
    %v3063 = vmul.f32 %v3061, 1.442695
    %v3064 = vpow.pop %v3063
    %v3065 = vmul.f32 %v3062, 1.442695
    %v3066 = vpow.pop %v3065
    %v3067 = vadd.f32 %v3064, 1.0
    %v3068 = vadd.f32 %v3066, 1.0
    %v3069 = vrcp.pop %v3067
    %v3070 = vmul.f32 1.0, %v3069
    %v3071 = vrcp.pop %v3068
    %v3072 = vmul.f32 1.0, %v3071
    %3073 = vrot.lane.b32.xlu0 %v3055, 64
    %v3074 = vpop.permute.xlu0 %3073
    %3075 = vrot.lane.b32.xlu0 %v3056, 64
    %v3076 = vpop.permute.xlu0 %3075
    %v3079 = vmul.f32 %v3070, %v3074
    %v3080 = vmul.f32 %v3072, %v3076
    %3083 = vrot.lane.b32.xlu0 %v3079, 64
    %v3084 = vpop.permute.xlu0 %3083
    %3085 = vrot.lane.b32.xlu0 %v3080, 64
    %v3086 = vpop.permute.xlu0 %3085
    %v3089 = vadd.f32 %v2561, %v3084
    %v3090 = vadd.f32 %v2566, %v3086
    %v3091 = vtanh.pop %v3089
    %v3092 = vtanh.pop %v3090
    %v3093 = vsub.f32 1.0, %v3070
    %v3094 = vsub.f32 1.0, %v3072
    %3097 = vrot.lane.b32.xlu0 %v3091, 96
    %v3098 = vpop.permute.xlu0 %3097
    %3099 = vrot.lane.b32.xlu0 %v3092, 96
    %v3100 = vpop.permute.xlu0 %3099
    %v3103 = vmul.f32 %v3093, %v3098
    %v3104 = vmul.f32 %v3094, %v3100
    %v3105 = vrot.slane %v2973, 7
    %v3106 = vrot.slane %v2974, 7
    %v3109 = vmul.f32 %v3070, %v3105
    %v3110 = vmul.f32 %v3072, %v3106
    %v3111 = vadd.f32 %v3103, %v3109
    %v3112 = vadd.f32 %v3104, %v3110
    %v3115 = vrot.slane %v3111, 3
    %v3116 = vrot.slane %v3112, 2
    %v3117 = vsel %vm289, %v3116, %v3115
    %3118 = vrot.lane.b32.xlu0 %v3117, 96
    %v3119 = vpop.permute.xlu0 %3118
    %v3120 = vsel %vm158, %v3119, 0
    %3122 = vmatprep.subr.mxu0 0.0
    %3123 = vmatpush1.msra.mxu0 %v2570
    %3124 = vmatprep.subr.mxu0 0.0
    %3125 = vmatpush1.msra.mxu0 %v2571
    %3126 = vmatprep.subr.mxu0 0.0
    %3127 = vmatpush1.msra.mxu0 %v2572
    %3128 = vmatprep.subr.mxu0 0.0
    %3129 = vmatpush1.msra.mxu0 %v2573
    %3130 = vmatprep.subr.mxu0 0.0
    %3131 = vmatpush1.msra.mxu0 0.0
    %3132 = vmatprep.subr.mxu0 0.0
    %3133 = vmatpush1.msra.mxu0 0.0
    %3134 = vmatprep.subr.mxu0 0.0
    %3135 = vmatpush1.msra.mxu0 0.0
    %3136 = vmatprep.subr.mxu0 0.0
    %3137 = vmatpush1.msra.mxu0 0.0
    %3138 = vmatprep.subr.mxu0 0.0
    %3139 = vmatpush1.msra.mxu0 0.0
    %3140 = vmatprep.subr.mxu0 0.0
    %3141 = vmatpush1.msra.mxu0 0.0
    %3142 = vmatprep.subr.mxu0 0.0
    %3143 = vmatpush1.msra.mxu0 0.0
    %3144 = vmatprep.subr.mxu0 0.0
    %3145 = vmatpush1.msra.mxu0 0.0
    %3146 = vmatprep.subr.mxu0 0.0
    %3147 = vmatpush1.msra.mxu0 0.0
    %3148 = vmatprep.subr.mxu0 0.0
    %3149 = vmatpush1.msra.mxu0 0.0
    %3150 = vmatprep.subr.mxu0 0.0
    %3151 = vmatpush1.msra.mxu0 0.0
    %3152 = vmatprep.subr.mxu0 0.0
    %3153 = vmatpush1.msra.mxu0 0.0
    %3154 = vmatprep.subr.mxu0 0.0
    %3155 = vmatpush1.msra.mxu0 0.0
    %3156 = vmatprep.subr.mxu0 0.0
    %3157 = vmatpush1.msra.mxu0 0.0
    %3158 = vmatprep.subr.mxu0 0.0
    %3159 = vmatpush1.msra.mxu0 0.0
    %3160 = vmatprep.subr.mxu0 0.0
    %3161 = vmatpush1.msra.mxu0 0.0
    %3162 = vmatprep.subr.mxu0 0.0
    %3163 = vmatpush1.msra.mxu0 0.0
    %3164 = vmatprep.subr.mxu0 0.0
    %3165 = vmatpush1.msra.mxu0 0.0
    %3166 = vmatprep.subr.mxu0 0.0
    %3167 = vmatpush1.msra.mxu0 0.0
    %3168 = vmatprep.subr.mxu0 0.0
    %3169 = vmatpush1.msra.mxu0 0.0
    %3170 = vmatprep.subr.mxu0 0.0
    %3171 = vmatpush1.msra.mxu0 0.0
    %3172 = vmatprep.subr.mxu0 0.0
    %3173 = vmatpush1.msra.mxu0 0.0
    %3174 = vmatprep.subr.mxu0 0.0
    %3175 = vmatpush1.msra.mxu0 0.0
    %3176 = vmatprep.subr.mxu0 0.0
    %3177 = vmatpush1.msra.mxu0 0.0
    %3178 = vmatprep.subr.mxu0 0.0
    %3179 = vmatpush1.msra.mxu0 0.0
    %3180 = vmatprep.subr.mxu0 0.0
    %3181 = vmatpush1.msra.mxu0 0.0
    %3182 = vmatprep.subr.mxu0 0.0
    %3183 = vmatpush1.msra.mxu0 0.0
    %3184 = vmatprep.subr.mxu0 0.0
    %3185 = vmatpush1.msra.mxu0 0.0
    %3186 = vmatprep.mubr.f32.mxu0 0.0
    %3187 = vmatmul.mubr.f32.gmra.mrb[0].mxu0 %v3120
    %v3188 = vpop.f32.mrb[0].mxu0
    %v3189 = vadd.f32 %v2578, %v3188
    %v3190 = vpop.f32.mrb[0].mxu0
    %3191 = vdwg.mxu0
    %v3193 = vrot.slane %v3189, 4
    %v3194 = vrot.slane %v3189, 5
    %v3197 = vadd.f32 %v2561, %v3193
    %v3198 = vadd.f32 %v2566, %v3194
    %v3199 = vxor.u32 %v3197, 2147483648
    %v3200 = vxor.u32 %v3198, 2147483648
    %v3201 = vmul.f32 %v3199, 1.442695
    %v3202 = vpow.pop %v3201
    %v3203 = vmul.f32 %v3200, 1.442695
    %v3204 = vpow.pop %v3203
    %v3205 = vadd.f32 %v3202, 1.0
    %v3206 = vadd.f32 %v3204, 1.0
    %v3207 = vrcp.pop %v3205
    %v3208 = vmul.f32 1.0, %v3207
    %v3209 = vrcp.pop %v3206
    %v3210 = vmul.f32 1.0, %v3209
    %3211 = vrot.lane.b32.xlu0 %v3193, 64
    %v3212 = vpop.permute.xlu0 %3211
    %3213 = vrot.lane.b32.xlu0 %v3194, 64
    %v3214 = vpop.permute.xlu0 %3213
    %v3217 = vmul.f32 %v3208, %v3212
    %v3218 = vmul.f32 %v3210, %v3214
    %3221 = vrot.lane.b32.xlu0 %v3217, 64
    %v3222 = vpop.permute.xlu0 %3221
    %3223 = vrot.lane.b32.xlu0 %v3218, 64
    %v3224 = vpop.permute.xlu0 %3223
    %v3227 = vadd.f32 %v2561, %v3222
    %v3228 = vadd.f32 %v2566, %v3224
    %v3229 = vtanh.pop %v3227
    %v3230 = vtanh.pop %v3228
    %v3231 = vsub.f32 1.0, %v3208
    %v3232 = vsub.f32 1.0, %v3210
    %3235 = vrot.lane.b32.xlu0 %v3229, 96
    %v3236 = vpop.permute.xlu0 %3235
    %3237 = vrot.lane.b32.xlu0 %v3230, 96
    %v3238 = vpop.permute.xlu0 %3237
    %v3241 = vmul.f32 %v3231, %v3236
    %v3242 = vmul.f32 %v3232, %v3238
    %v3243 = vrot.slane %v3111, 7
    %v3244 = vrot.slane %v3112, 7
    %v3247 = vmul.f32 %v3208, %v3243
    %v3248 = vmul.f32 %v3210, %v3244
    %v3249 = vadd.f32 %v3241, %v3247
    %v3250 = vadd.f32 %v3242, %v3248
    %v3253 = vrot.slane %v3249, 4
    %v3254 = vrot.slane %v3250, 3
    %v3255 = vsel %vm289, %v3254, %v3253
    %3256 = vrot.lane.b32.xlu0 %v3255, 96
    %v3257 = vpop.permute.xlu0 %3256
    %v3258 = vsel %vm158, %v3257, 0
    %3260 = vmatprep.subr.mxu0 0.0
    %3261 = vmatpush1.msra.mxu0 %v2570
    %3262 = vmatprep.subr.mxu0 0.0
    %3263 = vmatpush1.msra.mxu0 %v2571
    %3264 = vmatprep.subr.mxu0 0.0
    %3265 = vmatpush1.msra.mxu0 %v2572
    %3266 = vmatprep.subr.mxu0 0.0
    %3267 = vmatpush1.msra.mxu0 %v2573
    %3268 = vmatprep.subr.mxu0 0.0
    %3269 = vmatpush1.msra.mxu0 0.0
    %3270 = vmatprep.subr.mxu0 0.0
    %3271 = vmatpush1.msra.mxu0 0.0
    %3272 = vmatprep.subr.mxu0 0.0
    %3273 = vmatpush1.msra.mxu0 0.0
    %3274 = vmatprep.subr.mxu0 0.0
    %3275 = vmatpush1.msra.mxu0 0.0
    %3276 = vmatprep.subr.mxu0 0.0
    %3277 = vmatpush1.msra.mxu0 0.0
    %3278 = vmatprep.subr.mxu0 0.0
    %3279 = vmatpush1.msra.mxu0 0.0
    %3280 = vmatprep.subr.mxu0 0.0
    %3281 = vmatpush1.msra.mxu0 0.0
    %3282 = vmatprep.subr.mxu0 0.0
    %3283 = vmatpush1.msra.mxu0 0.0
    %3284 = vmatprep.subr.mxu0 0.0
    %3285 = vmatpush1.msra.mxu0 0.0
    %3286 = vmatprep.subr.mxu0 0.0
    %3287 = vmatpush1.msra.mxu0 0.0
    %3288 = vmatprep.subr.mxu0 0.0
    %3289 = vmatpush1.msra.mxu0 0.0
    %3290 = vmatprep.subr.mxu0 0.0
    %3291 = vmatpush1.msra.mxu0 0.0
    %3292 = vmatprep.subr.mxu0 0.0
    %3293 = vmatpush1.msra.mxu0 0.0
    %3294 = vmatprep.subr.mxu0 0.0
    %3295 = vmatpush1.msra.mxu0 0.0
    %3296 = vmatprep.subr.mxu0 0.0
    %3297 = vmatpush1.msra.mxu0 0.0
    %3298 = vmatprep.subr.mxu0 0.0
    %3299 = vmatpush1.msra.mxu0 0.0
    %3300 = vmatprep.subr.mxu0 0.0
    %3301 = vmatpush1.msra.mxu0 0.0
    %3302 = vmatprep.subr.mxu0 0.0
    %3303 = vmatpush1.msra.mxu0 0.0
    %3304 = vmatprep.subr.mxu0 0.0
    %3305 = vmatpush1.msra.mxu0 0.0
    %3306 = vmatprep.subr.mxu0 0.0
    %3307 = vmatpush1.msra.mxu0 0.0
    %3308 = vmatprep.subr.mxu0 0.0
    %3309 = vmatpush1.msra.mxu0 0.0
    %3310 = vmatprep.subr.mxu0 0.0
    %3311 = vmatpush1.msra.mxu0 0.0
    %3312 = vmatprep.subr.mxu0 0.0
    %3313 = vmatpush1.msra.mxu0 0.0
    %3314 = vmatprep.subr.mxu0 0.0
    %3315 = vmatpush1.msra.mxu0 0.0
    %3316 = vmatprep.subr.mxu0 0.0
    %3317 = vmatpush1.msra.mxu0 0.0
    %3318 = vmatprep.subr.mxu0 0.0
    %3319 = vmatpush1.msra.mxu0 0.0
    %3320 = vmatprep.subr.mxu0 0.0
    %3321 = vmatpush1.msra.mxu0 0.0
    %3322 = vmatprep.subr.mxu0 0.0
    %3323 = vmatpush1.msra.mxu0 0.0
    %3324 = vmatprep.mubr.f32.mxu0 0.0
    %3325 = vmatmul.mubr.f32.gmra.mrb[0].mxu0 %v3258
    %v3326 = vpop.f32.mrb[0].mxu0
    %v3327 = vadd.f32 %v2578, %v3326
    %v3328 = vpop.f32.mrb[0].mxu0
    %3329 = vdwg.mxu0
    %v3331 = vrot.slane %v3327, 3
    %v3332 = vrot.slane %v3327, 4
    %v3335 = vadd.f32 %v2561, %v3331
    %v3336 = vadd.f32 %v2566, %v3332
    %v3337 = vxor.u32 %v3335, 2147483648
    %v3338 = vxor.u32 %v3336, 2147483648
    %v3339 = vmul.f32 %v3337, 1.442695
    %v3340 = vpow.pop %v3339
    %v3341 = vmul.f32 %v3338, 1.442695
    %v3342 = vpow.pop %v3341
    %v3343 = vadd.f32 %v3340, 1.0
    %v3344 = vadd.f32 %v3342, 1.0
    %v3345 = vrcp.pop %v3343
    %v3346 = vmul.f32 1.0, %v3345
    %v3347 = vrcp.pop %v3344
    %v3348 = vmul.f32 1.0, %v3347
    %3349 = vrot.lane.b32.xlu0 %v3331, 64
    %v3350 = vpop.permute.xlu0 %3349
    %3351 = vrot.lane.b32.xlu0 %v3332, 64
    %v3352 = vpop.permute.xlu0 %3351
    %v3355 = vmul.f32 %v3346, %v3350
    %v3356 = vmul.f32 %v3348, %v3352
    %3359 = vrot.lane.b32.xlu0 %v3355, 64
    %v3360 = vpop.permute.xlu0 %3359
    %3361 = vrot.lane.b32.xlu0 %v3356, 64
    %v3362 = vpop.permute.xlu0 %3361
    %v3365 = vadd.f32 %v2561, %v3360
    %v3366 = vadd.f32 %v2566, %v3362
    %v3367 = vtanh.pop %v3365
    %v3368 = vtanh.pop %v3366
    %v3369 = vsub.f32 1.0, %v3346
    %v3370 = vsub.f32 1.0, %v3348
    %3373 = vrot.lane.b32.xlu0 %v3367, 96
    %v3374 = vpop.permute.xlu0 %3373
    %3375 = vrot.lane.b32.xlu0 %v3368, 96
    %v3376 = vpop.permute.xlu0 %3375
    %v3379 = vmul.f32 %v3369, %v3374
    %v3380 = vmul.f32 %v3370, %v3376
    %v3381 = vrot.slane %v3249, 7
    %v3382 = vrot.slane %v3250, 7
    %v3385 = vmul.f32 %v3346, %v3381
    %v3386 = vmul.f32 %v3348, %v3382
    %v3387 = vadd.f32 %v3379, %v3385
    %v3388 = vadd.f32 %v3380, %v3386
    %v3391 = vrot.slane %v3387, 5
    %v3392 = vrot.slane %v3388, 4
    %v3393 = vsel %vm289, %v3392, %v3391
    %3394 = vrot.lane.b32.xlu0 %v3393, 96
    %v3395 = vpop.permute.xlu0 %3394
    %v3396 = vsel %vm158, %v3395, 0
    %3398 = vmatprep.subr.mxu0 0.0
    %3399 = vmatpush1.msra.mxu0 %v2570
    %3400 = vmatprep.subr.mxu0 0.0
    %3401 = vmatpush1.msra.mxu0 %v2571
    %3402 = vmatprep.subr.mxu0 0.0
    %3403 = vmatpush1.msra.mxu0 %v2572
    %3404 = vmatprep.subr.mxu0 0.0
    %3405 = vmatpush1.msra.mxu0 %v2573
    %3406 = vmatprep.subr.mxu0 0.0
    %3407 = vmatpush1.msra.mxu0 0.0
    %3408 = vmatprep.subr.mxu0 0.0
    %3409 = vmatpush1.msra.mxu0 0.0
    %3410 = vmatprep.subr.mxu0 0.0
    %3411 = vmatpush1.msra.mxu0 0.0
    %3412 = vmatprep.subr.mxu0 0.0
    %3413 = vmatpush1.msra.mxu0 0.0
    %3414 = vmatprep.subr.mxu0 0.0
    %3415 = vmatpush1.msra.mxu0 0.0
    %3416 = vmatprep.subr.mxu0 0.0
    %3417 = vmatpush1.msra.mxu0 0.0
    %3418 = vmatprep.subr.mxu0 0.0
    %3419 = vmatpush1.msra.mxu0 0.0
    %3420 = vmatprep.subr.mxu0 0.0
    %3421 = vmatpush1.msra.mxu0 0.0
    %3422 = vmatprep.subr.mxu0 0.0
    %3423 = vmatpush1.msra.mxu0 0.0
    %3424 = vmatprep.subr.mxu0 0.0
    %3425 = vmatpush1.msra.mxu0 0.0
    %3426 = vmatprep.subr.mxu0 0.0
    %3427 = vmatpush1.msra.mxu0 0.0
    %3428 = vmatprep.subr.mxu0 0.0
    %3429 = vmatpush1.msra.mxu0 0.0
    %3430 = vmatprep.subr.mxu0 0.0
    %3431 = vmatpush1.msra.mxu0 0.0
    %3432 = vmatprep.subr.mxu0 0.0
    %3433 = vmatpush1.msra.mxu0 0.0
    %3434 = vmatprep.subr.mxu0 0.0
    %3435 = vmatpush1.msra.mxu0 0.0
    %3436 = vmatprep.subr.mxu0 0.0
    %3437 = vmatpush1.msra.mxu0 0.0
    %3438 = vmatprep.subr.mxu0 0.0
    %3439 = vmatpush1.msra.mxu0 0.0
    %3440 = vmatprep.subr.mxu0 0.0
    %3441 = vmatpush1.msra.mxu0 0.0
    %3442 = vmatprep.subr.mxu0 0.0
    %3443 = vmatpush1.msra.mxu0 0.0
    %3444 = vmatprep.subr.mxu0 0.0
    %3445 = vmatpush1.msra.mxu0 0.0
    %3446 = vmatprep.subr.mxu0 0.0
    %3447 = vmatpush1.msra.mxu0 0.0
    %3448 = vmatprep.subr.mxu0 0.0
    %3449 = vmatpush1.msra.mxu0 0.0
    %3450 = vmatprep.subr.mxu0 0.0
    %3451 = vmatpush1.msra.mxu0 0.0
    %3452 = vmatprep.subr.mxu0 0.0
    %3453 = vmatpush1.msra.mxu0 0.0
    %3454 = vmatprep.subr.mxu0 0.0
    %3455 = vmatpush1.msra.mxu0 0.0
    %3456 = vmatprep.subr.mxu0 0.0
    %3457 = vmatpush1.msra.mxu0 0.0
    %3458 = vmatprep.subr.mxu0 0.0
    %3459 = vmatpush1.msra.mxu0 0.0
    %3460 = vmatprep.subr.mxu0 0.0
    %3461 = vmatpush1.msra.mxu0 0.0
    %3462 = vmatprep.mubr.f32.mxu0 0.0
    %3463 = vmatmul.mubr.f32.gmra.mrb[0].mxu0 %v3396
    %v3464 = vpop.f32.mrb[0].mxu0
    %v3465 = vadd.f32 %v2578, %v3464
    %v3466 = vpop.f32.mrb[0].mxu0
    %3467 = vdwg.mxu0
    %v3469 = vrot.slane %v3465, 2
    %v3470 = vrot.slane %v3465, 3
    %v3473 = vadd.f32 %v2561, %v3469
    %v3474 = vadd.f32 %v2566, %v3470
    %v3475 = vxor.u32 %v3473, 2147483648
    %v3476 = vxor.u32 %v3474, 2147483648
    %v3477 = vmul.f32 %v3475, 1.442695
    %v3478 = vpow.pop %v3477
    %v3479 = vmul.f32 %v3476, 1.442695
    %v3480 = vpow.pop %v3479
    %v3481 = vadd.f32 %v3478, 1.0
    %v3482 = vadd.f32 %v3480, 1.0
    %v3483 = vrcp.pop %v3481
    %v3484 = vmul.f32 1.0, %v3483
    %v3485 = vrcp.pop %v3482
    %v3486 = vmul.f32 1.0, %v3485
    %3487 = vrot.lane.b32.xlu0 %v3469, 64
    %v3488 = vpop.permute.xlu0 %3487
    %3489 = vrot.lane.b32.xlu0 %v3470, 64
    %v3490 = vpop.permute.xlu0 %3489
    %v3493 = vmul.f32 %v3484, %v3488
    %v3494 = vmul.f32 %v3486, %v3490
    %3497 = vrot.lane.b32.xlu0 %v3493, 64
    %v3498 = vpop.permute.xlu0 %3497
    %3499 = vrot.lane.b32.xlu0 %v3494, 64
    %v3500 = vpop.permute.xlu0 %3499
    %v3503 = vadd.f32 %v2561, %v3498
    %v3504 = vadd.f32 %v2566, %v3500
    %v3505 = vtanh.pop %v3503
    %v3506 = vtanh.pop %v3504
    %v3507 = vsub.f32 1.0, %v3484
    %v3508 = vsub.f32 1.0, %v3486
    %3511 = vrot.lane.b32.xlu0 %v3505, 96
    %v3512 = vpop.permute.xlu0 %3511
    %3513 = vrot.lane.b32.xlu0 %v3506, 96
    %v3514 = vpop.permute.xlu0 %3513
    %v3517 = vmul.f32 %v3507, %v3512
    %v3518 = vmul.f32 %v3508, %v3514
    %v3519 = vrot.slane %v3387, 7
    %v3520 = vrot.slane %v3388, 7
    %v3523 = vmul.f32 %v3484, %v3519
    %v3524 = vmul.f32 %v3486, %v3520
    %v3525 = vadd.f32 %v3517, %v3523
    %v3526 = vadd.f32 %v3518, %v3524
    %v3529 = vrot.slane %v3525, 6
    %v3530 = vrot.slane %v3526, 5
    %v3531 = vsel %vm289, %v3530, %v3529
    %3532 = vrot.lane.b32.xlu0 %v3531, 96
    %v3533 = vpop.permute.xlu0 %3532
    %v3534 = vsel %vm158, %v3533, 0
    %3536 = vmatprep.subr.mxu0 0.0
    %3537 = vmatpush1.msra.mxu0 %v2570
    %3538 = vmatprep.subr.mxu0 0.0
    %3539 = vmatpush1.msra.mxu0 %v2571
    %3540 = vmatprep.subr.mxu0 0.0
    %3541 = vmatpush1.msra.mxu0 %v2572
    %3542 = vmatprep.subr.mxu0 0.0
    %3543 = vmatpush1.msra.mxu0 %v2573
    %3544 = vmatprep.subr.mxu0 0.0
    %3545 = vmatpush1.msra.mxu0 0.0
    %3546 = vmatprep.subr.mxu0 0.0
    %3547 = vmatpush1.msra.mxu0 0.0
    %3548 = vmatprep.subr.mxu0 0.0
    %3549 = vmatpush1.msra.mxu0 0.0
    %3550 = vmatprep.subr.mxu0 0.0
    %3551 = vmatpush1.msra.mxu0 0.0
    %3552 = vmatprep.subr.mxu0 0.0
    %3553 = vmatpush1.msra.mxu0 0.0
    %3554 = vmatprep.subr.mxu0 0.0
    %3555 = vmatpush1.msra.mxu0 0.0
    %3556 = vmatprep.subr.mxu0 0.0
    %3557 = vmatpush1.msra.mxu0 0.0
    %3558 = vmatprep.subr.mxu0 0.0
    %3559 = vmatpush1.msra.mxu0 0.0
    %3560 = vmatprep.subr.mxu0 0.0
    %3561 = vmatpush1.msra.mxu0 0.0
    %3562 = vmatprep.subr.mxu0 0.0
    %3563 = vmatpush1.msra.mxu0 0.0
    %3564 = vmatprep.subr.mxu0 0.0
    %3565 = vmatpush1.msra.mxu0 0.0
    %3566 = vmatprep.subr.mxu0 0.0
    %3567 = vmatpush1.msra.mxu0 0.0
    %3568 = vmatprep.subr.mxu0 0.0
    %3569 = vmatpush1.msra.mxu0 0.0
    %3570 = vmatprep.subr.mxu0 0.0
    %3571 = vmatpush1.msra.mxu0 0.0
    %3572 = vmatprep.subr.mxu0 0.0
    %3573 = vmatpush1.msra.mxu0 0.0
    %3574 = vmatprep.subr.mxu0 0.0
    %3575 = vmatpush1.msra.mxu0 0.0
    %3576 = vmatprep.subr.mxu0 0.0
    %3577 = vmatpush1.msra.mxu0 0.0
    %3578 = vmatprep.subr.mxu0 0.0
    %3579 = vmatpush1.msra.mxu0 0.0
    %3580 = vmatprep.subr.mxu0 0.0
    %3581 = vmatpush1.msra.mxu0 0.0
    %3582 = vmatprep.subr.mxu0 0.0
    %3583 = vmatpush1.msra.mxu0 0.0
    %3584 = vmatprep.subr.mxu0 0.0
    %3585 = vmatpush1.msra.mxu0 0.0
    %3586 = vmatprep.subr.mxu0 0.0
    %3587 = vmatpush1.msra.mxu0 0.0
    %3588 = vmatprep.subr.mxu0 0.0
    %3589 = vmatpush1.msra.mxu0 0.0
    %3590 = vmatprep.subr.mxu0 0.0
    %3591 = vmatpush1.msra.mxu0 0.0
    %3592 = vmatprep.subr.mxu0 0.0
    %3593 = vmatpush1.msra.mxu0 0.0
    %3594 = vmatprep.subr.mxu0 0.0
    %3595 = vmatpush1.msra.mxu0 0.0
    %3596 = vmatprep.subr.mxu0 0.0
    %3597 = vmatpush1.msra.mxu0 0.0
    %3598 = vmatprep.subr.mxu0 0.0
    %3599 = vmatpush1.msra.mxu0 0.0
    %3600 = vmatprep.mubr.f32.mxu0 0.0
    %3601 = vmatmul.mubr.f32.gmra.mrb[0].mxu0 %v3534
    %v3602 = vpop.f32.mrb[0].mxu0
    %v3603 = vadd.f32 %v2578, %v3602
    %v3604 = vpop.f32.mrb[0].mxu0
    %3605 = vdwg.mxu0
    %v3607 = vrot.slane %v3603, 1
    %v3608 = vrot.slane %v3603, 2
    %v3611 = vadd.f32 %v2561, %v3607
    %v3612 = vadd.f32 %v2566, %v3608
    %v3613 = vxor.u32 %v3611, 2147483648
    %v3614 = vxor.u32 %v3612, 2147483648
    %v3615 = vmul.f32 %v3613, 1.442695
    %v3616 = vpow.pop %v3615
    %v3617 = vmul.f32 %v3614, 1.442695
    %v3618 = vpow.pop %v3617
    %v3619 = vadd.f32 %v3616, 1.0
    %v3620 = vadd.f32 %v3618, 1.0
    %v3621 = vrcp.pop %v3619
    %v3622 = vmul.f32 1.0, %v3621
    %v3623 = vrcp.pop %v3620
    %v3624 = vmul.f32 1.0, %v3623
    %3625 = vrot.lane.b32.xlu0 %v3607, 64
    %v3626 = vpop.permute.xlu0 %3625
    %3627 = vrot.lane.b32.xlu0 %v3608, 64
    %v3628 = vpop.permute.xlu0 %3627
    %v3631 = vmul.f32 %v3622, %v3626
    %v3632 = vmul.f32 %v3624, %v3628
    %3635 = vrot.lane.b32.xlu0 %v3631, 64
    %v3636 = vpop.permute.xlu0 %3635
    %3637 = vrot.lane.b32.xlu0 %v3632, 64
    %v3638 = vpop.permute.xlu0 %3637
    %v3641 = vadd.f32 %v2561, %v3636
    %v3642 = vadd.f32 %v2566, %v3638
    %v3643 = vtanh.pop %v3641
    %v3644 = vtanh.pop %v3642
    %v3645 = vsub.f32 1.0, %v3622
    %v3646 = vsub.f32 1.0, %v3624
    %3649 = vrot.lane.b32.xlu0 %v3643, 96
    %v3650 = vpop.permute.xlu0 %3649
    %3651 = vrot.lane.b32.xlu0 %v3644, 96
    %v3652 = vpop.permute.xlu0 %3651
    %v3655 = vmul.f32 %v3645, %v3650
    %v3656 = vmul.f32 %v3646, %v3652
    %v3657 = vrot.slane %v3525, 7
    %v3658 = vrot.slane %v3526, 7
    %v3661 = vmul.f32 %v3622, %v3657
    %v3662 = vmul.f32 %v3624, %v3658
    %v3663 = vadd.f32 %v3655, %v3661
    %v3664 = vadd.f32 %v3656, %v3662
    %v3665 = vsel %vm1249, %v2701, %v2836
    %v3666 = vsel %vm1249, %v2702, %v2837
    %v3667 = vsel %vm1252, %v3665, %v2973
    %v3668 = vsel %vm1252, %v3666, %v2974
    %v3669 = vsel %vm1255, %v3667, %v3111
    %v3670 = vsel %vm1255, %v3668, %v3112
    %v3671 = vsel %vm1258, %v3669, %v3249
    %v3672 = vsel %vm1258, %v3670, %v3250
    %v3673 = vsel %vm1261, %v3671, %v3387
    %v3674 = vsel %vm1261, %v3672, %v3388
    %v3675 = vsel %vm1264, %v3673, %v3525
    %v3676 = vsel %vm1264, %v3674, %v3526
    %v3677 = vsel %vm1267, %v3675, %v3663
    %v3678 = vsel %vm1267, %v3676, %v3664
    %s3679 = scalar_lea.vmem [#allocation2], 64
    %v3680 = vld [vmem:[%s3679] sm:$0xff]
    %v3681 = vld [vmem:[%s3679 + $0x8] sm:$0xff]
    %v3682 = vld [vmem:[%s3679 + $0x10] sm:$0xff]
    %v3683 = vld [vmem:[%s3679 + $0x18] sm:$0xff]
    %v3684 = vld [vmem:[%s4 + $0x3] sm:$0x1]
    %v3685 = vlaneseq
    %v3686 = vshrl.u32 %v3685, 7
    %v3687 = vsub.s32 0, %v3686
    %v3688 = vrot.slane %v3684, %v3687
    %3691 = vrot.lane.b32.xlu0 %v3677, 96
    %v3692 = vpop.permute.xlu0 %3691
    %3693 = vrot.lane.b32.xlu0 %v3678, 96
    %v3694 = vpop.permute.xlu0 %3693
    %v3695 = vsel %vm158, %v3692, 0
    %v3697 = vsel %vm158, %v3694, 0
    %3699 = vmatprep.subr.mxu0 0.0
    %3700 = vmatpush1.msra.mxu0 %v3680
    %3701 = vmatprep.subr.mxu0 0.0
    %3702 = vmatpush1.msra.mxu0 %v3681
    %3703 = vmatprep.subr.mxu0 0.0
    %3704 = vmatpush1.msra.mxu0 %v3682
    %3705 = vmatprep.subr.mxu0 0.0
    %3706 = vmatpush1.msra.mxu0 %v3683
    %3707 = vmatprep.subr.mxu0 0.0
    %3708 = vmatpush1.msra.mxu0 0.0
    %3709 = vmatprep.subr.mxu0 0.0
    %3710 = vmatpush1.msra.mxu0 0.0
    %3711 = vmatprep.subr.mxu0 0.0
    %3712 = vmatpush1.msra.mxu0 0.0
    %3713 = vmatprep.subr.mxu0 0.0
    %3714 = vmatpush1.msra.mxu0 0.0
    %3715 = vmatprep.subr.mxu0 0.0
    %3716 = vmatpush1.msra.mxu0 0.0
    %3717 = vmatprep.subr.mxu0 0.0
    %3718 = vmatpush1.msra.mxu0 0.0
    %3719 = vmatprep.subr.mxu0 0.0
    %3720 = vmatpush1.msra.mxu0 0.0
    %3721 = vmatprep.subr.mxu0 0.0
    %3722 = vmatpush1.msra.mxu0 0.0
    %3723 = vmatprep.subr.mxu0 0.0
    %3724 = vmatpush1.msra.mxu0 0.0
    %3725 = vmatprep.subr.mxu0 0.0
    %3726 = vmatpush1.msra.mxu0 0.0
    %3727 = vmatprep.subr.mxu0 0.0
    %3728 = vmatpush1.msra.mxu0 0.0
    %3729 = vmatprep.subr.mxu0 0.0
    %3730 = vmatpush1.msra.mxu0 0.0
    %3731 = vmatprep.subr.mxu0 0.0
    %3732 = vmatpush1.msra.mxu0 0.0
    %3733 = vmatprep.subr.mxu0 0.0
    %3734 = vmatpush1.msra.mxu0 0.0
    %3735 = vmatprep.subr.mxu0 0.0
    %3736 = vmatpush1.msra.mxu0 0.0
    %3737 = vmatprep.subr.mxu0 0.0
    %3738 = vmatpush1.msra.mxu0 0.0
    %3739 = vmatprep.subr.mxu0 0.0
    %3740 = vmatpush1.msra.mxu0 0.0
    %3741 = vmatprep.subr.mxu0 0.0
    %3742 = vmatpush1.msra.mxu0 0.0
    %3743 = vmatprep.subr.mxu0 0.0
    %3744 = vmatpush1.msra.mxu0 0.0
    %3745 = vmatprep.subr.mxu0 0.0
    %3746 = vmatpush1.msra.mxu0 0.0
    %3747 = vmatprep.subr.mxu0 0.0
    %3748 = vmatpush1.msra.mxu0 0.0
    %3749 = vmatprep.subr.mxu0 0.0
    %3750 = vmatpush1.msra.mxu0 0.0
    %3751 = vmatprep.subr.mxu0 0.0
    %3752 = vmatpush1.msra.mxu0 0.0
    %3753 = vmatprep.subr.mxu0 0.0
    %3754 = vmatpush1.msra.mxu0 0.0
    %3755 = vmatprep.subr.mxu0 0.0
    %3756 = vmatpush1.msra.mxu0 0.0
    %3757 = vmatprep.subr.mxu0 0.0
    %3758 = vmatpush1.msra.mxu0 0.0
    %3759 = vmatprep.subr.mxu0 0.0
    %3760 = vmatpush1.msra.mxu0 0.0
    %3761 = vmatprep.subr.mxu0 0.0
    %3762 = vmatpush1.msra.mxu0 0.0
    %3763 = vmatprep.mubr.f32.mxu0 0.0
    %3764 = vmatmul.mubr.f32.gmra.mrb[0].mxu0 %v3695
    %v3765 = vpop.f32.mrb[0].mxu0
    %v3766 = vadd.f32 %v3688, %v3765
    %v3767 = vpop.f32.mrb[0].mxu0
    %3768 = vmatprep.mubr.f32.mxu0 0.0
    %3769 = vmatmul.mubr.f32.gmra.mrb[0].mxu0 %v3697
    %v3770 = vpop.f32.mrb[0].mxu0
    %v3771 = vadd.f32 %v3688, %v3770
    %v3772 = vpop.f32.mrb[0].mxu0
    %3773 = vdwg.mxu0
    %s3774 = scalar_lea.vmem [#allocation5], 96
    %v3775 = vld [vmem:[%s3774] sm:$0xff]
    %v3776 = vld [vmem:[%s3774 + $0x8] sm:$0xff]
    %v3777 = vld [vmem:[%s3774 + $0x10] sm:$0xff]
    %v3778 = vld [vmem:[%s3774 + $0x18] sm:$0xff]
    %v3779 = vld [vmem:[%s5 + $0x3] sm:$0x1]
    %v3780 = vlaneseq
    %v3781 = vshrl.u32 %v3780, 7
    %v3782 = vsub.s32 0, %v3781
    %v3783 = vrot.slane %v3779, %v3782
    %3784 = vmatprep.subr.mxu0 0.0
    %3785 = vmatpush1.msra.mxu0 %v3775
    %3786 = vmatprep.subr.mxu0 0.0
    %3787 = vmatpush1.msra.mxu0 %v3776
    %3788 = vmatprep.subr.mxu0 0.0
    %3789 = vmatpush1.msra.mxu0 %v3777
    %3790 = vmatprep.subr.mxu0 0.0
    %3791 = vmatpush1.msra.mxu0 %v3778
    %3792 = vmatprep.subr.mxu0 0.0
    %3793 = vmatpush1.msra.mxu0 0.0
    %3794 = vmatprep.subr.mxu0 0.0
    %3795 = vmatpush1.msra.mxu0 0.0
    %3796 = vmatprep.subr.mxu0 0.0
    %3797 = vmatpush1.msra.mxu0 0.0
    %3798 = vmatprep.subr.mxu0 0.0
    %3799 = vmatpush1.msra.mxu0 0.0
    %3800 = vmatprep.subr.mxu0 0.0
    %3801 = vmatpush1.msra.mxu0 0.0
    %3802 = vmatprep.subr.mxu0 0.0
    %3803 = vmatpush1.msra.mxu0 0.0
    %3804 = vmatprep.subr.mxu0 0.0
    %3805 = vmatpush1.msra.mxu0 0.0
    %3806 = vmatprep.subr.mxu0 0.0
    %3807 = vmatpush1.msra.mxu0 0.0
    %3808 = vmatprep.subr.mxu0 0.0
    %3809 = vmatpush1.msra.mxu0 0.0
    %3810 = vmatprep.subr.mxu0 0.0
    %3811 = vmatpush1.msra.mxu0 0.0
    %3812 = vmatprep.subr.mxu0 0.0
    %3813 = vmatpush1.msra.mxu0 0.0
    %3814 = vmatprep.subr.mxu0 0.0
    %3815 = vmatpush1.msra.mxu0 0.0
    %3816 = vmatprep.subr.mxu0 0.0
    %3817 = vmatpush1.msra.mxu0 0.0
    %3818 = vmatprep.subr.mxu0 0.0
    %3819 = vmatpush1.msra.mxu0 0.0
    %3820 = vmatprep.subr.mxu0 0.0
    %3821 = vmatpush1.msra.mxu0 0.0
    %3822 = vmatprep.subr.mxu0 0.0
    %3823 = vmatpush1.msra.mxu0 0.0
    %3824 = vmatprep.subr.mxu0 0.0
    %3825 = vmatpush1.msra.mxu0 0.0
    %3826 = vmatprep.subr.mxu0 0.0
    %3827 = vmatpush1.msra.mxu0 0.0
    %3828 = vmatprep.subr.mxu0 0.0
    %3829 = vmatpush1.msra.mxu0 0.0
    %3830 = vmatprep.subr.mxu0 0.0
    %3831 = vmatpush1.msra.mxu0 0.0
    %3832 = vmatprep.subr.mxu0 0.0
    %3833 = vmatpush1.msra.mxu0 0.0
    %3834 = vmatprep.subr.mxu0 0.0
    %3835 = vmatpush1.msra.mxu0 0.0
    %3836 = vmatprep.subr.mxu0 0.0
    %3837 = vmatpush1.msra.mxu0 0.0
    %3838 = vmatprep.subr.mxu0 0.0
    %3839 = vmatpush1.msra.mxu0 0.0
    %3840 = vmatprep.subr.mxu0 0.0
    %3841 = vmatpush1.msra.mxu0 0.0
    %3842 = vmatprep.subr.mxu0 0.0
    %3843 = vmatpush1.msra.mxu0 0.0
    %3844 = vmatprep.subr.mxu0 0.0
    %3845 = vmatpush1.msra.mxu0 0.0
    %3846 = vmatprep.subr.mxu0 0.0
    %3847 = vmatpush1.msra.mxu0 0.0
    %3848 = vmatprep.mubr.f32.mxu0 0.0
    %3849 = vmatmul.mubr.f32.gmra.mrb[0].mxu0 %v160
    %v3850 = vpop.f32.mrb[0].mxu0
    %v3851 = vadd.f32 %v3783, %v3850
    %v3852 = vpop.f32.mrb[0].mxu0
    %3853 = vdwg.mxu0
    %v3855 = vrot.slane %v3851, 1
    %v3858 = vadd.f32 %v3766, %v3851
    %v3859 = vadd.f32 %v3771, %v3855
    %v3860 = vxor.u32 %v3858, 2147483648
    %v3861 = vxor.u32 %v3859, 2147483648
    %v3862 = vmul.f32 %v3860, 1.442695
    %v3863 = vpow.pop %v3862
    %v3864 = vmul.f32 %v3861, 1.442695
    %v3865 = vpow.pop %v3864
    %v3866 = vadd.f32 %v3863, 1.0
    %v3867 = vadd.f32 %v3865, 1.0
    %v3868 = vrcp.pop %v3866
    %v3869 = vmul.f32 1.0, %v3868
    %v3870 = vrcp.pop %v3867
    %v3871 = vmul.f32 1.0, %v3870
    %3872 = vrot.lane.b32.xlu0 %v3851, 64
    %v3873 = vpop.permute.xlu0 %3872
    %3874 = vrot.lane.b32.xlu0 %v3855, 64
    %v3875 = vpop.permute.xlu0 %3874
    %v3878 = vmul.f32 %v3869, %v3873
    %v3879 = vmul.f32 %v3871, %v3875
    %3882 = vrot.lane.b32.xlu0 %v3878, 64
    %v3883 = vpop.permute.xlu0 %3882
    %3884 = vrot.lane.b32.xlu0 %v3879, 64
    %v3885 = vpop.permute.xlu0 %3884
    %v3888 = vadd.f32 %v3766, %v3883
    %v3889 = vadd.f32 %v3771, %v3885
    %v3890 = vtanh.pop %v3888
    %v3891 = vtanh.pop %v3889
    %v3892 = vsub.f32 1.0, %v3869
    %v3893 = vsub.f32 1.0, %v3871
    %3896 = vrot.lane.b32.xlu0 %v3890, 96
    %v3897 = vpop.permute.xlu0 %3896
    %3898 = vrot.lane.b32.xlu0 %v3891, 96
    %v3899 = vpop.permute.xlu0 %3898
    %v3902 = vmul.f32 %v3892, %v3897
    %v3903 = vmul.f32 %v3893, %v3899
    %v3904 = vmul.f32 %v3869, 0.0
    %v3905 = vmul.f32 %v3871, 0.0
    %v3906 = vadd.f32 %v3902, %v3904
    %v3907 = vadd.f32 %v3903, %v3905
    %v3910 = vrot.slane %v3907, 7
    %v3911 = vsel %vm289, %v3910, %v3906
    %3912 = vrot.lane.b32.xlu0 %v3911, 96
    %v3913 = vpop.permute.xlu0 %3912
    %v3914 = vsel %vm158, %v3913, 0
    %3916 = vmatprep.subr.mxu0 0.0
    %3917 = vmatpush1.msra.mxu0 %v3775
    %3918 = vmatprep.subr.mxu0 0.0
    %3919 = vmatpush1.msra.mxu0 %v3776
    %3920 = vmatprep.subr.mxu0 0.0
    %3921 = vmatpush1.msra.mxu0 %v3777
    %3922 = vmatprep.subr.mxu0 0.0
    %3923 = vmatpush1.msra.mxu0 %v3778
    %3924 = vmatprep.subr.mxu0 0.0
    %3925 = vmatpush1.msra.mxu0 0.0
    %3926 = vmatprep.subr.mxu0 0.0
    %3927 = vmatpush1.msra.mxu0 0.0
    %3928 = vmatprep.subr.mxu0 0.0
    %3929 = vmatpush1.msra.mxu0 0.0
    %3930 = vmatprep.subr.mxu0 0.0
    %3931 = vmatpush1.msra.mxu0 0.0
    %3932 = vmatprep.subr.mxu0 0.0
    %3933 = vmatpush1.msra.mxu0 0.0
    %3934 = vmatprep.subr.mxu0 0.0
    %3935 = vmatpush1.msra.mxu0 0.0
    %3936 = vmatprep.subr.mxu0 0.0
    %3937 = vmatpush1.msra.mxu0 0.0
    %3938 = vmatprep.subr.mxu0 0.0
    %3939 = vmatpush1.msra.mxu0 0.0
    %3940 = vmatprep.subr.mxu0 0.0
    %3941 = vmatpush1.msra.mxu0 0.0
    %3942 = vmatprep.subr.mxu0 0.0
    %3943 = vmatpush1.msra.mxu0 0.0
    %3944 = vmatprep.subr.mxu0 0.0
    %3945 = vmatpush1.msra.mxu0 0.0
    %3946 = vmatprep.subr.mxu0 0.0
    %3947 = vmatpush1.msra.mxu0 0.0
    %3948 = vmatprep.subr.mxu0 0.0
    %3949 = vmatpush1.msra.mxu0 0.0
    %3950 = vmatprep.subr.mxu0 0.0
    %3951 = vmatpush1.msra.mxu0 0.0
    %3952 = vmatprep.subr.mxu0 0.0
    %3953 = vmatpush1.msra.mxu0 0.0
    %3954 = vmatprep.subr.mxu0 0.0
    %3955 = vmatpush1.msra.mxu0 0.0
    %3956 = vmatprep.subr.mxu0 0.0
    %3957 = vmatpush1.msra.mxu0 0.0
    %3958 = vmatprep.subr.mxu0 0.0
    %3959 = vmatpush1.msra.mxu0 0.0
    %3960 = vmatprep.subr.mxu0 0.0
    %3961 = vmatpush1.msra.mxu0 0.0
    %3962 = vmatprep.subr.mxu0 0.0
    %3963 = vmatpush1.msra.mxu0 0.0
    %3964 = vmatprep.subr.mxu0 0.0
    %3965 = vmatpush1.msra.mxu0 0.0
    %3966 = vmatprep.subr.mxu0 0.0
    %3967 = vmatpush1.msra.mxu0 0.0
    %3968 = vmatprep.subr.mxu0 0.0
    %3969 = vmatpush1.msra.mxu0 0.0
    %3970 = vmatprep.subr.mxu0 0.0
    %3971 = vmatpush1.msra.mxu0 0.0
    %3972 = vmatprep.subr.mxu0 0.0
    %3973 = vmatpush1.msra.mxu0 0.0
    %3974 = vmatprep.subr.mxu0 0.0
    %3975 = vmatpush1.msra.mxu0 0.0
    %3976 = vmatprep.subr.mxu0 0.0
    %3977 = vmatpush1.msra.mxu0 0.0
    %3978 = vmatprep.subr.mxu0 0.0
    %3979 = vmatpush1.msra.mxu0 0.0
    %3980 = vmatprep.mubr.f32.mxu0 0.0
    %3981 = vmatmul.mubr.f32.gmra.mrb[0].mxu0 %v3914
    %v3982 = vpop.f32.mrb[0].mxu0
    %v3983 = vadd.f32 %v3783, %v3982
    %v3984 = vpop.f32.mrb[0].mxu0
    %3985 = vdwg.mxu0
    %v3987 = vrot.slane %v3983, 7
    %v3990 = vadd.f32 %v3766, %v3987
    %v3991 = vadd.f32 %v3771, %v3983
    %v3992 = vxor.u32 %v3990, 2147483648
    %v3993 = vxor.u32 %v3991, 2147483648
    %v3994 = vmul.f32 %v3992, 1.442695
    %v3995 = vpow.pop %v3994
    %v3996 = vmul.f32 %v3993, 1.442695
    %v3997 = vpow.pop %v3996
    %v3998 = vadd.f32 %v3995, 1.0
    %v3999 = vadd.f32 %v3997, 1.0
    %v4000 = vrcp.pop %v3998
    %v4001 = vmul.f32 1.0, %v4000
    %v4002 = vrcp.pop %v3999
    %v4003 = vmul.f32 1.0, %v4002
    %4004 = vrot.lane.b32.xlu0 %v3987, 64
    %v4005 = vpop.permute.xlu0 %4004
    %4006 = vrot.lane.b32.xlu0 %v3983, 64
    %v4007 = vpop.permute.xlu0 %4006
    %v4010 = vmul.f32 %v4001, %v4005
    %v4011 = vmul.f32 %v4003, %v4007
    %4014 = vrot.lane.b32.xlu0 %v4010, 64
    %v4015 = vpop.permute.xlu0 %4014
    %4016 = vrot.lane.b32.xlu0 %v4011, 64
    %v4017 = vpop.permute.xlu0 %4016
    %v4020 = vadd.f32 %v3766, %v4015
    %v4021 = vadd.f32 %v3771, %v4017
    %v4022 = vtanh.pop %v4020
    %v4023 = vtanh.pop %v4021
    %v4024 = vsub.f32 1.0, %v4001
    %v4025 = vsub.f32 1.0, %v4003
    %4028 = vrot.lane.b32.xlu0 %v4022, 96
    %v4029 = vpop.permute.xlu0 %4028
    %4030 = vrot.lane.b32.xlu0 %v4023, 96
    %v4031 = vpop.permute.xlu0 %4030
    %v4034 = vmul.f32 %v4024, %v4029
    %v4035 = vmul.f32 %v4025, %v4031
    %v4036 = vrot.slane %v3906, 7
    %v4039 = vmul.f32 %v4001, %v4036
    %v4040 = vmul.f32 %v4003, %v3910
    %v4041 = vadd.f32 %v4034, %v4039
    %v4042 = vadd.f32 %v4035, %v4040
    %v4045 = vrot.slane %v4041, 1
    %v4046 = vsel %vm289, %v4042, %v4045
    %4047 = vrot.lane.b32.xlu0 %v4046, 96
    %v4048 = vpop.permute.xlu0 %4047
    %v4049 = vsel %vm158, %v4048, 0
    %4051 = vmatprep.subr.mxu0 0.0
    %4052 = vmatpush1.msra.mxu0 %v3775
    %4053 = vmatprep.subr.mxu0 0.0
    %4054 = vmatpush1.msra.mxu0 %v3776
    %4055 = vmatprep.subr.mxu0 0.0
    %4056 = vmatpush1.msra.mxu0 %v3777
    %4057 = vmatprep.subr.mxu0 0.0
    %4058 = vmatpush1.msra.mxu0 %v3778
    %4059 = vmatprep.subr.mxu0 0.0
    %4060 = vmatpush1.msra.mxu0 0.0
    %4061 = vmatprep.subr.mxu0 0.0
    %4062 = vmatpush1.msra.mxu0 0.0
    %4063 = vmatprep.subr.mxu0 0.0
    %4064 = vmatpush1.msra.mxu0 0.0
    %4065 = vmatprep.subr.mxu0 0.0
    %4066 = vmatpush1.msra.mxu0 0.0
    %4067 = vmatprep.subr.mxu0 0.0
    %4068 = vmatpush1.msra.mxu0 0.0
    %4069 = vmatprep.subr.mxu0 0.0
    %4070 = vmatpush1.msra.mxu0 0.0
    %4071 = vmatprep.subr.mxu0 0.0
    %4072 = vmatpush1.msra.mxu0 0.0
    %4073 = vmatprep.subr.mxu0 0.0
    %4074 = vmatpush1.msra.mxu0 0.0
    %4075 = vmatprep.subr.mxu0 0.0
    %4076 = vmatpush1.msra.mxu0 0.0
    %4077 = vmatprep.subr.mxu0 0.0
    %4078 = vmatpush1.msra.mxu0 0.0
    %4079 = vmatprep.subr.mxu0 0.0
    %4080 = vmatpush1.msra.mxu0 0.0
    %4081 = vmatprep.subr.mxu0 0.0
    %4082 = vmatpush1.msra.mxu0 0.0
    %4083 = vmatprep.subr.mxu0 0.0
    %4084 = vmatpush1.msra.mxu0 0.0
    %4085 = vmatprep.subr.mxu0 0.0
    %4086 = vmatpush1.msra.mxu0 0.0
    %4087 = vmatprep.subr.mxu0 0.0
    %4088 = vmatpush1.msra.mxu0 0.0
    %4089 = vmatprep.subr.mxu0 0.0
    %4090 = vmatpush1.msra.mxu0 0.0
    %4091 = vmatprep.subr.mxu0 0.0
    %4092 = vmatpush1.msra.mxu0 0.0
    %4093 = vmatprep.subr.mxu0 0.0
    %4094 = vmatpush1.msra.mxu0 0.0
    %4095 = vmatprep.subr.mxu0 0.0
    %4096 = vmatpush1.msra.mxu0 0.0
    %4097 = vmatprep.subr.mxu0 0.0
    %4098 = vmatpush1.msra.mxu0 0.0
    %4099 = vmatprep.subr.mxu0 0.0
    %4100 = vmatpush1.msra.mxu0 0.0
    %4101 = vmatprep.subr.mxu0 0.0
    %4102 = vmatpush1.msra.mxu0 0.0
    %4103 = vmatprep.subr.mxu0 0.0
    %4104 = vmatpush1.msra.mxu0 0.0
    %4105 = vmatprep.subr.mxu0 0.0
    %4106 = vmatpush1.msra.mxu0 0.0
    %4107 = vmatprep.subr.mxu0 0.0
    %4108 = vmatpush1.msra.mxu0 0.0
    %4109 = vmatprep.subr.mxu0 0.0
    %4110 = vmatpush1.msra.mxu0 0.0
    %4111 = vmatprep.subr.mxu0 0.0
    %4112 = vmatpush1.msra.mxu0 0.0
    %4113 = vmatprep.subr.mxu0 0.0
    %4114 = vmatpush1.msra.mxu0 0.0
    %4115 = vmatprep.mubr.f32.mxu0 0.0
    %4116 = vmatmul.mubr.f32.gmra.mrb[0].mxu0 %v4049
    %v4117 = vpop.f32.mrb[0].mxu0
    %v4118 = vadd.f32 %v3783, %v4117
    %v4119 = vpop.f32.mrb[0].mxu0
    %4120 = vdwg.mxu0
    %v4122 = vrot.slane %v4118, 6
    %v4123 = vrot.slane %v4118, 7
    %v4126 = vadd.f32 %v3766, %v4122
    %v4127 = vadd.f32 %v3771, %v4123
    %v4128 = vxor.u32 %v4126, 2147483648
    %v4129 = vxor.u32 %v4127, 2147483648
    %v4130 = vmul.f32 %v4128, 1.442695
    %v4131 = vpow.pop %v4130
    %v4132 = vmul.f32 %v4129, 1.442695
    %v4133 = vpow.pop %v4132
    %v4134 = vadd.f32 %v4131, 1.0
    %v4135 = vadd.f32 %v4133, 1.0
    %v4136 = vrcp.pop %v4134
    %v4137 = vmul.f32 1.0, %v4136
    %v4138 = vrcp.pop %v4135
    %v4139 = vmul.f32 1.0, %v4138
    %4140 = vrot.lane.b32.xlu0 %v4122, 64
    %v4141 = vpop.permute.xlu0 %4140
    %4142 = vrot.lane.b32.xlu0 %v4123, 64
    %v4143 = vpop.permute.xlu0 %4142
    %v4146 = vmul.f32 %v4137, %v4141
    %v4147 = vmul.f32 %v4139, %v4143
    %4150 = vrot.lane.b32.xlu0 %v4146, 64
    %v4151 = vpop.permute.xlu0 %4150
    %4152 = vrot.lane.b32.xlu0 %v4147, 64
    %v4153 = vpop.permute.xlu0 %4152
    %v4156 = vadd.f32 %v3766, %v4151
    %v4157 = vadd.f32 %v3771, %v4153
    %v4158 = vtanh.pop %v4156
    %v4159 = vtanh.pop %v4157
    %v4160 = vsub.f32 1.0, %v4137
    %v4161 = vsub.f32 1.0, %v4139
    %4164 = vrot.lane.b32.xlu0 %v4158, 96
    %v4165 = vpop.permute.xlu0 %4164
    %4166 = vrot.lane.b32.xlu0 %v4159, 96
    %v4167 = vpop.permute.xlu0 %4166
    %v4170 = vmul.f32 %v4160, %v4165
    %v4171 = vmul.f32 %v4161, %v4167
    %v4172 = vrot.slane %v4041, 7
    %v4173 = vrot.slane %v4042, 7
    %v4176 = vmul.f32 %v4137, %v4172
    %v4177 = vmul.f32 %v4139, %v4173
    %v4178 = vadd.f32 %v4170, %v4176
    %v4179 = vadd.f32 %v4171, %v4177
    %v4182 = vrot.slane %v4178, 2
    %v4183 = vrot.slane %v4179, 1
    %v4184 = vsel %vm289, %v4183, %v4182
    %4185 = vrot.lane.b32.xlu0 %v4184, 96
    %v4186 = vpop.permute.xlu0 %4185
    %v4187 = vsel %vm158, %v4186, 0
    %4189 = vmatprep.subr.mxu0 0.0
    %4190 = vmatpush1.msra.mxu0 %v3775
    %4191 = vmatprep.subr.mxu0 0.0
    %4192 = vmatpush1.msra.mxu0 %v3776
    %4193 = vmatprep.subr.mxu0 0.0
    %4194 = vmatpush1.msra.mxu0 %v3777
    %4195 = vmatprep.subr.mxu0 0.0
    %4196 = vmatpush1.msra.mxu0 %v3778
    %4197 = vmatprep.subr.mxu0 0.0
    %4198 = vmatpush1.msra.mxu0 0.0
    %4199 = vmatprep.subr.mxu0 0.0
    %4200 = vmatpush1.msra.mxu0 0.0
    %4201 = vmatprep.subr.mxu0 0.0
    %4202 = vmatpush1.msra.mxu0 0.0
    %4203 = vmatprep.subr.mxu0 0.0
    %4204 = vmatpush1.msra.mxu0 0.0
    %4205 = vmatprep.subr.mxu0 0.0
    %4206 = vmatpush1.msra.mxu0 0.0
    %4207 = vmatprep.subr.mxu0 0.0
    %4208 = vmatpush1.msra.mxu0 0.0
    %4209 = vmatprep.subr.mxu0 0.0
    %4210 = vmatpush1.msra.mxu0 0.0
    %4211 = vmatprep.subr.mxu0 0.0
    %4212 = vmatpush1.msra.mxu0 0.0
    %4213 = vmatprep.subr.mxu0 0.0
    %4214 = vmatpush1.msra.mxu0 0.0
    %4215 = vmatprep.subr.mxu0 0.0
    %4216 = vmatpush1.msra.mxu0 0.0
    %4217 = vmatprep.subr.mxu0 0.0
    %4218 = vmatpush1.msra.mxu0 0.0
    %4219 = vmatprep.subr.mxu0 0.0
    %4220 = vmatpush1.msra.mxu0 0.0
    %4221 = vmatprep.subr.mxu0 0.0
    %4222 = vmatpush1.msra.mxu0 0.0
    %4223 = vmatprep.subr.mxu0 0.0
    %4224 = vmatpush1.msra.mxu0 0.0
    %4225 = vmatprep.subr.mxu0 0.0
    %4226 = vmatpush1.msra.mxu0 0.0
    %4227 = vmatprep.subr.mxu0 0.0
    %4228 = vmatpush1.msra.mxu0 0.0
    %4229 = vmatprep.subr.mxu0 0.0
    %4230 = vmatpush1.msra.mxu0 0.0
    %4231 = vmatprep.subr.mxu0 0.0
    %4232 = vmatpush1.msra.mxu0 0.0
    %4233 = vmatprep.subr.mxu0 0.0
    %4234 = vmatpush1.msra.mxu0 0.0
    %4235 = vmatprep.subr.mxu0 0.0
    %4236 = vmatpush1.msra.mxu0 0.0
    %4237 = vmatprep.subr.mxu0 0.0
    %4238 = vmatpush1.msra.mxu0 0.0
    %4239 = vmatprep.subr.mxu0 0.0
    %4240 = vmatpush1.msra.mxu0 0.0
    %4241 = vmatprep.subr.mxu0 0.0
    %4242 = vmatpush1.msra.mxu0 0.0
    %4243 = vmatprep.subr.mxu0 0.0
    %4244 = vmatpush1.msra.mxu0 0.0
    %4245 = vmatprep.subr.mxu0 0.0
    %4246 = vmatpush1.msra.mxu0 0.0
    %4247 = vmatprep.subr.mxu0 0.0
    %4248 = vmatpush1.msra.mxu0 0.0
    %4249 = vmatprep.subr.mxu0 0.0
    %4250 = vmatpush1.msra.mxu0 0.0
    %4251 = vmatprep.subr.mxu0 0.0
    %4252 = vmatpush1.msra.mxu0 0.0
    %4253 = vmatprep.mubr.f32.mxu0 0.0
    %4254 = vmatmul.mubr.f32.gmra.mrb[0].mxu0 %v4187
    %v4255 = vpop.f32.mrb[0].mxu0
    %v4256 = vadd.f32 %v3783, %v4255
    %v4257 = vpop.f32.mrb[0].mxu0
    %4258 = vdwg.mxu0
    %v4260 = vrot.slane %v4256, 5
    %v4261 = vrot.slane %v4256, 6
    %v4264 = vadd.f32 %v3766, %v4260
    %v4265 = vadd.f32 %v3771, %v4261
    %v4266 = vxor.u32 %v4264, 2147483648
    %v4267 = vxor.u32 %v4265, 2147483648
    %v4268 = vmul.f32 %v4266, 1.442695
    %v4269 = vpow.pop %v4268
    %v4270 = vmul.f32 %v4267, 1.442695
    %v4271 = vpow.pop %v4270
    %v4272 = vadd.f32 %v4269, 1.0
    %v4273 = vadd.f32 %v4271, 1.0
    %v4274 = vrcp.pop %v4272
    %v4275 = vmul.f32 1.0, %v4274
    %v4276 = vrcp.pop %v4273
    %v4277 = vmul.f32 1.0, %v4276
    %4278 = vrot.lane.b32.xlu0 %v4260, 64
    %v4279 = vpop.permute.xlu0 %4278
    %4280 = vrot.lane.b32.xlu0 %v4261, 64
    %v4281 = vpop.permute.xlu0 %4280
    %v4284 = vmul.f32 %v4275, %v4279
    %v4285 = vmul.f32 %v4277, %v4281
    %4288 = vrot.lane.b32.xlu0 %v4284, 64
    %v4289 = vpop.permute.xlu0 %4288
    %4290 = vrot.lane.b32.xlu0 %v4285, 64
    %v4291 = vpop.permute.xlu0 %4290
    %v4294 = vadd.f32 %v3766, %v4289
    %v4295 = vadd.f32 %v3771, %v4291
    %v4296 = vtanh.pop %v4294
    %v4297 = vtanh.pop %v4295
    %v4298 = vsub.f32 1.0, %v4275
    %v4299 = vsub.f32 1.0, %v4277
    %4302 = vrot.lane.b32.xlu0 %v4296, 96
    %v4303 = vpop.permute.xlu0 %4302
    %4304 = vrot.lane.b32.xlu0 %v4297, 96
    %v4305 = vpop.permute.xlu0 %4304
    %v4308 = vmul.f32 %v4298, %v4303
    %v4309 = vmul.f32 %v4299, %v4305
    %v4310 = vrot.slane %v4178, 7
    %v4311 = vrot.slane %v4179, 7
    %v4314 = vmul.f32 %v4275, %v4310
    %v4315 = vmul.f32 %v4277, %v4311
    %v4316 = vadd.f32 %v4308, %v4314
    %v4317 = vadd.f32 %v4309, %v4315
    %v4320 = vrot.slane %v4316, 3
    %v4321 = vrot.slane %v4317, 2
    %v4322 = vsel %vm289, %v4321, %v4320
    %4323 = vrot.lane.b32.xlu0 %v4322, 96
    %v4324 = vpop.permute.xlu0 %4323
    %v4325 = vsel %vm158, %v4324, 0
    %4327 = vmatprep.subr.mxu0 0.0
    %4328 = vmatpush1.msra.mxu0 %v3775
    %4329 = vmatprep.subr.mxu0 0.0
    %4330 = vmatpush1.msra.mxu0 %v3776
    %4331 = vmatprep.subr.mxu0 0.0
    %4332 = vmatpush1.msra.mxu0 %v3777
    %4333 = vmatprep.subr.mxu0 0.0
    %4334 = vmatpush1.msra.mxu0 %v3778
    %4335 = vmatprep.subr.mxu0 0.0
    %4336 = vmatpush1.msra.mxu0 0.0
    %4337 = vmatprep.subr.mxu0 0.0
    %4338 = vmatpush1.msra.mxu0 0.0
    %4339 = vmatprep.subr.mxu0 0.0
    %4340 = vmatpush1.msra.mxu0 0.0
    %4341 = vmatprep.subr.mxu0 0.0
    %4342 = vmatpush1.msra.mxu0 0.0
    %4343 = vmatprep.subr.mxu0 0.0
    %4344 = vmatpush1.msra.mxu0 0.0
    %4345 = vmatprep.subr.mxu0 0.0
    %4346 = vmatpush1.msra.mxu0 0.0
    %4347 = vmatprep.subr.mxu0 0.0
    %4348 = vmatpush1.msra.mxu0 0.0
    %4349 = vmatprep.subr.mxu0 0.0
    %4350 = vmatpush1.msra.mxu0 0.0
    %4351 = vmatprep.subr.mxu0 0.0
    %4352 = vmatpush1.msra.mxu0 0.0
    %4353 = vmatprep.subr.mxu0 0.0
    %4354 = vmatpush1.msra.mxu0 0.0
    %4355 = vmatprep.subr.mxu0 0.0
    %4356 = vmatpush1.msra.mxu0 0.0
    %4357 = vmatprep.subr.mxu0 0.0
    %4358 = vmatpush1.msra.mxu0 0.0
    %4359 = vmatprep.subr.mxu0 0.0
    %4360 = vmatpush1.msra.mxu0 0.0
    %4361 = vmatprep.subr.mxu0 0.0
    %4362 = vmatpush1.msra.mxu0 0.0
    %4363 = vmatprep.subr.mxu0 0.0
    %4364 = vmatpush1.msra.mxu0 0.0
    %4365 = vmatprep.subr.mxu0 0.0
    %4366 = vmatpush1.msra.mxu0 0.0
    %4367 = vmatprep.subr.mxu0 0.0
    %4368 = vmatpush1.msra.mxu0 0.0
    %4369 = vmatprep.subr.mxu0 0.0
    %4370 = vmatpush1.msra.mxu0 0.0
    %4371 = vmatprep.subr.mxu0 0.0
    %4372 = vmatpush1.msra.mxu0 0.0
    %4373 = vmatprep.subr.mxu0 0.0
    %4374 = vmatpush1.msra.mxu0 0.0
    %4375 = vmatprep.subr.mxu0 0.0
    %4376 = vmatpush1.msra.mxu0 0.0
    %4377 = vmatprep.subr.mxu0 0.0
    %4378 = vmatpush1.msra.mxu0 0.0
    %4379 = vmatprep.subr.mxu0 0.0
    %4380 = vmatpush1.msra.mxu0 0.0
    %4381 = vmatprep.subr.mxu0 0.0
    %4382 = vmatpush1.msra.mxu0 0.0
    %4383 = vmatprep.subr.mxu0 0.0
    %4384 = vmatpush1.msra.mxu0 0.0
    %4385 = vmatprep.subr.mxu0 0.0
    %4386 = vmatpush1.msra.mxu0 0.0
    %4387 = vmatprep.subr.mxu0 0.0
    %4388 = vmatpush1.msra.mxu0 0.0
    %4389 = vmatprep.subr.mxu0 0.0
    %4390 = vmatpush1.msra.mxu0 0.0
    %4391 = vmatprep.mubr.f32.mxu0 0.0
    %4392 = vmatmul.mubr.f32.gmra.mrb[0].mxu0 %v4325
    %v4393 = vpop.f32.mrb[0].mxu0
    %v4394 = vadd.f32 %v3783, %v4393
    %v4395 = vpop.f32.mrb[0].mxu0
    %4396 = vdwg.mxu0
    %v4398 = vrot.slane %v4394, 4
    %v4399 = vrot.slane %v4394, 5
    %v4402 = vadd.f32 %v3766, %v4398
    %v4403 = vadd.f32 %v3771, %v4399
    %v4404 = vxor.u32 %v4402, 2147483648
    %v4405 = vxor.u32 %v4403, 2147483648
    %v4406 = vmul.f32 %v4404, 1.442695
    %v4407 = vpow.pop %v4406
    %v4408 = vmul.f32 %v4405, 1.442695
    %v4409 = vpow.pop %v4408
    %v4410 = vadd.f32 %v4407, 1.0
    %v4411 = vadd.f32 %v4409, 1.0
    %v4412 = vrcp.pop %v4410
    %v4413 = vmul.f32 1.0, %v4412
    %v4414 = vrcp.pop %v4411
    %v4415 = vmul.f32 1.0, %v4414
    %4416 = vrot.lane.b32.xlu0 %v4398, 64
    %v4417 = vpop.permute.xlu0 %4416
    %4418 = vrot.lane.b32.xlu0 %v4399, 64
    %v4419 = vpop.permute.xlu0 %4418
    %v4422 = vmul.f32 %v4413, %v4417
    %v4423 = vmul.f32 %v4415, %v4419
    %4426 = vrot.lane.b32.xlu0 %v4422, 64
    %v4427 = vpop.permute.xlu0 %4426
    %4428 = vrot.lane.b32.xlu0 %v4423, 64
    %v4429 = vpop.permute.xlu0 %4428
    %v4432 = vadd.f32 %v3766, %v4427
    %v4433 = vadd.f32 %v3771, %v4429
    %v4434 = vtanh.pop %v4432
    %v4435 = vtanh.pop %v4433
    %v4436 = vsub.f32 1.0, %v4413
    %v4437 = vsub.f32 1.0, %v4415
    %4440 = vrot.lane.b32.xlu0 %v4434, 96
    %v4441 = vpop.permute.xlu0 %4440
    %4442 = vrot.lane.b32.xlu0 %v4435, 96
    %v4443 = vpop.permute.xlu0 %4442
    %v4446 = vmul.f32 %v4436, %v4441
    %v4447 = vmul.f32 %v4437, %v4443
    %v4448 = vrot.slane %v4316, 7
    %v4449 = vrot.slane %v4317, 7
    %v4452 = vmul.f32 %v4413, %v4448
    %v4453 = vmul.f32 %v4415, %v4449
    %v4454 = vadd.f32 %v4446, %v4452
    %v4455 = vadd.f32 %v4447, %v4453
    %v4458 = vrot.slane %v4454, 4
    %v4459 = vrot.slane %v4455, 3
    %v4460 = vsel %vm289, %v4459, %v4458
    %4461 = vrot.lane.b32.xlu0 %v4460, 96
    %v4462 = vpop.permute.xlu0 %4461
    %v4463 = vsel %vm158, %v4462, 0
    %4465 = vmatprep.subr.mxu0 0.0
    %4466 = vmatpush1.msra.mxu0 %v3775
    %4467 = vmatprep.subr.mxu0 0.0
    %4468 = vmatpush1.msra.mxu0 %v3776
    %4469 = vmatprep.subr.mxu0 0.0
    %4470 = vmatpush1.msra.mxu0 %v3777
    %4471 = vmatprep.subr.mxu0 0.0
    %4472 = vmatpush1.msra.mxu0 %v3778
    %4473 = vmatprep.subr.mxu0 0.0
    %4474 = vmatpush1.msra.mxu0 0.0
    %4475 = vmatprep.subr.mxu0 0.0
    %4476 = vmatpush1.msra.mxu0 0.0
    %4477 = vmatprep.subr.mxu0 0.0
    %4478 = vmatpush1.msra.mxu0 0.0
    %4479 = vmatprep.subr.mxu0 0.0
    %4480 = vmatpush1.msra.mxu0 0.0
    %4481 = vmatprep.subr.mxu0 0.0
    %4482 = vmatpush1.msra.mxu0 0.0
    %4483 = vmatprep.subr.mxu0 0.0
    %4484 = vmatpush1.msra.mxu0 0.0
    %4485 = vmatprep.subr.mxu0 0.0
    %4486 = vmatpush1.msra.mxu0 0.0
    %4487 = vmatprep.subr.mxu0 0.0
    %4488 = vmatpush1.msra.mxu0 0.0
    %4489 = vmatprep.subr.mxu0 0.0
    %4490 = vmatpush1.msra.mxu0 0.0
    %4491 = vmatprep.subr.mxu0 0.0
    %4492 = vmatpush1.msra.mxu0 0.0
    %4493 = vmatprep.subr.mxu0 0.0
    %4494 = vmatpush1.msra.mxu0 0.0
    %4495 = vmatprep.subr.mxu0 0.0
    %4496 = vmatpush1.msra.mxu0 0.0
    %4497 = vmatprep.subr.mxu0 0.0
    %4498 = vmatpush1.msra.mxu0 0.0
    %4499 = vmatprep.subr.mxu0 0.0
    %4500 = vmatpush1.msra.mxu0 0.0
    %4501 = vmatprep.subr.mxu0 0.0
    %4502 = vmatpush1.msra.mxu0 0.0
    %4503 = vmatprep.subr.mxu0 0.0
    %4504 = vmatpush1.msra.mxu0 0.0
    %4505 = vmatprep.subr.mxu0 0.0
    %4506 = vmatpush1.msra.mxu0 0.0
    %4507 = vmatprep.subr.mxu0 0.0
    %4508 = vmatpush1.msra.mxu0 0.0
    %4509 = vmatprep.subr.mxu0 0.0
    %4510 = vmatpush1.msra.mxu0 0.0
    %4511 = vmatprep.subr.mxu0 0.0
    %4512 = vmatpush1.msra.mxu0 0.0
    %4513 = vmatprep.subr.mxu0 0.0
    %4514 = vmatpush1.msra.mxu0 0.0
    %4515 = vmatprep.subr.mxu0 0.0
    %4516 = vmatpush1.msra.mxu0 0.0
    %4517 = vmatprep.subr.mxu0 0.0
    %4518 = vmatpush1.msra.mxu0 0.0
    %4519 = vmatprep.subr.mxu0 0.0
    %4520 = vmatpush1.msra.mxu0 0.0
    %4521 = vmatprep.subr.mxu0 0.0
    %4522 = vmatpush1.msra.mxu0 0.0
    %4523 = vmatprep.subr.mxu0 0.0
    %4524 = vmatpush1.msra.mxu0 0.0
    %4525 = vmatprep.subr.mxu0 0.0
    %4526 = vmatpush1.msra.mxu0 0.0
    %4527 = vmatprep.subr.mxu0 0.0
    %4528 = vmatpush1.msra.mxu0 0.0
    %4529 = vmatprep.mubr.f32.mxu0 0.0
    %4530 = vmatmul.mubr.f32.gmra.mrb[0].mxu0 %v4463
    %v4531 = vpop.f32.mrb[0].mxu0
    %v4532 = vadd.f32 %v3783, %v4531
    %v4533 = vpop.f32.mrb[0].mxu0
    %4534 = vdwg.mxu0
    %v4536 = vrot.slane %v4532, 3
    %v4537 = vrot.slane %v4532, 4
    %v4540 = vadd.f32 %v3766, %v4536
    %v4541 = vadd.f32 %v3771, %v4537
    %v4542 = vxor.u32 %v4540, 2147483648
    %v4543 = vxor.u32 %v4541, 2147483648
    %v4544 = vmul.f32 %v4542, 1.442695
    %v4545 = vpow.pop %v4544
    %v4546 = vmul.f32 %v4543, 1.442695
    %v4547 = vpow.pop %v4546
    %v4548 = vadd.f32 %v4545, 1.0
    %v4549 = vadd.f32 %v4547, 1.0
    %v4550 = vrcp.pop %v4548
    %v4551 = vmul.f32 1.0, %v4550
    %v4552 = vrcp.pop %v4549
    %v4553 = vmul.f32 1.0, %v4552
    %4554 = vrot.lane.b32.xlu0 %v4536, 64
    %v4555 = vpop.permute.xlu0 %4554
    %4556 = vrot.lane.b32.xlu0 %v4537, 64
    %v4557 = vpop.permute.xlu0 %4556
    %v4560 = vmul.f32 %v4551, %v4555
    %v4561 = vmul.f32 %v4553, %v4557
    %4564 = vrot.lane.b32.xlu0 %v4560, 64
    %v4565 = vpop.permute.xlu0 %4564
    %4566 = vrot.lane.b32.xlu0 %v4561, 64
    %v4567 = vpop.permute.xlu0 %4566
    %v4570 = vadd.f32 %v3766, %v4565
    %v4571 = vadd.f32 %v3771, %v4567
    %v4572 = vtanh.pop %v4570
    %v4573 = vtanh.pop %v4571
    %v4574 = vsub.f32 1.0, %v4551
    %v4575 = vsub.f32 1.0, %v4553
    %4578 = vrot.lane.b32.xlu0 %v4572, 96
    %v4579 = vpop.permute.xlu0 %4578
    %4580 = vrot.lane.b32.xlu0 %v4573, 96
    %v4581 = vpop.permute.xlu0 %4580
    %v4584 = vmul.f32 %v4574, %v4579
    %v4585 = vmul.f32 %v4575, %v4581
    %v4586 = vrot.slane %v4454, 7
    %v4587 = vrot.slane %v4455, 7
    %v4590 = vmul.f32 %v4551, %v4586
    %v4591 = vmul.f32 %v4553, %v4587
    %v4592 = vadd.f32 %v4584, %v4590
    %v4593 = vadd.f32 %v4585, %v4591
    %v4596 = vrot.slane %v4592, 5
    %v4597 = vrot.slane %v4593, 4
    %v4598 = vsel %vm289, %v4597, %v4596
    %4599 = vrot.lane.b32.xlu0 %v4598, 96
    %v4600 = vpop.permute.xlu0 %4599
    %v4601 = vsel %vm158, %v4600, 0
    %4603 = vmatprep.subr.mxu0 0.0
    %4604 = vmatpush1.msra.mxu0 %v3775
    %4605 = vmatprep.subr.mxu0 0.0
    %4606 = vmatpush1.msra.mxu0 %v3776
    %4607 = vmatprep.subr.mxu0 0.0
    %4608 = vmatpush1.msra.mxu0 %v3777
    %4609 = vmatprep.subr.mxu0 0.0
    %4610 = vmatpush1.msra.mxu0 %v3778
    %4611 = vmatprep.subr.mxu0 0.0
    %4612 = vmatpush1.msra.mxu0 0.0
    %4613 = vmatprep.subr.mxu0 0.0
    %4614 = vmatpush1.msra.mxu0 0.0
    %4615 = vmatprep.subr.mxu0 0.0
    %4616 = vmatpush1.msra.mxu0 0.0
    %4617 = vmatprep.subr.mxu0 0.0
    %4618 = vmatpush1.msra.mxu0 0.0
    %4619 = vmatprep.subr.mxu0 0.0
    %4620 = vmatpush1.msra.mxu0 0.0
    %4621 = vmatprep.subr.mxu0 0.0
    %4622 = vmatpush1.msra.mxu0 0.0
    %4623 = vmatprep.subr.mxu0 0.0
    %4624 = vmatpush1.msra.mxu0 0.0
    %4625 = vmatprep.subr.mxu0 0.0
    %4626 = vmatpush1.msra.mxu0 0.0
    %4627 = vmatprep.subr.mxu0 0.0
    %4628 = vmatpush1.msra.mxu0 0.0
    %4629 = vmatprep.subr.mxu0 0.0
    %4630 = vmatpush1.msra.mxu0 0.0
    %4631 = vmatprep.subr.mxu0 0.0
    %4632 = vmatpush1.msra.mxu0 0.0
    %4633 = vmatprep.subr.mxu0 0.0
    %4634 = vmatpush1.msra.mxu0 0.0
    %4635 = vmatprep.subr.mxu0 0.0
    %4636 = vmatpush1.msra.mxu0 0.0
    %4637 = vmatprep.subr.mxu0 0.0
    %4638 = vmatpush1.msra.mxu0 0.0
    %4639 = vmatprep.subr.mxu0 0.0
    %4640 = vmatpush1.msra.mxu0 0.0
    %4641 = vmatprep.subr.mxu0 0.0
    %4642 = vmatpush1.msra.mxu0 0.0
    %4643 = vmatprep.subr.mxu0 0.0
    %4644 = vmatpush1.msra.mxu0 0.0
    %4645 = vmatprep.subr.mxu0 0.0
    %4646 = vmatpush1.msra.mxu0 0.0
    %4647 = vmatprep.subr.mxu0 0.0
    %4648 = vmatpush1.msra.mxu0 0.0
    %4649 = vmatprep.subr.mxu0 0.0
    %4650 = vmatpush1.msra.mxu0 0.0
    %4651 = vmatprep.subr.mxu0 0.0
    %4652 = vmatpush1.msra.mxu0 0.0
    %4653 = vmatprep.subr.mxu0 0.0
    %4654 = vmatpush1.msra.mxu0 0.0
    %4655 = vmatprep.subr.mxu0 0.0
    %4656 = vmatpush1.msra.mxu0 0.0
    %4657 = vmatprep.subr.mxu0 0.0
    %4658 = vmatpush1.msra.mxu0 0.0
    %4659 = vmatprep.subr.mxu0 0.0
    %4660 = vmatpush1.msra.mxu0 0.0
    %4661 = vmatprep.subr.mxu0 0.0
    %4662 = vmatpush1.msra.mxu0 0.0
    %4663 = vmatprep.subr.mxu0 0.0
    %4664 = vmatpush1.msra.mxu0 0.0
    %4665 = vmatprep.subr.mxu0 0.0
    %4666 = vmatpush1.msra.mxu0 0.0
    %4667 = vmatprep.mubr.f32.mxu0 0.0
    %4668 = vmatmul.mubr.f32.gmra.mrb[0].mxu0 %v4601
    %v4669 = vpop.f32.mrb[0].mxu0
    %v4670 = vadd.f32 %v3783, %v4669
    %v4671 = vpop.f32.mrb[0].mxu0
    %4672 = vdwg.mxu0
    %v4674 = vrot.slane %v4670, 2
    %v4675 = vrot.slane %v4670, 3
    %v4678 = vadd.f32 %v3766, %v4674
    %v4679 = vadd.f32 %v3771, %v4675
    %v4680 = vxor.u32 %v4678, 2147483648
    %v4681 = vxor.u32 %v4679, 2147483648
    %v4682 = vmul.f32 %v4680, 1.442695
    %v4683 = vpow.pop %v4682
    %v4684 = vmul.f32 %v4681, 1.442695
    %v4685 = vpow.pop %v4684
    %v4686 = vadd.f32 %v4683, 1.0
    %v4687 = vadd.f32 %v4685, 1.0
    %v4688 = vrcp.pop %v4686
    %v4689 = vmul.f32 1.0, %v4688
    %v4690 = vrcp.pop %v4687
    %v4691 = vmul.f32 1.0, %v4690
    %4692 = vrot.lane.b32.xlu0 %v4674, 64
    %v4693 = vpop.permute.xlu0 %4692
    %4694 = vrot.lane.b32.xlu0 %v4675, 64
    %v4695 = vpop.permute.xlu0 %4694
    %v4698 = vmul.f32 %v4689, %v4693
    %v4699 = vmul.f32 %v4691, %v4695
    %4702 = vrot.lane.b32.xlu0 %v4698, 64
    %v4703 = vpop.permute.xlu0 %4702
    %4704 = vrot.lane.b32.xlu0 %v4699, 64
    %v4705 = vpop.permute.xlu0 %4704
    %v4708 = vadd.f32 %v3766, %v4703
    %v4709 = vadd.f32 %v3771, %v4705
    %v4710 = vtanh.pop %v4708
    %v4711 = vtanh.pop %v4709
    %v4712 = vsub.f32 1.0, %v4689
    %v4713 = vsub.f32 1.0, %v4691
    %4716 = vrot.lane.b32.xlu0 %v4710, 96
    %v4717 = vpop.permute.xlu0 %4716
    %4718 = vrot.lane.b32.xlu0 %v4711, 96
    %v4719 = vpop.permute.xlu0 %4718
    %v4722 = vmul.f32 %v4712, %v4717
    %v4723 = vmul.f32 %v4713, %v4719
    %v4724 = vrot.slane %v4592, 7
    %v4725 = vrot.slane %v4593, 7
    %v4728 = vmul.f32 %v4689, %v4724
    %v4729 = vmul.f32 %v4691, %v4725
    %v4730 = vadd.f32 %v4722, %v4728
    %v4731 = vadd.f32 %v4723, %v4729
    %v4734 = vrot.slane %v4730, 6
    %v4735 = vrot.slane %v4731, 5
    %v4736 = vsel %vm289, %v4735, %v4734
    %4737 = vrot.lane.b32.xlu0 %v4736, 96
    %v4738 = vpop.permute.xlu0 %4737
    %v4739 = vsel %vm158, %v4738, 0
    %4741 = vmatprep.subr.mxu0 0.0
    %4742 = vmatpush1.msra.mxu0 %v3775
    %4743 = vmatprep.subr.mxu0 0.0
    %4744 = vmatpush1.msra.mxu0 %v3776
    %4745 = vmatprep.subr.mxu0 0.0
    %4746 = vmatpush1.msra.mxu0 %v3777
    %4747 = vmatprep.subr.mxu0 0.0
    %4748 = vmatpush1.msra.mxu0 %v3778
    %4749 = vmatprep.subr.mxu0 0.0
    %4750 = vmatpush1.msra.mxu0 0.0
    %4751 = vmatprep.subr.mxu0 0.0
    %4752 = vmatpush1.msra.mxu0 0.0
    %4753 = vmatprep.subr.mxu0 0.0
    %4754 = vmatpush1.msra.mxu0 0.0
    %4755 = vmatprep.subr.mxu0 0.0
    %4756 = vmatpush1.msra.mxu0 0.0
    %4757 = vmatprep.subr.mxu0 0.0
    %4758 = vmatpush1.msra.mxu0 0.0
    %4759 = vmatprep.subr.mxu0 0.0
    %4760 = vmatpush1.msra.mxu0 0.0
    %4761 = vmatprep.subr.mxu0 0.0
    %4762 = vmatpush1.msra.mxu0 0.0
    %4763 = vmatprep.subr.mxu0 0.0
    %4764 = vmatpush1.msra.mxu0 0.0
    %4765 = vmatprep.subr.mxu0 0.0
    %4766 = vmatpush1.msra.mxu0 0.0
    %4767 = vmatprep.subr.mxu0 0.0
    %4768 = vmatpush1.msra.mxu0 0.0
    %4769 = vmatprep.subr.mxu0 0.0
    %4770 = vmatpush1.msra.mxu0 0.0
    %4771 = vmatprep.subr.mxu0 0.0
    %4772 = vmatpush1.msra.mxu0 0.0
    %4773 = vmatprep.subr.mxu0 0.0
    %4774 = vmatpush1.msra.mxu0 0.0
    %4775 = vmatprep.subr.mxu0 0.0
    %4776 = vmatpush1.msra.mxu0 0.0
    %4777 = vmatprep.subr.mxu0 0.0
    %4778 = vmatpush1.msra.mxu0 0.0
    %4779 = vmatprep.subr.mxu0 0.0
    %4780 = vmatpush1.msra.mxu0 0.0
    %4781 = vmatprep.subr.mxu0 0.0
    %4782 = vmatpush1.msra.mxu0 0.0
    %4783 = vmatprep.subr.mxu0 0.0
    %4784 = vmatpush1.msra.mxu0 0.0
    %4785 = vmatprep.subr.mxu0 0.0
    %4786 = vmatpush1.msra.mxu0 0.0
    %4787 = vmatprep.subr.mxu0 0.0
    %4788 = vmatpush1.msra.mxu0 0.0
    %4789 = vmatprep.subr.mxu0 0.0
    %4790 = vmatpush1.msra.mxu0 0.0
    %4791 = vmatprep.subr.mxu0 0.0
    %4792 = vmatpush1.msra.mxu0 0.0
    %4793 = vmatprep.subr.mxu0 0.0
    %4794 = vmatpush1.msra.mxu0 0.0
    %4795 = vmatprep.subr.mxu0 0.0
    %4796 = vmatpush1.msra.mxu0 0.0
    %4797 = vmatprep.subr.mxu0 0.0
    %4798 = vmatpush1.msra.mxu0 0.0
    %4799 = vmatprep.subr.mxu0 0.0
    %4800 = vmatpush1.msra.mxu0 0.0
    %4801 = vmatprep.subr.mxu0 0.0
    %4802 = vmatpush1.msra.mxu0 0.0
    %4803 = vmatprep.subr.mxu0 0.0
    %4804 = vmatpush1.msra.mxu0 0.0
    %4805 = vmatprep.mubr.f32.mxu0 0.0
    %4806 = vmatmul.mubr.f32.gmra.mrb[0].mxu0 %v4739
    %v4807 = vpop.f32.mrb[0].mxu0
    %v4808 = vadd.f32 %v3783, %v4807
    %v4809 = vpop.f32.mrb[0].mxu0
    %4810 = vdwg.mxu0
    %v4812 = vrot.slane %v4808, 1
    %v4813 = vrot.slane %v4808, 2
    %v4816 = vadd.f32 %v3766, %v4812
    %v4817 = vadd.f32 %v3771, %v4813
    %v4818 = vxor.u32 %v4816, 2147483648
    %v4819 = vxor.u32 %v4817, 2147483648
    %v4820 = vmul.f32 %v4818, 1.442695
    %v4821 = vpow.pop %v4820
    %v4822 = vmul.f32 %v4819, 1.442695
    %v4823 = vpow.pop %v4822
    %v4824 = vadd.f32 %v4821, 1.0
    %v4825 = vadd.f32 %v4823, 1.0
    %v4826 = vrcp.pop %v4824
    %v4827 = vmul.f32 1.0, %v4826
    %v4828 = vrcp.pop %v4825
    %v4829 = vmul.f32 1.0, %v4828
    %4830 = vrot.lane.b32.xlu0 %v4812, 64
    %v4831 = vpop.permute.xlu0 %4830
    %4832 = vrot.lane.b32.xlu0 %v4813, 64
    %v4833 = vpop.permute.xlu0 %4832
    %v4836 = vmul.f32 %v4827, %v4831
    %v4837 = vmul.f32 %v4829, %v4833
    %4840 = vrot.lane.b32.xlu0 %v4836, 64
    %v4841 = vpop.permute.xlu0 %4840
    %4842 = vrot.lane.b32.xlu0 %v4837, 64
    %v4843 = vpop.permute.xlu0 %4842
    %v4846 = vadd.f32 %v3766, %v4841
    %v4847 = vadd.f32 %v3771, %v4843
    %v4848 = vtanh.pop %v4846
    %v4849 = vtanh.pop %v4847
    %v4850 = vsub.f32 1.0, %v4827
    %v4851 = vsub.f32 1.0, %v4829
    %4854 = vrot.lane.b32.xlu0 %v4848, 96
    %v4855 = vpop.permute.xlu0 %4854
    %4856 = vrot.lane.b32.xlu0 %v4849, 96
    %v4857 = vpop.permute.xlu0 %4856
    %v4860 = vmul.f32 %v4850, %v4855
    %v4861 = vmul.f32 %v4851, %v4857
    %v4862 = vrot.slane %v4730, 7
    %v4863 = vrot.slane %v4731, 7
    %v4866 = vmul.f32 %v4827, %v4862
    %v4867 = vmul.f32 %v4829, %v4863
    %v4868 = vadd.f32 %v4860, %v4866
    %v4869 = vadd.f32 %v4861, %v4867
    %v4870 = vld [vmem:[%s6] sm:$0xff]
    %v4871 = vld [vmem:[%s6 + $0x8] sm:$0xff]
    %v4872 = vld [vmem:[%s6 + $0x10] sm:$0xff]
    %v4873 = vld [vmem:[%s6 + $0x18] sm:$0xff]
    %v4874 = vld [vmem:[%s7] sm:$0x1]
    %v4876 = vlaneseq
    %v4877 = vshrl.u32 %v4876, 7
    %v4878 = vsub.s32 0, %v4877
    %v4879 = vrot.slane %v4874, %v4878
    %v4883 = vrot.slane %v4868, 7
    %v4884 = vrot.slane %v4869, 6
    %v4885 = vsel %vm289, %v4884, %v4883
    %4886 = vrot.lane.b32.xlu0 %v4885, 96
    %v4887 = vpop.permute.xlu0 %4886
    %v4888 = vsel %vm158, %v4887, 0
    %4890 = vmatprep.subr.mxu0 0.0
    %4891 = vmatpush1.msra.mxu0 %v4870
    %4892 = vmatprep.subr.mxu0 0.0
    %4893 = vmatpush1.msra.mxu0 %v4871
    %4894 = vmatprep.subr.mxu0 0.0
    %4895 = vmatpush1.msra.mxu0 %v4872
    %4896 = vmatprep.subr.mxu0 0.0
    %4897 = vmatpush1.msra.mxu0 %v4873
    %4898 = vmatprep.subr.mxu0 0.0
    %4899 = vmatpush1.msra.mxu0 0.0
    %4900 = vmatprep.subr.mxu0 0.0
    %4901 = vmatpush1.msra.mxu0 0.0
    %4902 = vmatprep.subr.mxu0 0.0
    %4903 = vmatpush1.msra.mxu0 0.0
    %4904 = vmatprep.subr.mxu0 0.0
    %4905 = vmatpush1.msra.mxu0 0.0
    %4906 = vmatprep.subr.mxu0 0.0
    %4907 = vmatpush1.msra.mxu0 0.0
    %4908 = vmatprep.subr.mxu0 0.0
    %4909 = vmatpush1.msra.mxu0 0.0
    %4910 = vmatprep.subr.mxu0 0.0
    %4911 = vmatpush1.msra.mxu0 0.0
    %4912 = vmatprep.subr.mxu0 0.0
    %4913 = vmatpush1.msra.mxu0 0.0
    %4914 = vmatprep.subr.mxu0 0.0
    %4915 = vmatpush1.msra.mxu0 0.0
    %4916 = vmatprep.subr.mxu0 0.0
    %4917 = vmatpush1.msra.mxu0 0.0
    %4918 = vmatprep.subr.mxu0 0.0
    %4919 = vmatpush1.msra.mxu0 0.0
    %4920 = vmatprep.subr.mxu0 0.0
    %4921 = vmatpush1.msra.mxu0 0.0
    %4922 = vmatprep.subr.mxu0 0.0
    %4923 = vmatpush1.msra.mxu0 0.0
    %4924 = vmatprep.subr.mxu0 0.0
    %4925 = vmatpush1.msra.mxu0 0.0
    %4926 = vmatprep.subr.mxu0 0.0
    %4927 = vmatpush1.msra.mxu0 0.0
    %4928 = vmatprep.subr.mxu0 0.0
    %4929 = vmatpush1.msra.mxu0 0.0
    %4930 = vmatprep.subr.mxu0 0.0
    %4931 = vmatpush1.msra.mxu0 0.0
    %4932 = vmatprep.subr.mxu0 0.0
    %4933 = vmatpush1.msra.mxu0 0.0
    %4934 = vmatprep.subr.mxu0 0.0
    %4935 = vmatpush1.msra.mxu0 0.0
    %4936 = vmatprep.subr.mxu0 0.0
    %4937 = vmatpush1.msra.mxu0 0.0
    %4938 = vmatprep.subr.mxu0 0.0
    %4939 = vmatpush1.msra.mxu0 0.0
    %4940 = vmatprep.subr.mxu0 0.0
    %4941 = vmatpush1.msra.mxu0 0.0
    %4942 = vmatprep.subr.mxu0 0.0
    %4943 = vmatpush1.msra.mxu0 0.0
    %4944 = vmatprep.subr.mxu0 0.0
    %4945 = vmatpush1.msra.mxu0 0.0
    %4946 = vmatprep.subr.mxu0 0.0
    %4947 = vmatpush1.msra.mxu0 0.0
    %4948 = vmatprep.subr.mxu0 0.0
    %4949 = vmatpush1.msra.mxu0 0.0
    %4950 = vmatprep.subr.mxu0 0.0
    %4951 = vmatpush1.msra.mxu0 0.0
    %4952 = vmatprep.subr.mxu0 0.0
    %4953 = vmatpush1.msra.mxu0 0.0
    %4954 = vmatprep.mubr.f32.mxu0 0.0
    %4955 = vmatmul.mubr.f32.gmra.mrb[0].mxu0 %v4888
    %v4956 = vpop.f32.mrb[0].mxu0
    %v4957 = vadd.f32 %v4879, %v4956
    %v4958 = vpop.f32.mrb[0].mxu0
    %4959 = vdwg.mxu0
    %vm4960 = vcmask 9216
    %4961 = vst.msk [vmem:[#allocation7] sm:$0x3] %vm4960, %v4957
    // Predicated region
    $region42: #{deeplog_gru_forward.1} parent=1 // pred_check
      _
    $region43: #{deeplog_gru_forward.1} parent=1 // pred_check_branch
      %4963 = sbr.rel (0) target = $region45
    $region44: #{deeplog_gru_forward.1} parent=1 // pred_region
      %s4965 = ssub.s32 32, 32
      %4966 = vsyncadd [#allocation4], %s4965
      %s4968 = sshll.u32 [#allocation7], 4
      %s4969 = int_to_ptr.vmem [resolvable:$true] %s4968
      %4971 = dma.vmem_to_hbm [thread:$0]  %s4969, 32, %s8, [#allocation4]
    $region45: #{deeplog_gru_forward.1} parent=1 // pred_fallthru
      _
    // Predicated region
    $region46: #{deeplog_gru_forward.1} parent=1 // pred_check
      _
    $region47: #{deeplog_gru_forward.1} parent=1 // pred_check_branch
      %4973 = sbr.rel (0) target = $region49
    $region48: #{deeplog_gru_forward.1} parent=1 // pred_region
      %4974 = dma.done [#allocation4], 32
    $region49: #{deeplog_gru_forward.1} parent=1 // pred_fallthru
      _
    %4975 = vsyncpa [#allocation3], 1
    %4976 = vsyncpa [#allocation6], 1
    %4977 = vsyncpa [#allocation4], 1

</llo_original>
